<compile_context>
chip_gen: v7x
topology: tpu7x:2x2x1
jax: 0.10.0
libtpu: 0.0.40
codegen_flags: <defaults>
</compile_context>

<pallas_src>
import functools

import jax
import jax.numpy as jnp
from jax.experimental import pallas as pl
from jax.experimental.pallas import tpu as pltpu


def mil_classifier_kernel(*refs, bags_per_step, n_instances, hidden_dim, gated):
    """One grid step = `bags_per_step` whole bags.

    Refs (gated adds uw/ub):
      h_ref:    (Bt, N, F)   instances of these bags (f32 or bf16)
      vw_ref:   (F, H)       V weight, pre-transposed (same dtype as H)
      vb_ref:   (1, H)       V bias (f32)
      [uw_ref:  (F, H)       U weight]
      [ub_ref:  (1, H)       U bias]
      watt_ref: (1, H)       attention projection vector w (f32)
      cw_ref:   (1, F)       classifier weight (f32)
      cb_ref:   (1, 1)       classifier bias (f32)
      prob_ref: (Bt, 1, 1)   sigmoid(logit) per bag
      ak_ref:   (Bt, 1, N)   softmax attention weights per bag (lane-dense)
    """
    if gated:
        (h_ref, vw_ref, vb_ref, uw_ref, ub_ref,
         watt_ref, cw_ref, cb_ref, prob_ref, ak_ref) = refs
    else:
        (h_ref, vw_ref, vb_ref,
         watt_ref, cw_ref, cb_ref, prob_ref, ak_ref) = refs

    bt, n, hd = bags_per_step, n_instances, hidden_dim

    h3 = h_ref[...]                                   # (Bt, N, F)
    f = h3.shape[-1]
    h2 = h3.reshape(bt * n, f)                        # merge leading dims

    # Attention MLP: one MXU matmul per projection, f32 accumulation.
    v = jnp.tanh(
        jnp.dot(h2, vw_ref[...], preferred_element_type=jnp.float32)
        + vb_ref[...])                                # (Bt*N, H) f32
    if gated:
        u = jax.nn.sigmoid(
            jnp.dot(h2, uw_ref[...], preferred_element_type=jnp.float32)
            + ub_ref[...])
        g = v * u                                     # (Bt*N, H) f32
    else:
        g = v

    # Scores with N on LANES: flash-style batched matmul (Bt,1,H)x(Bt,N,H)
    # -> (Bt, 1, N).  Keeps the softmax a fast lane reduction and makes the
    # a_k store lane-dense.
    g3 = g.reshape(bt, n, hd)                         # (Bt, N, H)
    w3 = jnp.broadcast_to(watt_ref[...].reshape(1, 1, hd), (bt, 1, hd))
    scores = jnp.einsum('bxh,bnh->bxn', w3, g3,
                        preferred_element_type=jnp.float32)   # (Bt, 1, N)

    # Softmax over the N instances of each bag (lane axis).
    m = jnp.max(scores, axis=-1, keepdims=True)
    e = jnp.exp(scores - m)
    a = e / jnp.sum(e, axis=-1, keepdims=True)        # (Bt, 1, N) f32
    ak_ref[...] = a.astype(ak_ref.dtype)

    # Attention-weighted bag embedding + linear classifier.
    z = jnp.einsum('bxn,bnf->bxf', a.astype(h3.dtype), h3,
                   preferred_element_type=jnp.float32)        # (Bt, 1, F)
    logit = jnp.sum(z * cw_ref[...], axis=-1, keepdims=True) + cb_ref[...]
    prob_ref[...] = jax.nn.sigmoid(logit).astype(prob_ref.dtype)


def _choose_bags_per_step(B, N, F, itemsize, max_tile_bytes=2 << 20):
    """Largest divisor of B whose (Bt, N, F) tile stays <= max_tile_bytes.

    ~2 MiB per input tile -> ~4 MiB double-buffered H + a small lane-dense a_k
    buffer, comfortably under the v5e 16 MiB scoped-VMEM default and far under
    the v7x 64 MiB physical budget, while being big enough to amortize the
    ~0.35 us per-grid-step overhead.
    """
    bag_bytes = N * F * itemsize
    max_bt = max(1, max_tile_bytes // bag_bytes)
    bt = 1
    for d in range(1, B + 1):
        if B % d == 0 and d <= max_bt:
            bt = d
    return bt


def mil_classifier_forward(H, V_w, V_b, w_w, clf_w, clf_b,
                           U_w=None, U_b=None, *, gated=False,
                           bags_per_step=None):
    """H: (B, N, F) bags of instances (f32 or bf16; streamed as-is).
    Weights in PyTorch Linear convention: V_w/U_w: (hidden, F),
    V_b/U_b: (hidden,), w_w: (1, hidden), clf_w: (1, F), clf_b: (1,).
    Returns (probs (B,), a_k (B, N))."""
    B, N, F = H.shape
    hidden = V_w.shape[0]

    itemsize = jnp.dtype(H.dtype).itemsize
    if bags_per_step is None:
        bt = _choose_bags_per_step(B, N, F, itemsize)
    else:
        bt = bags_per_step
    if B % bt != 0:
        raise ValueError(f"bags_per_step={bt} must divide B={B}")
    num_steps = B // bt

    # Parameter prep (glue, plain JAX; all tiny).  Matmul weights take H's
    # dtype so bf16-stored bags get a bf16 MXU; everything else stays f32.
    wdt = H.dtype
    vw = V_w.T.astype(wdt)                               # (F, H)
    vb = V_b.reshape(1, hidden).astype(jnp.float32)      # (1, H)
    watt = w_w.reshape(1, hidden).astype(jnp.float32)    # (1, H)
    cw = clf_w.reshape(1, F).astype(jnp.float32)         # (1, F)
    cb = clf_b.reshape(1, 1).astype(jnp.float32)         # (1, 1)

    inputs = [H, vw, vb]
    in_specs = [
        pl.BlockSpec((bt, N, F), lambda i: (i, 0, 0)),   # Bt bags per step
        pl.BlockSpec(vw.shape, lambda i: (0, 0)),        # V weight (resident)
        pl.BlockSpec(vb.shape, lambda i: (0, 0)),        # V bias
    ]
    if gated:
        uw = U_w.T.astype(wdt)
        ub = U_b.reshape(1, hidden).astype(jnp.float32)
        inputs += [uw, ub]
        in_specs += [
            pl.BlockSpec(uw.shape, lambda i: (0, 0)),    # U weight
            pl.BlockSpec(ub.shape, lambda i: (0, 0)),    # U bias
        ]
    inputs += [watt, cw, cb]
    in_specs += [
        pl.BlockSpec(watt.shape, lambda i: (0, 0)),      # attention vector w
        pl.BlockSpec(cw.shape, lambda i: (0, 0)),        # classifier weight
        pl.BlockSpec(cb.shape, lambda i: (0, 0)),        # classifier bias
    ]

    kernel = functools.partial(mil_classifier_kernel,
                               bags_per_step=bt, n_instances=N,
                               hidden_dim=hidden, gated=gated)

    probs, ak = pl.pallas_call(
        kernel,
        out_shape=(
            jax.ShapeDtypeStruct((B, 1, 1), jnp.float32),
            jax.ShapeDtypeStruct((B, 1, N), jnp.float32),   # lane-dense a_k
        ),
        grid_spec=pltpu.PrefetchScalarGridSpec(
            num_scalar_prefetch=0,
            grid=(num_steps,),
            in_specs=in_specs,
            out_specs=(
                pl.BlockSpec((bt, 1, 1), lambda i: (i, 0, 0)),
                pl.BlockSpec((bt, 1, N), lambda i: (i, 0, 0)),
            ),
        ),
        compiler_params=pltpu.CompilerParams(
            dimension_semantics=("parallel",),   # bag blocks shard across TCs
        ),
    )(*inputs)

    return probs.reshape(B), ak.reshape(B, N)


def mil_classifier_ref(H, V_w, V_b, w_w, clf_w, clf_b,
                       U_w=None, U_b=None, *, gated=False):
    v = jnp.tanh(H @ V_w.T + V_b)
    if gated:
        u = jax.nn.sigmoid(H @ U_w.T + U_b)
        g = v * u
    else:
        g = v
    a_tilde = (g @ w_w.T)[..., 0]                       # (B, N)
    a_k = jax.nn.softmax(a_tilde, axis=1)
    z = jnp.sum(a_k[..., None] * H, axis=1)             # (B, F)
    logits = (z @ clf_w.T + clf_b)[..., 0]              # (B,)
    return jax.nn.sigmoid(logits), a_k


if __name__ == "__main__":
    feature_dim = 32
    hidden_dim = 16
    B = 8          # number of bags
    N = 256        # instances per bag

    key = jax.random.PRNGKey(0)
    k_h, k_vw, k_vb, k_uw, k_ub, k_w, k_cw, k_cb = jax.random.split(key, 8)

    H = jax.random.normal(k_h, (B, N, feature_dim), dtype=jnp.float32)
    V_w = jax.random.normal(k_vw, (hidden_dim, feature_dim), jnp.float32) * 0.1
    V_b = jax.random.normal(k_vb, (hidden_dim,), jnp.float32) * 0.1
    U_w = jax.random.normal(k_uw, (hidden_dim, feature_dim), jnp.float32) * 0.1
    U_b = jax.random.normal(k_ub, (hidden_dim,), jnp.float32) * 0.1
    w_w = jax.random.normal(k_w, (1, hidden_dim), jnp.float32) * 0.1
    clf_w = jax.random.normal(k_cw, (1, feature_dim), jnp.float32) * 0.1
    clf_b = jax.random.normal(k_cb, (1,), jnp.float32) * 0.1

    # --- ungated path (MILAttention, the module default), auto bag batching ---
    p0, a0 = mil_classifier_forward(H, V_w, V_b, w_w, clf_w, clf_b, gated=False)
    p0 = jax.block_until_ready(p0)
    p0_ref, a0_ref = mil_classifier_ref(H, V_w, V_b, w_w, clf_w, clf_b, gated=False)
    assert p0.shape == (B,) and a0.shape == (B, N)
    assert jnp.allclose(p0, p0_ref, atol=2e-5, rtol=2e-5), (p0, p0_ref)
    assert jnp.allclose(a0, a0_ref, atol=2e-5, rtol=2e-5)

    # --- gated path (GatedAttention), auto bag batching ---
    p1, a1 = mil_classifier_forward(H, V_w, V_b, w_w, clf_w, clf_b,
                                    U_w, U_b, gated=True)
    p1 = jax.block_until_ready(p1)
    p1_ref, a1_ref = mil_classifier_ref(H, V_w, V_b, w_w, clf_w, clf_b,
                                        U_w, U_b, gated=True)
    assert jnp.allclose(p1, p1_ref, atol=2e-5, rtol=2e-5), (p1, p1_ref)
    assert jnp.allclose(a1, a1_ref, atol=2e-5, rtol=2e-5)

    # --- gated path with an explicit multi-step grid (exercises index maps) ---
    p2, a2 = mil_classifier_forward(H, V_w, V_b, w_w, clf_w, clf_b,
                                    U_w, U_b, gated=True, bags_per_step=2)
    p2 = jax.block_until_ready(p2)
    assert jnp.allclose(p2, p1_ref, atol=2e-5, rtol=2e-5), (p2, p1_ref)
    assert jnp.allclose(a2, a1_ref, atol=2e-5, rtol=2e-5)

    # --- bags already stored in bf16 upstream (no wrapper-side cast pass) ---
    H_bf16 = H.astype(jnp.bfloat16)   # stands in for an upstream bf16 producer
    p3, a3 = mil_classifier_forward(H_bf16, V_w, V_b, w_w, clf_w, clf_b,
                                    U_w, U_b, gated=True)
    p3 = jax.block_until_ready(p3)
    assert jnp.allclose(p3, p1_ref, atol=2e-2, rtol=2e-2), (p3, p1_ref)
    assert jnp.allclose(a3, a1_ref, atol=2e-3, rtol=2e-2)

    print("KERNEL_OK")
</pallas_src>

<mosaic_0001>
module attributes {stable_mosaic.version = 11 : i64} {
  func.func @mil_classifier_kernel(%arg0: i32, %arg1: memref<8x256x32xf32, #tpu.memory_space<vmem>>, %arg2: memref<32x16xf32, #tpu.memory_space<vmem>>, %arg3: memref<1x16xf32, #tpu.memory_space<vmem>>, %arg4: memref<1x16xf32, #tpu.memory_space<vmem>>, %arg5: memref<1x32xf32, #tpu.memory_space<vmem>>, %arg6: memref<1x1xf32, #tpu.memory_space<vmem>>, %arg7: memref<8x1x1xf32, #tpu.memory_space<vmem>>, %arg8: memref<8x1x256xf32, #tpu.memory_space<vmem>>) attributes {dimension_semantics = [#tpu.dimension_semantics<parallel>], iteration_bounds = array<i64: 1>, scalar_prefetch = 0 : i64, scratch_operands = 0 : i64, tpu.core_type = #tpu.core_type<tc>, window_params = [{transform_indices = @transform_0, window_bounds = array<i64: 8, 256, 32>}, {pipeline_mode = #tpu.pipeline_mode<synchronous>, transform_indices = @transform_1, window_bounds = array<i64: 32, 16>}, {pipeline_mode = #tpu.pipeline_mode<synchronous>, transform_indices = @transform_2, window_bounds = array<i64: 1, 16>}, {pipeline_mode = #tpu.pipeline_mode<synchronous>, transform_indices = @transform_3, window_bounds = array<i64: 1, 16>}, {pipeline_mode = #tpu.pipeline_mode<synchronous>, transform_indices = @transform_4, window_bounds = array<i64: 1, 32>}, {pipeline_mode = #tpu.pipeline_mode<synchronous>, transform_indices = @transform_5, window_bounds = array<i64: 1, 1>}, {transform_indices = @transform_6, window_bounds = array<i64: 8, 1, 1>}, {transform_indices = @transform_7, window_bounds = array<i64: 8, 1, 256>}]} {
    %c0 = arith.constant 0 : index
    %c0_0 = arith.constant 0 : index
    %c0_1 = arith.constant 0 : index
    %0 = vector.load %arg1[%c0, %c0_0, %c0_1] : memref<8x256x32xf32, #tpu.memory_space<vmem>>, vector<8x256x32xf32>
    %1 = vector.shape_cast %0 : vector<8x256x32xf32> to vector<2048x32xf32>
    %c0_2 = arith.constant 0 : index
    %c0_3 = arith.constant 0 : index
    %2 = vector.load %arg2[%c0_2, %c0_3] : memref<32x16xf32, #tpu.memory_space<vmem>>, vector<32x16xf32>
    %cst = arith.constant dense<0.000000e+00> : vector<2048x16xf32>
    %3 = tpu.matmul %1, %2, %cst {dimension_numbers = #tpu.dot_dimension_numbers<[1], [0], [0], [1], [0, 0, 1, 1], [], []>} : vector<2048x32xf32>, vector<32x16xf32>, vector<2048x16xf32> -> vector<2048x16xf32>
    %c0_4 = arith.constant 0 : index
    %c0_5 = arith.constant 0 : index
    %4 = vector.load %arg3[%c0_4, %c0_5] : memref<1x16xf32, #tpu.memory_space<vmem>>, vector<1x16xf32>
    %5 = vector.broadcast %4 : vector<1x16xf32> to vector<2048x16xf32>
    %6 = arith.addf %3, %5 : vector<2048x16xf32>
    %7 = math.tanh %6 : vector<2048x16xf32>
    %8 = vector.shape_cast %7 : vector<2048x16xf32> to vector<8x256x16xf32>
    %c0_6 = arith.constant 0 : index
    %c0_7 = arith.constant 0 : index
    %9 = vector.load %arg4[%c0_6, %c0_7] : memref<1x16xf32, #tpu.memory_space<vmem>>, vector<1x16xf32>
    %10 = vector.shape_cast %9 : vector<1x16xf32> to vector<1x1x16xf32>
    %11 = vector.shape_cast %10 : vector<1x1x16xf32> to vector<1x1x16xf32>
    %12 = vector.broadcast %11 : vector<1x1x16xf32> to vector<8x1x16xf32>
    "tpu.trace_start"() <{level = 10 : i32, message = "bxh,bnh->bxn"}> : () -> ()
    %cst_8 = arith.constant dense<0.000000e+00> : vector<8x1x256xf32>
    %13 = tpu.matmul %12, %8, %cst_8 {dimension_numbers = #tpu.dot_dimension_numbers<[2], [2], [1], [1], [0, 0, 0, 1, 1, 1], [0], [0]>} : vector<8x1x16xf32>, vector<8x256x16xf32>, vector<8x1x256xf32> -> vector<8x1x256xf32>
    "tpu.trace_stop"() : () -> ()
    %cst_9 = arith.constant dense<0xFF800000> : vector<8x1xf32>
    %14 = vector.multi_reduction <maximumf>, %13, %cst_9 [2] : vector<8x1x256xf32> to vector<8x1xf32>
    %15 = vector.shape_cast %14 : vector<8x1xf32> to vector<8x1x1xf32>
    %16 = vector.broadcast %15 : vector<8x1x1xf32> to vector<8x1x256xf32>
    %17 = arith.subf %13, %16 : vector<8x1x256xf32>
    %18 = math.exp %17 : vector<8x1x256xf32>
    %cst_10 = arith.constant dense<0.000000e+00> : vector<8x1xf32>
    %19 = vector.multi_reduction <add>, %18, %cst_10 [2] : vector<8x1x256xf32> to vector<8x1xf32>
    %20 = vector.shape_cast %19 : vector<8x1xf32> to vector<8x1x1xf32>
    %21 = vector.broadcast %20 : vector<8x1x1xf32> to vector<8x1x256xf32>
    %22 = arith.divf %18, %21 : vector<8x1x256xf32>
    %c0_11 = arith.constant 0 : index
    %c0_12 = arith.constant 0 : index
    %c0_13 = arith.constant 0 : index
    %23 = vector.load %arg8[%c0_11, %c0_12, %c0_13] : memref<8x1x256xf32, #tpu.memory_space<vmem>>, vector<8x1x256xf32>
    tpu.vector_store %arg8[%c0_11, %c0_12, %c0_13], %22 {strides = array<i32>} : memref<8x1x256xf32, #tpu.memory_space<vmem>>, vector<8x1x256xf32>,
    "tpu.trace_start"() <{level = 10 : i32, message = "bxn,bnf->bxf"}> : () -> ()
    %cst_14 = arith.constant dense<0.000000e+00> : vector<8x1x32xf32>
    %24 = tpu.matmul %22, %0, %cst_14 {dimension_numbers = #tpu.dot_dimension_numbers<[2], [1], [1], [2], [0, 0, 0, 1, 1, 2], [0], [0]>} : vector<8x1x256xf32>, vector<8x256x32xf32>, vector<8x1x32xf32> -> vector<8x1x32xf32>
    "tpu.trace_stop"() : () -> ()
    %c0_15 = arith.constant 0 : index
    %c0_16 = arith.constant 0 : index
    %25 = vector.load %arg5[%c0_15, %c0_16] : memref<1x32xf32, #tpu.memory_space<vmem>>, vector<1x32xf32>
    %26 = vector.shape_cast %25 : vector<1x32xf32> to vector<1x1x32xf32>
    %27 = vector.broadcast %26 : vector<1x1x32xf32> to vector<8x1x32xf32>
    %28 = arith.mulf %24, %27 : vector<8x1x32xf32>
    %cst_17 = arith.constant dense<0.000000e+00> : vector<8x1xf32>
    %29 = vector.multi_reduction <add>, %28, %cst_17 [2] : vector<8x1x32xf32> to vector<8x1xf32>
    %30 = vector.shape_cast %29 : vector<8x1xf32> to vector<8x1x1xf32>
    %c0_18 = arith.constant 0 : index
    %c0_19 = arith.constant 0 : index
    %31 = vector.load %arg6[%c0_18, %c0_19] : memref<1x1xf32, #tpu.memory_space<vmem>>, vector<1x1xf32>
    %32 = vector.shape_cast %31 : vector<1x1xf32> to vector<1x1x1xf32>
    %33 = vector.broadcast %32 : vector<1x1x1xf32> to vector<8x1x1xf32>
    %34 = arith.addf %30, %33 : vector<8x1x1xf32>
    %35 = arith.negf %34 : vector<8x1x1xf32>
    %36 = math.exp %35 : vector<8x1x1xf32>
    %cst_20 = arith.constant 1.000000e+00 : f32
    %37 = vector.broadcast %cst_20 : f32 to vector<8x1x1xf32>
    %38 = arith.addf %37, %36 : vector<8x1x1xf32>
    %39 = arith.divf %37, %38 : vector<8x1x1xf32>
    %c0_21 = arith.constant 0 : index
    %c0_22 = arith.constant 0 : index
    %c0_23 = arith.constant 0 : index
    %40 = vector.load %arg7[%c0_21, %c0_22, %c0_23] : memref<8x1x1xf32, #tpu.memory_space<vmem>>, vector<8x1x1xf32>
    tpu.vector_store %arg7[%c0_21, %c0_22, %c0_23], %39 {strides = array<i32>} : memref<8x1x1xf32, #tpu.memory_space<vmem>>, vector<8x1x1xf32>,
    return
  }
  func.func @transform_0(%arg0: i32) -> (i32, i32, i32) {
    %c0_i32 = arith.constant 0 : i32
    %c0_i32_0 = arith.constant 0 : i32
    %c0_i32_1 = arith.constant 0 : i32
    return %arg0, %c0_i32, %c0_i32_0 : i32, i32, i32
  }
  func.func @transform_1(%arg0: i32) -> (i32, i32) {
    %c0_i32 = arith.constant 0 : i32
    %c0_i32_0 = arith.constant 0 : i32
    %c0_i32_1 = arith.constant 0 : i32
    return %c0_i32, %c0_i32_0 : i32, i32
  }
  func.func @transform_2(%arg0: i32) -> (i32, i32) {
    %c0_i32 = arith.constant 0 : i32
    %c0_i32_0 = arith.constant 0 : i32
    %c0_i32_1 = arith.constant 0 : i32
    return %c0_i32, %c0_i32_0 : i32, i32
  }
  func.func @transform_3(%arg0: i32) -> (i32, i32) {
    %c0_i32 = arith.constant 0 : i32
    %c0_i32_0 = arith.constant 0 : i32
    %c0_i32_1 = arith.constant 0 : i32
    return %c0_i32, %c0_i32_0 : i32, i32
  }
  func.func @transform_4(%arg0: i32) -> (i32, i32) {
    %c0_i32 = arith.constant 0 : i32
    %c0_i32_0 = arith.constant 0 : i32
    %c0_i32_1 = arith.constant 0 : i32
    return %c0_i32, %c0_i32_0 : i32, i32
  }
  func.func @transform_5(%arg0: i32) -> (i32, i32) {
    %c0_i32 = arith.constant 0 : i32
    %c0_i32_0 = arith.constant 0 : i32
    %c0_i32_1 = arith.constant 0 : i32
    return %c0_i32, %c0_i32_0 : i32, i32
  }
  func.func @transform_6(%arg0: i32) -> (i32, i32, i32) {
    %c0_i32 = arith.constant 0 : i32
    %c0_i32_0 = arith.constant 0 : i32
    %c0_i32_1 = arith.constant 0 : i32
    return %arg0, %c0_i32, %c0_i32_0 : i32, i32, i32
  }
  func.func @transform_7(%arg0: i32) -> (i32, i32, i32) {
    %c0_i32 = arith.constant 0 : i32
    %c0_i32_0 = arith.constant 0 : i32
    %c0_i32_1 = arith.constant 0 : i32
    return %arg0, %c0_i32, %c0_i32_0 : i32, i32, i32
  }
}

</mosaic_0001>

<llo_original>
// kernel: tpu_custom_call.1
$region0: #{tpu_custom_call.1}
  #allocation0 [shape = 'u32[]', space=smem, size = 0x4, offset = 0x4, fixed_abs, tag = 'smem constant byte address 0x4 - core index']
  #allocation1 [shape = 'u32[144,128]{1,0:T(1,128)}', space=vmem, size = 0x12000, scoped, tag = 'internal scratch']
  #allocation2 [shape = 'f32[1,1]{1,0:T(1,128)S(1)}', space=vmem, size = 0x200, scoped, tag = 'scoped memory for tpu_custom_call.1']
  %s0 = inlined_call_operand.vmem [shape: f32[8,256,32], index: 0, kind: input, shape index: {}]
  %s1 = inlined_call_operand.vmem [shape: f32[32,16], index: 1, kind: input, shape index: {}]
  %s2 = inlined_call_operand.vmem [shape: f32[1,16], index: 2, kind: input, shape index: {}]
  %s3 = inlined_call_operand.vmem [shape: f32[1,16], index: 3, kind: input, shape index: {}]
  %s4 = inlined_call_operand.vmem [shape: f32[1,32], index: 4, kind: input, shape index: {}]
  %s5 = inlined_call_operand.<no memory space> [shape: f32[1,1], index: 5, kind: input, shape index: {}]
  %s6 = inlined_call_operand.vmem [shape: f32[8,1,1], index: 6, kind: output, shape index: {0}]
  %s7 = inlined_call_operand.hbm [shape: f32[8,1,256], index: 7, kind: output, shape index: {1}]
  %8 = xla_tuple %s6, %s7
  %s9 = sld [smem:[#allocation0]]
  $region42: #{tpu_custom_call.1} parent=0
    _
  %s11 = ssub.s32 1, %s9
  %s12 = scalar_select 0, %s11, %s9
  %v13 = vstv %s5
  %14 = vst [vmem:[#allocation2] sm:$0x1] %v13
  $region1: #{tpu_custom_call.1} parent=0
    #allocation3 [shape = 'u8[8192]{0}', space=vmem, size = 0x2000, scoped, tag = 'output window, operand 1, single buffered']
    #allocation4 [shape = 's32[1]{0}', space=sflag, size = 0x4, scoped, tag = 'scoped memory for tpu_custom_call.1']
    %15 = vsyncpa [#allocation4], 0
    // Predicated region
    $region2: #{tpu_custom_call.1} parent=1 // pred_check
      _
    $region3: #{tpu_custom_call.1} parent=1 // pred_check_branch
      %17 = sbr.rel (0) target = $region5
    $region4: #{tpu_custom_call.1} parent=1 // pred_region
      _
    $region5: #{tpu_custom_call.1} parent=1 // pred_fallthru
      _
    // Predicated region
    $region6: #{tpu_custom_call.1} parent=1 // pred_check
      _
    $region7: #{tpu_custom_call.1} parent=1 // pred_check_branch
      %19 = sbr.rel (0) target = $region9
    $region8: #{tpu_custom_call.1} parent=1 // pred_region
      _
    $region9: #{tpu_custom_call.1} parent=1 // pred_fallthru
      _
    // Predicated region
    $region10: #{tpu_custom_call.1} parent=1 // pred_check
      _
    $region11: #{tpu_custom_call.1} parent=1 // pred_check_branch
      %21 = sbr.rel (0) target = $region13
    $region12: #{tpu_custom_call.1} parent=1 // pred_region
      _
    $region13: #{tpu_custom_call.1} parent=1 // pred_fallthru
      _
    // Predicated region
    $region14: #{tpu_custom_call.1} parent=1 // pred_check
      _
    $region15: #{tpu_custom_call.1} parent=1 // pred_check_branch
      %23 = sbr.rel (0) target = $region17
    $region16: #{tpu_custom_call.1} parent=1 // pred_region
      _
    $region17: #{tpu_custom_call.1} parent=1 // pred_fallthru
      _
    // Predicated region
    $region18: #{tpu_custom_call.1} parent=1 // pred_check
      _
    $region19: #{tpu_custom_call.1} parent=1 // pred_check_branch
      %25 = sbr.rel (0) target = $region21
    $region20: #{tpu_custom_call.1} parent=1 // pred_region
      _
    $region21: #{tpu_custom_call.1} parent=1 // pred_fallthru
      _
    // Predicated region
    $region22: #{tpu_custom_call.1} parent=1 // pred_check
      _
    $region23: #{tpu_custom_call.1} parent=1 // pred_check_branch
      %27 = sbr.rel (0) target = $region25
    $region24: #{tpu_custom_call.1} parent=1 // pred_region
      _
    $region25: #{tpu_custom_call.1} parent=1 // pred_fallthru
      _
    %v28 = vld [vmem:[%s0] sm:$0xff]
    %v29 = vld [vmem:[%s0 + $0x8] sm:$0xff]
    %v30 = vld [vmem:[%s0 + $0x10] sm:$0xff]
    %v31 = vld [vmem:[%s0 + $0x18] sm:$0xff]
    %v32 = vld [vmem:[%s0 + $0x20] sm:$0xff]
    %v33 = vld [vmem:[%s0 + $0x28] sm:$0xff]
    %v34 = vld [vmem:[%s0 + $0x30] sm:$0xff]
    %v35 = vld [vmem:[%s0 + $0x38] sm:$0xff]
    %v36 = vld [vmem:[%s0 + $0x40] sm:$0xff]
    %v37 = vld [vmem:[%s0 + $0x48] sm:$0xff]
    %v38 = vld [vmem:[%s0 + $0x50] sm:$0xff]
    %v39 = vld [vmem:[%s0 + $0x58] sm:$0xff]
    %v40 = vld [vmem:[%s0 + $0x60] sm:$0xff]
    %v41 = vld [vmem:[%s0 + $0x68] sm:$0xff]
    %v42 = vld [vmem:[%s0 + $0x70] sm:$0xff]
    %v43 = vld [vmem:[%s0 + $0x78] sm:$0xff]
    %v44 = vld [vmem:[%s0 + $0x80] sm:$0xff]
    %v45 = vld [vmem:[%s0 + $0x88] sm:$0xff]
    %v46 = vld [vmem:[%s0 + $0x90] sm:$0xff]
    %v47 = vld [vmem:[%s0 + $0x98] sm:$0xff]
    %v48 = vld [vmem:[%s0 + $0xa0] sm:$0xff]
    %v49 = vld [vmem:[%s0 + $0xa8] sm:$0xff]
    %v50 = vld [vmem:[%s0 + $0xb0] sm:$0xff]
    %v51 = vld [vmem:[%s0 + $0xb8] sm:$0xff]
    %v52 = vld [vmem:[%s0 + $0xc0] sm:$0xff]
    %v53 = vld [vmem:[%s0 + $0xc8] sm:$0xff]
    %v54 = vld [vmem:[%s0 + $0xd0] sm:$0xff]
    %v55 = vld [vmem:[%s0 + $0xd8] sm:$0xff]
    %v56 = vld [vmem:[%s0 + $0xe0] sm:$0xff]
    %v57 = vld [vmem:[%s0 + $0xe8] sm:$0xff]
    %v58 = vld [vmem:[%s0 + $0xf0] sm:$0xff]
    %v59 = vld [vmem:[%s0 + $0xf8] sm:$0xff]
    %v60 = vld [vmem:[%s0 + $0x100] sm:$0xff]
    %v61 = vld [vmem:[%s0 + $0x108] sm:$0xff]
    %v62 = vld [vmem:[%s0 + $0x110] sm:$0xff]
    %v63 = vld [vmem:[%s0 + $0x118] sm:$0xff]
    %v64 = vld [vmem:[%s0 + $0x120] sm:$0xff]
    %v65 = vld [vmem:[%s0 + $0x128] sm:$0xff]
    %v66 = vld [vmem:[%s0 + $0x130] sm:$0xff]
    %v67 = vld [vmem:[%s0 + $0x138] sm:$0xff]
    %v68 = vld [vmem:[%s0 + $0x140] sm:$0xff]
    %v69 = vld [vmem:[%s0 + $0x148] sm:$0xff]
    %v70 = vld [vmem:[%s0 + $0x150] sm:$0xff]
    %v71 = vld [vmem:[%s0 + $0x158] sm:$0xff]
    %v72 = vld [vmem:[%s0 + $0x160] sm:$0xff]
    %v73 = vld [vmem:[%s0 + $0x168] sm:$0xff]
    %v74 = vld [vmem:[%s0 + $0x170] sm:$0xff]
    %v75 = vld [vmem:[%s0 + $0x178] sm:$0xff]
    %v76 = vld [vmem:[%s0 + $0x180] sm:$0xff]
    %v77 = vld [vmem:[%s0 + $0x188] sm:$0xff]
    %v78 = vld [vmem:[%s0 + $0x190] sm:$0xff]
    %v79 = vld [vmem:[%s0 + $0x198] sm:$0xff]
    %v80 = vld [vmem:[%s0 + $0x1a0] sm:$0xff]
    %v81 = vld [vmem:[%s0 + $0x1a8] sm:$0xff]
    %v82 = vld [vmem:[%s0 + $0x1b0] sm:$0xff]
    %v83 = vld [vmem:[%s0 + $0x1b8] sm:$0xff]
    %v84 = vld [vmem:[%s0 + $0x1c0] sm:$0xff]
    %v85 = vld [vmem:[%s0 + $0x1c8] sm:$0xff]
    %v86 = vld [vmem:[%s0 + $0x1d0] sm:$0xff]
    %v87 = vld [vmem:[%s0 + $0x1d8] sm:$0xff]
    %v88 = vld [vmem:[%s0 + $0x1e0] sm:$0xff]
    %v89 = vld [vmem:[%s0 + $0x1e8] sm:$0xff]
    %v90 = vld [vmem:[%s0 + $0x1f0] sm:$0xff]
    %v91 = vld [vmem:[%s0 + $0x1f8] sm:$0xff]
    %v92 = vld [vmem:[%s0 + $0x200] sm:$0xff]
    %v93 = vld [vmem:[%s0 + $0x208] sm:$0xff]
    %v94 = vld [vmem:[%s0 + $0x210] sm:$0xff]
    %v95 = vld [vmem:[%s0 + $0x218] sm:$0xff]
    %v96 = vld [vmem:[%s0 + $0x220] sm:$0xff]
    %v97 = vld [vmem:[%s0 + $0x228] sm:$0xff]
    %v98 = vld [vmem:[%s0 + $0x230] sm:$0xff]
    %v99 = vld [vmem:[%s0 + $0x238] sm:$0xff]
    %v100 = vld [vmem:[%s0 + $0x240] sm:$0xff]
    %v101 = vld [vmem:[%s0 + $0x248] sm:$0xff]
    %v102 = vld [vmem:[%s0 + $0x250] sm:$0xff]
    %v103 = vld [vmem:[%s0 + $0x258] sm:$0xff]
    %v104 = vld [vmem:[%s0 + $0x260] sm:$0xff]
    %v105 = vld [vmem:[%s0 + $0x268] sm:$0xff]
    %v106 = vld [vmem:[%s0 + $0x270] sm:$0xff]
    %v107 = vld [vmem:[%s0 + $0x278] sm:$0xff]
    %v108 = vld [vmem:[%s0 + $0x280] sm:$0xff]
    %v109 = vld [vmem:[%s0 + $0x288] sm:$0xff]
    %v110 = vld [vmem:[%s0 + $0x290] sm:$0xff]
    %v111 = vld [vmem:[%s0 + $0x298] sm:$0xff]
    %v112 = vld [vmem:[%s0 + $0x2a0] sm:$0xff]
    %v113 = vld [vmem:[%s0 + $0x2a8] sm:$0xff]
    %v114 = vld [vmem:[%s0 + $0x2b0] sm:$0xff]
    %v115 = vld [vmem:[%s0 + $0x2b8] sm:$0xff]
    %v116 = vld [vmem:[%s0 + $0x2c0] sm:$0xff]
    %v117 = vld [vmem:[%s0 + $0x2c8] sm:$0xff]
    %v118 = vld [vmem:[%s0 + $0x2d0] sm:$0xff]
    %v119 = vld [vmem:[%s0 + $0x2d8] sm:$0xff]
    %v120 = vld [vmem:[%s0 + $0x2e0] sm:$0xff]
    %v121 = vld [vmem:[%s0 + $0x2e8] sm:$0xff]
    %v122 = vld [vmem:[%s0 + $0x2f0] sm:$0xff]
    %v123 = vld [vmem:[%s0 + $0x2f8] sm:$0xff]
    %v124 = vld [vmem:[%s0 + $0x300] sm:$0xff]
    %v125 = vld [vmem:[%s0 + $0x308] sm:$0xff]
    %v126 = vld [vmem:[%s0 + $0x310] sm:$0xff]
    %v127 = vld [vmem:[%s0 + $0x318] sm:$0xff]
    %v128 = vld [vmem:[%s0 + $0x320] sm:$0xff]
    %v129 = vld [vmem:[%s0 + $0x328] sm:$0xff]
    %v130 = vld [vmem:[%s0 + $0x330] sm:$0xff]
    %v131 = vld [vmem:[%s0 + $0x338] sm:$0xff]
    %v132 = vld [vmem:[%s0 + $0x340] sm:$0xff]
    %v133 = vld [vmem:[%s0 + $0x348] sm:$0xff]
    %v134 = vld [vmem:[%s0 + $0x350] sm:$0xff]
    %v135 = vld [vmem:[%s0 + $0x358] sm:$0xff]
    %v136 = vld [vmem:[%s0 + $0x360] sm:$0xff]
    %v137 = vld [vmem:[%s0 + $0x368] sm:$0xff]
    %v138 = vld [vmem:[%s0 + $0x370] sm:$0xff]
    %v139 = vld [vmem:[%s0 + $0x378] sm:$0xff]
    %v140 = vld [vmem:[%s0 + $0x380] sm:$0xff]
    %v141 = vld [vmem:[%s0 + $0x388] sm:$0xff]
    %v142 = vld [vmem:[%s0 + $0x390] sm:$0xff]
    %v143 = vld [vmem:[%s0 + $0x398] sm:$0xff]
    %v144 = vld [vmem:[%s0 + $0x3a0] sm:$0xff]
    %v145 = vld [vmem:[%s0 + $0x3a8] sm:$0xff]
    %v146 = vld [vmem:[%s0 + $0x3b0] sm:$0xff]
    %v147 = vld [vmem:[%s0 + $0x3b8] sm:$0xff]
    %v148 = vld [vmem:[%s0 + $0x3c0] sm:$0xff]
    %v149 = vld [vmem:[%s0 + $0x3c8] sm:$0xff]
    %v150 = vld [vmem:[%s0 + $0x3d0] sm:$0xff]
    %v151 = vld [vmem:[%s0 + $0x3d8] sm:$0xff]
    %v152 = vld [vmem:[%s0 + $0x3e0] sm:$0xff]
    %v153 = vld [vmem:[%s0 + $0x3e8] sm:$0xff]
    %v154 = vld [vmem:[%s0 + $0x3f0] sm:$0xff]
    %v155 = vld [vmem:[%s0 + $0x3f8] sm:$0xff]
    %v156 = vld [vmem:[%s0 + $0x400] sm:$0xff]
    %v157 = vld [vmem:[%s0 + $0x408] sm:$0xff]
    %v158 = vld [vmem:[%s0 + $0x410] sm:$0xff]
    %v159 = vld [vmem:[%s0 + $0x418] sm:$0xff]
    %v160 = vld [vmem:[%s0 + $0x420] sm:$0xff]
    %v161 = vld [vmem:[%s0 + $0x428] sm:$0xff]
    %v162 = vld [vmem:[%s0 + $0x430] sm:$0xff]
    %v163 = vld [vmem:[%s0 + $0x438] sm:$0xff]
    %v164 = vld [vmem:[%s0 + $0x440] sm:$0xff]
    %v165 = vld [vmem:[%s0 + $0x448] sm:$0xff]
    %v166 = vld [vmem:[%s0 + $0x450] sm:$0xff]
    %v167 = vld [vmem:[%s0 + $0x458] sm:$0xff]
    %v168 = vld [vmem:[%s0 + $0x460] sm:$0xff]
    %v169 = vld [vmem:[%s0 + $0x468] sm:$0xff]
    %v170 = vld [vmem:[%s0 + $0x470] sm:$0xff]
    %v171 = vld [vmem:[%s0 + $0x478] sm:$0xff]
    %v172 = vld [vmem:[%s0 + $0x480] sm:$0xff]
    %v173 = vld [vmem:[%s0 + $0x488] sm:$0xff]
    %v174 = vld [vmem:[%s0 + $0x490] sm:$0xff]
    %v175 = vld [vmem:[%s0 + $0x498] sm:$0xff]
    %v176 = vld [vmem:[%s0 + $0x4a0] sm:$0xff]
    %v177 = vld [vmem:[%s0 + $0x4a8] sm:$0xff]
    %v178 = vld [vmem:[%s0 + $0x4b0] sm:$0xff]
    %v179 = vld [vmem:[%s0 + $0x4b8] sm:$0xff]
    %v180 = vld [vmem:[%s0 + $0x4c0] sm:$0xff]
    %v181 = vld [vmem:[%s0 + $0x4c8] sm:$0xff]
    %v182 = vld [vmem:[%s0 + $0x4d0] sm:$0xff]
    %v183 = vld [vmem:[%s0 + $0x4d8] sm:$0xff]
    %v184 = vld [vmem:[%s0 + $0x4e0] sm:$0xff]
    %v185 = vld [vmem:[%s0 + $0x4e8] sm:$0xff]
    %v186 = vld [vmem:[%s0 + $0x4f0] sm:$0xff]
    %v187 = vld [vmem:[%s0 + $0x4f8] sm:$0xff]
    %v188 = vld [vmem:[%s0 + $0x500] sm:$0xff]
    %v189 = vld [vmem:[%s0 + $0x508] sm:$0xff]
    %v190 = vld [vmem:[%s0 + $0x510] sm:$0xff]
    %v191 = vld [vmem:[%s0 + $0x518] sm:$0xff]
    %v192 = vld [vmem:[%s0 + $0x520] sm:$0xff]
    %v193 = vld [vmem:[%s0 + $0x528] sm:$0xff]
    %v194 = vld [vmem:[%s0 + $0x530] sm:$0xff]
    %v195 = vld [vmem:[%s0 + $0x538] sm:$0xff]
    %v196 = vld [vmem:[%s0 + $0x540] sm:$0xff]
    %v197 = vld [vmem:[%s0 + $0x548] sm:$0xff]
    %v198 = vld [vmem:[%s0 + $0x550] sm:$0xff]
    %v199 = vld [vmem:[%s0 + $0x558] sm:$0xff]
    %v200 = vld [vmem:[%s0 + $0x560] sm:$0xff]
    %v201 = vld [vmem:[%s0 + $0x568] sm:$0xff]
    %v202 = vld [vmem:[%s0 + $0x570] sm:$0xff]
    %v203 = vld [vmem:[%s0 + $0x578] sm:$0xff]
    %v204 = vld [vmem:[%s0 + $0x580] sm:$0xff]
    %v205 = vld [vmem:[%s0 + $0x588] sm:$0xff]
    %v206 = vld [vmem:[%s0 + $0x590] sm:$0xff]
    %v207 = vld [vmem:[%s0 + $0x598] sm:$0xff]
    %v208 = vld [vmem:[%s0 + $0x5a0] sm:$0xff]
    %v209 = vld [vmem:[%s0 + $0x5a8] sm:$0xff]
    %v210 = vld [vmem:[%s0 + $0x5b0] sm:$0xff]
    %v211 = vld [vmem:[%s0 + $0x5b8] sm:$0xff]
    %v212 = vld [vmem:[%s0 + $0x5c0] sm:$0xff]
    %v213 = vld [vmem:[%s0 + $0x5c8] sm:$0xff]
    %v214 = vld [vmem:[%s0 + $0x5d0] sm:$0xff]
    %v215 = vld [vmem:[%s0 + $0x5d8] sm:$0xff]
    %v216 = vld [vmem:[%s0 + $0x5e0] sm:$0xff]
    %v217 = vld [vmem:[%s0 + $0x5e8] sm:$0xff]
    %v218 = vld [vmem:[%s0 + $0x5f0] sm:$0xff]
    %v219 = vld [vmem:[%s0 + $0x5f8] sm:$0xff]
    %v220 = vld [vmem:[%s0 + $0x600] sm:$0xff]
    %v221 = vld [vmem:[%s0 + $0x608] sm:$0xff]
    %v222 = vld [vmem:[%s0 + $0x610] sm:$0xff]
    %v223 = vld [vmem:[%s0 + $0x618] sm:$0xff]
    %v224 = vld [vmem:[%s0 + $0x620] sm:$0xff]
    %v225 = vld [vmem:[%s0 + $0x628] sm:$0xff]
    %v226 = vld [vmem:[%s0 + $0x630] sm:$0xff]
    %v227 = vld [vmem:[%s0 + $0x638] sm:$0xff]
    %v228 = vld [vmem:[%s0 + $0x640] sm:$0xff]
    %v229 = vld [vmem:[%s0 + $0x648] sm:$0xff]
    %v230 = vld [vmem:[%s0 + $0x650] sm:$0xff]
    %v231 = vld [vmem:[%s0 + $0x658] sm:$0xff]
    %v232 = vld [vmem:[%s0 + $0x660] sm:$0xff]
    %v233 = vld [vmem:[%s0 + $0x668] sm:$0xff]
    %v234 = vld [vmem:[%s0 + $0x670] sm:$0xff]
    %v235 = vld [vmem:[%s0 + $0x678] sm:$0xff]
    %v236 = vld [vmem:[%s0 + $0x680] sm:$0xff]
    %v237 = vld [vmem:[%s0 + $0x688] sm:$0xff]
    %v238 = vld [vmem:[%s0 + $0x690] sm:$0xff]
    %v239 = vld [vmem:[%s0 + $0x698] sm:$0xff]
    %v240 = vld [vmem:[%s0 + $0x6a0] sm:$0xff]
    %v241 = vld [vmem:[%s0 + $0x6a8] sm:$0xff]
    %v242 = vld [vmem:[%s0 + $0x6b0] sm:$0xff]
    %v243 = vld [vmem:[%s0 + $0x6b8] sm:$0xff]
    %v244 = vld [vmem:[%s0 + $0x6c0] sm:$0xff]
    %v245 = vld [vmem:[%s0 + $0x6c8] sm:$0xff]
    %v246 = vld [vmem:[%s0 + $0x6d0] sm:$0xff]
    %v247 = vld [vmem:[%s0 + $0x6d8] sm:$0xff]
    %v248 = vld [vmem:[%s0 + $0x6e0] sm:$0xff]
    %v249 = vld [vmem:[%s0 + $0x6e8] sm:$0xff]
    %v250 = vld [vmem:[%s0 + $0x6f0] sm:$0xff]
    %v251 = vld [vmem:[%s0 + $0x6f8] sm:$0xff]
    %v252 = vld [vmem:[%s0 + $0x700] sm:$0xff]
    %v253 = vld [vmem:[%s0 + $0x708] sm:$0xff]
    %v254 = vld [vmem:[%s0 + $0x710] sm:$0xff]
    %v255 = vld [vmem:[%s0 + $0x718] sm:$0xff]
    %v256 = vld [vmem:[%s0 + $0x720] sm:$0xff]
    %v257 = vld [vmem:[%s0 + $0x728] sm:$0xff]
    %v258 = vld [vmem:[%s0 + $0x730] sm:$0xff]
    %v259 = vld [vmem:[%s0 + $0x738] sm:$0xff]
    %v260 = vld [vmem:[%s0 + $0x740] sm:$0xff]
    %v261 = vld [vmem:[%s0 + $0x748] sm:$0xff]
    %v262 = vld [vmem:[%s0 + $0x750] sm:$0xff]
    %v263 = vld [vmem:[%s0 + $0x758] sm:$0xff]
    %v264 = vld [vmem:[%s0 + $0x760] sm:$0xff]
    %v265 = vld [vmem:[%s0 + $0x768] sm:$0xff]
    %v266 = vld [vmem:[%s0 + $0x770] sm:$0xff]
    %v267 = vld [vmem:[%s0 + $0x778] sm:$0xff]
    %v268 = vld [vmem:[%s0 + $0x780] sm:$0xff]
    %v269 = vld [vmem:[%s0 + $0x788] sm:$0xff]
    %v270 = vld [vmem:[%s0 + $0x790] sm:$0xff]
    %v271 = vld [vmem:[%s0 + $0x798] sm:$0xff]
    %v272 = vld [vmem:[%s0 + $0x7a0] sm:$0xff]
    %v273 = vld [vmem:[%s0 + $0x7a8] sm:$0xff]
    %v274 = vld [vmem:[%s0 + $0x7b0] sm:$0xff]
    %v275 = vld [vmem:[%s0 + $0x7b8] sm:$0xff]
    %v276 = vld [vmem:[%s0 + $0x7c0] sm:$0xff]
    %v277 = vld [vmem:[%s0 + $0x7c8] sm:$0xff]
    %v278 = vld [vmem:[%s0 + $0x7d0] sm:$0xff]
    %v279 = vld [vmem:[%s0 + $0x7d8] sm:$0xff]
    %v280 = vld [vmem:[%s0 + $0x7e0] sm:$0xff]
    %v281 = vld [vmem:[%s0 + $0x7e8] sm:$0xff]
    %v282 = vld [vmem:[%s0 + $0x7f0] sm:$0xff]
    %v283 = vld [vmem:[%s0 + $0x7f8] sm:$0xff]
    %v284 = vld [vmem:[%s1] sm:$0xff]
    %v285 = vld [vmem:[%s1 + $0x8] sm:$0xff]
    %v286 = vld [vmem:[%s1 + $0x10] sm:$0xff]
    %v287 = vld [vmem:[%s1 + $0x18] sm:$0xff]
    %v288 = vld [vmem:[%s2] sm:$0x1]
    %v290 = vlaneseq
    %v291 = vshrl.u32 %v290, 7
    %v292 = vsub.s32 0, %v291
    %v293 = vrot.slane %v288, %v292
    %vm295 = vcmask 261120
    %v297 = vsel %vm295, %v28, 0
    %v300 = vsel %vm295, %v29, 0
    %v303 = vsel %vm295, %v30, 0
    %v306 = vsel %vm295, %v31, 0
    %v309 = vsel %vm295, %v32, 0
    %v312 = vsel %vm295, %v33, 0
    %v315 = vsel %vm295, %v34, 0
    %v318 = vsel %vm295, %v35, 0
    %v321 = vsel %vm295, %v36, 0
    %v324 = vsel %vm295, %v37, 0
    %v327 = vsel %vm295, %v38, 0
    %v330 = vsel %vm295, %v39, 0
    %v333 = vsel %vm295, %v40, 0
    %v336 = vsel %vm295, %v41, 0
    %v339 = vsel %vm295, %v42, 0
    %v342 = vsel %vm295, %v43, 0
    %v345 = vsel %vm295, %v44, 0
    %v348 = vsel %vm295, %v45, 0
    %v351 = vsel %vm295, %v46, 0
    %v354 = vsel %vm295, %v47, 0
    %v357 = vsel %vm295, %v48, 0
    %v360 = vsel %vm295, %v49, 0
    %v363 = vsel %vm295, %v50, 0
    %v366 = vsel %vm295, %v51, 0
    %v369 = vsel %vm295, %v52, 0
    %v372 = vsel %vm295, %v53, 0
    %v375 = vsel %vm295, %v54, 0
    %v378 = vsel %vm295, %v55, 0
    %v381 = vsel %vm295, %v56, 0
    %v384 = vsel %vm295, %v57, 0
    %v387 = vsel %vm295, %v58, 0
    %v390 = vsel %vm295, %v59, 0
    %v393 = vsel %vm295, %v60, 0
    %v396 = vsel %vm295, %v61, 0
    %v399 = vsel %vm295, %v62, 0
    %v402 = vsel %vm295, %v63, 0
    %v405 = vsel %vm295, %v64, 0
    %v408 = vsel %vm295, %v65, 0
    %v411 = vsel %vm295, %v66, 0
    %v414 = vsel %vm295, %v67, 0
    %v417 = vsel %vm295, %v68, 0
    %v420 = vsel %vm295, %v69, 0
    %v423 = vsel %vm295, %v70, 0
    %v426 = vsel %vm295, %v71, 0
    %v429 = vsel %vm295, %v72, 0
    %v432 = vsel %vm295, %v73, 0
    %v435 = vsel %vm295, %v74, 0
    %v438 = vsel %vm295, %v75, 0
    %v441 = vsel %vm295, %v76, 0
    %v444 = vsel %vm295, %v77, 0
    %v447 = vsel %vm295, %v78, 0
    %v450 = vsel %vm295, %v79, 0
    %v453 = vsel %vm295, %v80, 0
    %v456 = vsel %vm295, %v81, 0
    %v459 = vsel %vm295, %v82, 0
    %v462 = vsel %vm295, %v83, 0
    %v465 = vsel %vm295, %v84, 0
    %v468 = vsel %vm295, %v85, 0
    %v471 = vsel %vm295, %v86, 0
    %v474 = vsel %vm295, %v87, 0
    %v477 = vsel %vm295, %v88, 0
    %v480 = vsel %vm295, %v89, 0
    %v483 = vsel %vm295, %v90, 0
    %v486 = vsel %vm295, %v91, 0
    %v489 = vsel %vm295, %v92, 0
    %v492 = vsel %vm295, %v93, 0
    %v495 = vsel %vm295, %v94, 0
    %v498 = vsel %vm295, %v95, 0
    %v501 = vsel %vm295, %v96, 0
    %v504 = vsel %vm295, %v97, 0
    %v507 = vsel %vm295, %v98, 0
    %v510 = vsel %vm295, %v99, 0
    %v513 = vsel %vm295, %v100, 0
    %v516 = vsel %vm295, %v101, 0
    %v519 = vsel %vm295, %v102, 0
    %v522 = vsel %vm295, %v103, 0
    %v525 = vsel %vm295, %v104, 0
    %v528 = vsel %vm295, %v105, 0
    %v531 = vsel %vm295, %v106, 0
    %v534 = vsel %vm295, %v107, 0
    %v537 = vsel %vm295, %v108, 0
    %v540 = vsel %vm295, %v109, 0
    %v543 = vsel %vm295, %v110, 0
    %v546 = vsel %vm295, %v111, 0
    %v549 = vsel %vm295, %v112, 0
    %v552 = vsel %vm295, %v113, 0
    %v555 = vsel %vm295, %v114, 0
    %v558 = vsel %vm295, %v115, 0
    %v561 = vsel %vm295, %v116, 0
    %v564 = vsel %vm295, %v117, 0
    %v567 = vsel %vm295, %v118, 0
    %v570 = vsel %vm295, %v119, 0
    %v573 = vsel %vm295, %v120, 0
    %v576 = vsel %vm295, %v121, 0
    %v579 = vsel %vm295, %v122, 0
    %v582 = vsel %vm295, %v123, 0
    %v585 = vsel %vm295, %v124, 0
    %v588 = vsel %vm295, %v125, 0
    %v591 = vsel %vm295, %v126, 0
    %v594 = vsel %vm295, %v127, 0
    %v597 = vsel %vm295, %v128, 0
    %v600 = vsel %vm295, %v129, 0
    %v603 = vsel %vm295, %v130, 0
    %v606 = vsel %vm295, %v131, 0
    %v609 = vsel %vm295, %v132, 0
    %v612 = vsel %vm295, %v133, 0
    %v615 = vsel %vm295, %v134, 0
    %v618 = vsel %vm295, %v135, 0
    %v621 = vsel %vm295, %v136, 0
    %v624 = vsel %vm295, %v137, 0
    %v627 = vsel %vm295, %v138, 0
    %v630 = vsel %vm295, %v139, 0
    %v633 = vsel %vm295, %v140, 0
    %v636 = vsel %vm295, %v141, 0
    %v639 = vsel %vm295, %v142, 0
    %v642 = vsel %vm295, %v143, 0
    %v645 = vsel %vm295, %v144, 0
    %v648 = vsel %vm295, %v145, 0
    %v651 = vsel %vm295, %v146, 0
    %v654 = vsel %vm295, %v147, 0
    %v657 = vsel %vm295, %v148, 0
    %v660 = vsel %vm295, %v149, 0
    %v663 = vsel %vm295, %v150, 0
    %v666 = vsel %vm295, %v151, 0
    %v669 = vsel %vm295, %v152, 0
    %v672 = vsel %vm295, %v153, 0
    %v675 = vsel %vm295, %v154, 0
    %v678 = vsel %vm295, %v155, 0
    %v681 = vsel %vm295, %v156, 0
    %v684 = vsel %vm295, %v157, 0
    %v687 = vsel %vm295, %v158, 0
    %v690 = vsel %vm295, %v159, 0
    %v693 = vsel %vm295, %v160, 0
    %v696 = vsel %vm295, %v161, 0
    %v699 = vsel %vm295, %v162, 0
    %v702 = vsel %vm295, %v163, 0
    %v705 = vsel %vm295, %v164, 0
    %v708 = vsel %vm295, %v165, 0
    %v711 = vsel %vm295, %v166, 0
    %v714 = vsel %vm295, %v167, 0
    %v717 = vsel %vm295, %v168, 0
    %v720 = vsel %vm295, %v169, 0
    %v723 = vsel %vm295, %v170, 0
    %v726 = vsel %vm295, %v171, 0
    %v729 = vsel %vm295, %v172, 0
    %v732 = vsel %vm295, %v173, 0
    %v735 = vsel %vm295, %v174, 0
    %v738 = vsel %vm295, %v175, 0
    %v741 = vsel %vm295, %v176, 0
    %v744 = vsel %vm295, %v177, 0
    %v747 = vsel %vm295, %v178, 0
    %v750 = vsel %vm295, %v179, 0
    %v753 = vsel %vm295, %v180, 0
    %v756 = vsel %vm295, %v181, 0
    %v759 = vsel %vm295, %v182, 0
    %v762 = vsel %vm295, %v183, 0
    %v765 = vsel %vm295, %v184, 0
    %v768 = vsel %vm295, %v185, 0
    %v771 = vsel %vm295, %v186, 0
    %v774 = vsel %vm295, %v187, 0
    %v777 = vsel %vm295, %v188, 0
    %v780 = vsel %vm295, %v189, 0
    %v783 = vsel %vm295, %v190, 0
    %v786 = vsel %vm295, %v191, 0
    %v789 = vsel %vm295, %v192, 0
    %v792 = vsel %vm295, %v193, 0
    %v795 = vsel %vm295, %v194, 0
    %v798 = vsel %vm295, %v195, 0
    %v801 = vsel %vm295, %v196, 0
    %v804 = vsel %vm295, %v197, 0
    %v807 = vsel %vm295, %v198, 0
    %v810 = vsel %vm295, %v199, 0
    %v813 = vsel %vm295, %v200, 0
    %v816 = vsel %vm295, %v201, 0
    %v819 = vsel %vm295, %v202, 0
    %v822 = vsel %vm295, %v203, 0
    %v825 = vsel %vm295, %v204, 0
    %v828 = vsel %vm295, %v205, 0
    %v831 = vsel %vm295, %v206, 0
    %v834 = vsel %vm295, %v207, 0
    %v837 = vsel %vm295, %v208, 0
    %v840 = vsel %vm295, %v209, 0
    %v843 = vsel %vm295, %v210, 0
    %v846 = vsel %vm295, %v211, 0
    %v849 = vsel %vm295, %v212, 0
    %v852 = vsel %vm295, %v213, 0
    %v855 = vsel %vm295, %v214, 0
    %v858 = vsel %vm295, %v215, 0
    %v861 = vsel %vm295, %v216, 0
    %v864 = vsel %vm295, %v217, 0
    %v867 = vsel %vm295, %v218, 0
    %v870 = vsel %vm295, %v219, 0
    %v873 = vsel %vm295, %v220, 0
    %v876 = vsel %vm295, %v221, 0
    %v879 = vsel %vm295, %v222, 0
    %v882 = vsel %vm295, %v223, 0
    %v885 = vsel %vm295, %v224, 0
    %v888 = vsel %vm295, %v225, 0
    %v891 = vsel %vm295, %v226, 0
    %v894 = vsel %vm295, %v227, 0
    %v897 = vsel %vm295, %v228, 0
    %v900 = vsel %vm295, %v229, 0
    %v903 = vsel %vm295, %v230, 0
    %v906 = vsel %vm295, %v231, 0
    %v909 = vsel %vm295, %v232, 0
    %v912 = vsel %vm295, %v233, 0
    %v915 = vsel %vm295, %v234, 0
    %v918 = vsel %vm295, %v235, 0
    %v921 = vsel %vm295, %v236, 0
    %v924 = vsel %vm295, %v237, 0
    %v927 = vsel %vm295, %v238, 0
    %v930 = vsel %vm295, %v239, 0
    %v933 = vsel %vm295, %v240, 0
    %v936 = vsel %vm295, %v241, 0
    %v939 = vsel %vm295, %v242, 0
    %v942 = vsel %vm295, %v243, 0
    %v945 = vsel %vm295, %v244, 0
    %v948 = vsel %vm295, %v245, 0
    %v951 = vsel %vm295, %v246, 0
    %v954 = vsel %vm295, %v247, 0
    %v957 = vsel %vm295, %v248, 0
    %v960 = vsel %vm295, %v249, 0
    %v963 = vsel %vm295, %v250, 0
    %v966 = vsel %vm295, %v251, 0
    %v969 = vsel %vm295, %v252, 0
    %v972 = vsel %vm295, %v253, 0
    %v975 = vsel %vm295, %v254, 0
    %v978 = vsel %vm295, %v255, 0
    %v981 = vsel %vm295, %v256, 0
    %v984 = vsel %vm295, %v257, 0
    %v987 = vsel %vm295, %v258, 0
    %v990 = vsel %vm295, %v259, 0
    %v993 = vsel %vm295, %v260, 0
    %v996 = vsel %vm295, %v261, 0
    %v999 = vsel %vm295, %v262, 0
    %v1002 = vsel %vm295, %v263, 0
    %v1005 = vsel %vm295, %v264, 0
    %v1008 = vsel %vm295, %v265, 0
    %v1011 = vsel %vm295, %v266, 0
    %v1014 = vsel %vm295, %v267, 0
    %v1017 = vsel %vm295, %v268, 0
    %v1020 = vsel %vm295, %v269, 0
    %v1023 = vsel %vm295, %v270, 0
    %v1026 = vsel %vm295, %v271, 0
    %v1029 = vsel %vm295, %v272, 0
    %v1032 = vsel %vm295, %v273, 0
    %v1035 = vsel %vm295, %v274, 0
    %v1038 = vsel %vm295, %v275, 0
    %v1041 = vsel %vm295, %v276, 0
    %v1044 = vsel %vm295, %v277, 0
    %v1047 = vsel %vm295, %v278, 0
    %v1050 = vsel %vm295, %v279, 0
    %v1053 = vsel %vm295, %v280, 0
    %v1056 = vsel %vm295, %v281, 0
    %v1059 = vsel %vm295, %v282, 0
    %v1062 = vsel %vm295, %v283, 0
    %1064 = vmatprep.subr.mxu0 0.0
    %1065 = vmatpush1.msra.mxu0 %v284
    %1066 = vmatprep.subr.mxu0 0.0
    %1067 = vmatpush1.msra.mxu0 %v285
    %1068 = vmatprep.subr.mxu0 0.0
    %1069 = vmatpush1.msra.mxu0 %v286
    %1070 = vmatprep.subr.mxu0 0.0
    %1071 = vmatpush1.msra.mxu0 %v287
    %1072 = vmatprep.subr.mxu0 0.0
    %1073 = vmatpush1.msra.mxu0 0.0
    %1074 = vmatprep.subr.mxu0 0.0
    %1075 = vmatpush1.msra.mxu0 0.0
    %1076 = vmatprep.subr.mxu0 0.0
    %1077 = vmatpush1.msra.mxu0 0.0
    %1078 = vmatprep.subr.mxu0 0.0
    %1079 = vmatpush1.msra.mxu0 0.0
    %1080 = vmatprep.subr.mxu0 0.0
    %1081 = vmatpush1.msra.mxu0 0.0
    %1082 = vmatprep.subr.mxu0 0.0
    %1083 = vmatpush1.msra.mxu0 0.0
    %1084 = vmatprep.subr.mxu0 0.0
    %1085 = vmatpush1.msra.mxu0 0.0
    %1086 = vmatprep.subr.mxu0 0.0
    %1087 = vmatpush1.msra.mxu0 0.0
    %1088 = vmatprep.subr.mxu0 0.0
    %1089 = vmatpush1.msra.mxu0 0.0
    %1090 = vmatprep.subr.mxu0 0.0
    %1091 = vmatpush1.msra.mxu0 0.0
    %1092 = vmatprep.subr.mxu0 0.0
    %1093 = vmatpush1.msra.mxu0 0.0
    %1094 = vmatprep.subr.mxu0 0.0
    %1095 = vmatpush1.msra.mxu0 0.0
    %1096 = vmatprep.subr.mxu0 0.0
    %1097 = vmatpush1.msra.mxu0 0.0
    %1098 = vmatprep.subr.mxu0 0.0
    %1099 = vmatpush1.msra.mxu0 0.0
    %1100 = vmatprep.subr.mxu0 0.0
    %1101 = vmatpush1.msra.mxu0 0.0
    %1102 = vmatprep.subr.mxu0 0.0
    %1103 = vmatpush1.msra.mxu0 0.0
    %1104 = vmatprep.subr.mxu0 0.0
    %1105 = vmatpush1.msra.mxu0 0.0
    %1106 = vmatprep.subr.mxu0 0.0
    %1107 = vmatpush1.msra.mxu0 0.0
    %1108 = vmatprep.subr.mxu0 0.0
    %1109 = vmatpush1.msra.mxu0 0.0
    %1110 = vmatprep.subr.mxu0 0.0
    %1111 = vmatpush1.msra.mxu0 0.0
    %1112 = vmatprep.subr.mxu0 0.0
    %1113 = vmatpush1.msra.mxu0 0.0
    %1114 = vmatprep.subr.mxu0 0.0
    %1115 = vmatpush1.msra.mxu0 0.0
    %1116 = vmatprep.subr.mxu0 0.0
    %1117 = vmatpush1.msra.mxu0 0.0
    %1118 = vmatprep.subr.mxu0 0.0
    %1119 = vmatpush1.msra.mxu0 0.0
    %1120 = vmatprep.subr.mxu0 0.0
    %1121 = vmatpush1.msra.mxu0 0.0
    %1122 = vmatprep.subr.mxu0 0.0
    %1123 = vmatpush1.msra.mxu0 0.0
    %1124 = vmatprep.subr.mxu0 0.0
    %1125 = vmatpush1.msra.mxu0 0.0
    %1126 = vmatprep.subr.mxu0 0.0
    %1127 = vmatpush1.msra.mxu0 0.0
    %1128 = vmatprep.mubr.f32.mxu0 0.0
    %1129 = vmatmul.mubr.f32.gmra.mrb[0].mxu0 %v297
    %v1130 = vpop.f32.mrb[0].mxu0
    %v1131 = vadd.f32 %v293, %v1130
    %v1132 = vpop.f32.mrb[0].mxu0
    %1133 = vmatprep.mubr.f32.mxu0 0.0
    %1134 = vmatmul.mubr.f32.gmra.mrb[0].mxu0 %v300
    %v1135 = vpop.f32.mrb[0].mxu0
    %v1136 = vadd.f32 %v293, %v1135
    %v1137 = vpop.f32.mrb[0].mxu0
    %1138 = vmatprep.mubr.f32.mxu0 0.0
    %1139 = vmatmul.mubr.f32.gmra.mrb[0].mxu0 %v303
    %v1140 = vpop.f32.mrb[0].mxu0
    %v1141 = vadd.f32 %v293, %v1140
    %v1142 = vpop.f32.mrb[0].mxu0
    %1143 = vmatprep.mubr.f32.mxu0 0.0
    %1144 = vmatmul.mubr.f32.gmra.mrb[0].mxu0 %v306
    %v1145 = vpop.f32.mrb[0].mxu0
    %v1146 = vadd.f32 %v293, %v1145
    %v1147 = vpop.f32.mrb[0].mxu0
    %1148 = vmatprep.mubr.f32.mxu0 0.0
    %1149 = vmatmul.mubr.f32.gmra.mrb[0].mxu0 %v309
    %v1150 = vpop.f32.mrb[0].mxu0
    %v1151 = vadd.f32 %v293, %v1150
    %v1152 = vpop.f32.mrb[0].mxu0
    %1153 = vmatprep.mubr.f32.mxu0 0.0
    %1154 = vmatmul.mubr.f32.gmra.mrb[0].mxu0 %v312
    %v1155 = vpop.f32.mrb[0].mxu0
    %v1156 = vadd.f32 %v293, %v1155
    %v1157 = vpop.f32.mrb[0].mxu0
    %1158 = vmatprep.mubr.f32.mxu0 0.0
    %1159 = vmatmul.mubr.f32.gmra.mrb[0].mxu0 %v315
    %v1160 = vpop.f32.mrb[0].mxu0
    %v1161 = vadd.f32 %v293, %v1160
    %v1162 = vpop.f32.mrb[0].mxu0
    %1163 = vmatprep.mubr.f32.mxu0 0.0
    %1164 = vmatmul.mubr.f32.gmra.mrb[0].mxu0 %v318
    %v1165 = vpop.f32.mrb[0].mxu0
    %v1166 = vadd.f32 %v293, %v1165
    %v1167 = vpop.f32.mrb[0].mxu0
    %1168 = vmatprep.mubr.f32.mxu0 0.0
    %1169 = vmatmul.mubr.f32.gmra.mrb[0].mxu0 %v321
    %v1170 = vpop.f32.mrb[0].mxu0
    %v1171 = vadd.f32 %v293, %v1170
    %v1172 = vpop.f32.mrb[0].mxu0
    %1173 = vmatprep.mubr.f32.mxu0 0.0
    %1174 = vmatmul.mubr.f32.gmra.mrb[0].mxu0 %v324
    %v1175 = vpop.f32.mrb[0].mxu0
    %v1176 = vadd.f32 %v293, %v1175
    %v1177 = vpop.f32.mrb[0].mxu0
    %1178 = vmatprep.mubr.f32.mxu0 0.0
    %1179 = vmatmul.mubr.f32.gmra.mrb[0].mxu0 %v327
    %v1180 = vpop.f32.mrb[0].mxu0
    %v1181 = vadd.f32 %v293, %v1180
    %v1182 = vpop.f32.mrb[0].mxu0
    %1183 = vmatprep.mubr.f32.mxu0 0.0
    %1184 = vmatmul.mubr.f32.gmra.mrb[0].mxu0 %v330
    %v1185 = vpop.f32.mrb[0].mxu0
    %v1186 = vadd.f32 %v293, %v1185
    %v1187 = vpop.f32.mrb[0].mxu0
    %1188 = vmatprep.mubr.f32.mxu0 0.0
    %1189 = vmatmul.mubr.f32.gmra.mrb[0].mxu0 %v333
    %v1190 = vpop.f32.mrb[0].mxu0
    %v1191 = vadd.f32 %v293, %v1190
    %v1192 = vpop.f32.mrb[0].mxu0
    %1193 = vmatprep.mubr.f32.mxu0 0.0
    %1194 = vmatmul.mubr.f32.gmra.mrb[0].mxu0 %v336
    %v1195 = vpop.f32.mrb[0].mxu0
    %v1196 = vadd.f32 %v293, %v1195
    %v1197 = vpop.f32.mrb[0].mxu0
    %1198 = vmatprep.mubr.f32.mxu0 0.0
    %1199 = vmatmul.mubr.f32.gmra.mrb[0].mxu0 %v339
    %v1200 = vpop.f32.mrb[0].mxu0
    %v1201 = vadd.f32 %v293, %v1200
    %v1202 = vpop.f32.mrb[0].mxu0
    %1203 = vmatprep.mubr.f32.mxu0 0.0
    %1204 = vmatmul.mubr.f32.gmra.mrb[0].mxu0 %v342
    %v1205 = vpop.f32.mrb[0].mxu0
    %v1206 = vadd.f32 %v293, %v1205
    %v1207 = vpop.f32.mrb[0].mxu0
    %1208 = vmatprep.mubr.f32.mxu0 0.0
    %1209 = vmatmul.mubr.f32.gmra.mrb[0].mxu0 %v345
    %v1210 = vpop.f32.mrb[0].mxu0
    %v1211 = vadd.f32 %v293, %v1210
    %v1212 = vpop.f32.mrb[0].mxu0
    %1213 = vmatprep.mubr.f32.mxu0 0.0
    %1214 = vmatmul.mubr.f32.gmra.mrb[0].mxu0 %v348
    %v1215 = vpop.f32.mrb[0].mxu0
    %v1216 = vadd.f32 %v293, %v1215
    %v1217 = vpop.f32.mrb[0].mxu0
    %1218 = vmatprep.mubr.f32.mxu0 0.0
    %1219 = vmatmul.mubr.f32.gmra.mrb[0].mxu0 %v351
    %v1220 = vpop.f32.mrb[0].mxu0
    %v1221 = vadd.f32 %v293, %v1220
    %v1222 = vpop.f32.mrb[0].mxu0
    %1223 = vmatprep.mubr.f32.mxu0 0.0
    %1224 = vmatmul.mubr.f32.gmra.mrb[0].mxu0 %v354
    %v1225 = vpop.f32.mrb[0].mxu0
    %v1226 = vadd.f32 %v293, %v1225
    %v1227 = vpop.f32.mrb[0].mxu0
    %1228 = vmatprep.mubr.f32.mxu0 0.0
    %1229 = vmatmul.mubr.f32.gmra.mrb[0].mxu0 %v357
    %v1230 = vpop.f32.mrb[0].mxu0
    %v1231 = vadd.f32 %v293, %v1230
    %v1232 = vpop.f32.mrb[0].mxu0
    %1233 = vmatprep.mubr.f32.mxu0 0.0
    %1234 = vmatmul.mubr.f32.gmra.mrb[0].mxu0 %v360
    %v1235 = vpop.f32.mrb[0].mxu0
    %v1236 = vadd.f32 %v293, %v1235
    %v1237 = vpop.f32.mrb[0].mxu0
    %1238 = vmatprep.mubr.f32.mxu0 0.0
    %1239 = vmatmul.mubr.f32.gmra.mrb[0].mxu0 %v363
    %v1240 = vpop.f32.mrb[0].mxu0
    %v1241 = vadd.f32 %v293, %v1240
    %v1242 = vpop.f32.mrb[0].mxu0
    %1243 = vmatprep.mubr.f32.mxu0 0.0
    %1244 = vmatmul.mubr.f32.gmra.mrb[0].mxu0 %v366
    %v1245 = vpop.f32.mrb[0].mxu0
    %v1246 = vadd.f32 %v293, %v1245
    %v1247 = vpop.f32.mrb[0].mxu0
    %1248 = vmatprep.mubr.f32.mxu0 0.0
    %1249 = vmatmul.mubr.f32.gmra.mrb[0].mxu0 %v369
    %v1250 = vpop.f32.mrb[0].mxu0
    %v1251 = vadd.f32 %v293, %v1250
    %v1252 = vpop.f32.mrb[0].mxu0
    %1253 = vmatprep.mubr.f32.mxu0 0.0
    %1254 = vmatmul.mubr.f32.gmra.mrb[0].mxu0 %v372
    %v1255 = vpop.f32.mrb[0].mxu0
    %v1256 = vadd.f32 %v293, %v1255
    %v1257 = vpop.f32.mrb[0].mxu0
    %1258 = vmatprep.mubr.f32.mxu0 0.0
    %1259 = vmatmul.mubr.f32.gmra.mrb[0].mxu0 %v375
    %v1260 = vpop.f32.mrb[0].mxu0
    %v1261 = vadd.f32 %v293, %v1260
    %v1262 = vpop.f32.mrb[0].mxu0
    %1263 = vmatprep.mubr.f32.mxu0 0.0
    %1264 = vmatmul.mubr.f32.gmra.mrb[0].mxu0 %v378
    %v1265 = vpop.f32.mrb[0].mxu0
    %v1266 = vadd.f32 %v293, %v1265
    %v1267 = vpop.f32.mrb[0].mxu0
    %1268 = vmatprep.mubr.f32.mxu0 0.0
    %1269 = vmatmul.mubr.f32.gmra.mrb[0].mxu0 %v381
    %v1270 = vpop.f32.mrb[0].mxu0
    %v1271 = vadd.f32 %v293, %v1270
    %v1272 = vpop.f32.mrb[0].mxu0
    %1273 = vmatprep.mubr.f32.mxu0 0.0
    %1274 = vmatmul.mubr.f32.gmra.mrb[0].mxu0 %v384
    %v1275 = vpop.f32.mrb[0].mxu0
    %v1276 = vadd.f32 %v293, %v1275
    %v1277 = vpop.f32.mrb[0].mxu0
    %1278 = vmatprep.mubr.f32.mxu0 0.0
    %1279 = vmatmul.mubr.f32.gmra.mrb[0].mxu0 %v387
    %v1280 = vpop.f32.mrb[0].mxu0
    %v1281 = vadd.f32 %v293, %v1280
    %v1282 = vpop.f32.mrb[0].mxu0
    %1283 = vmatprep.mubr.f32.mxu0 0.0
    %1284 = vmatmul.mubr.f32.gmra.mrb[0].mxu0 %v390
    %v1285 = vpop.f32.mrb[0].mxu0
    %v1286 = vadd.f32 %v293, %v1285
    %v1287 = vpop.f32.mrb[0].mxu0
    %1288 = vmatprep.mubr.f32.mxu0 0.0
    %1289 = vmatmul.mubr.f32.gmra.mrb[0].mxu0 %v393
    %v1290 = vpop.f32.mrb[0].mxu0
    %v1291 = vadd.f32 %v293, %v1290
    %v1292 = vpop.f32.mrb[0].mxu0
    %1293 = vmatprep.mubr.f32.mxu0 0.0
    %1294 = vmatmul.mubr.f32.gmra.mrb[0].mxu0 %v396
    %v1295 = vpop.f32.mrb[0].mxu0
    %v1296 = vadd.f32 %v293, %v1295
    %v1297 = vpop.f32.mrb[0].mxu0
    %1298 = vmatprep.mubr.f32.mxu0 0.0
    %1299 = vmatmul.mubr.f32.gmra.mrb[0].mxu0 %v399
    %v1300 = vpop.f32.mrb[0].mxu0
    %v1301 = vadd.f32 %v293, %v1300
    %v1302 = vpop.f32.mrb[0].mxu0
    %1303 = vmatprep.mubr.f32.mxu0 0.0
    %1304 = vmatmul.mubr.f32.gmra.mrb[0].mxu0 %v402
    %v1305 = vpop.f32.mrb[0].mxu0
    %v1306 = vadd.f32 %v293, %v1305
    %v1307 = vpop.f32.mrb[0].mxu0
    %1308 = vmatprep.mubr.f32.mxu0 0.0
    %1309 = vmatmul.mubr.f32.gmra.mrb[0].mxu0 %v405
    %v1310 = vpop.f32.mrb[0].mxu0
    %v1311 = vadd.f32 %v293, %v1310
    %v1312 = vpop.f32.mrb[0].mxu0
    %1313 = vmatprep.mubr.f32.mxu0 0.0
    %1314 = vmatmul.mubr.f32.gmra.mrb[0].mxu0 %v408
    %v1315 = vpop.f32.mrb[0].mxu0
    %v1316 = vadd.f32 %v293, %v1315
    %v1317 = vpop.f32.mrb[0].mxu0
    %1318 = vmatprep.mubr.f32.mxu0 0.0
    %1319 = vmatmul.mubr.f32.gmra.mrb[0].mxu0 %v411
    %v1320 = vpop.f32.mrb[0].mxu0
    %v1321 = vadd.f32 %v293, %v1320
    %v1322 = vpop.f32.mrb[0].mxu0
    %1323 = vmatprep.mubr.f32.mxu0 0.0
    %1324 = vmatmul.mubr.f32.gmra.mrb[0].mxu0 %v414
    %v1325 = vpop.f32.mrb[0].mxu0
    %v1326 = vadd.f32 %v293, %v1325
    %v1327 = vpop.f32.mrb[0].mxu0
    %1328 = vmatprep.mubr.f32.mxu0 0.0
    %1329 = vmatmul.mubr.f32.gmra.mrb[0].mxu0 %v417
    %v1330 = vpop.f32.mrb[0].mxu0
    %v1331 = vadd.f32 %v293, %v1330
    %v1332 = vpop.f32.mrb[0].mxu0
    %1333 = vmatprep.mubr.f32.mxu0 0.0
    %1334 = vmatmul.mubr.f32.gmra.mrb[0].mxu0 %v420
    %v1335 = vpop.f32.mrb[0].mxu0
    %v1336 = vadd.f32 %v293, %v1335
    %v1337 = vpop.f32.mrb[0].mxu0
    %1338 = vmatprep.mubr.f32.mxu0 0.0
    %1339 = vmatmul.mubr.f32.gmra.mrb[0].mxu0 %v423
    %v1340 = vpop.f32.mrb[0].mxu0
    %v1341 = vadd.f32 %v293, %v1340
    %v1342 = vpop.f32.mrb[0].mxu0
    %1343 = vmatprep.mubr.f32.mxu0 0.0
    %1344 = vmatmul.mubr.f32.gmra.mrb[0].mxu0 %v426
    %v1345 = vpop.f32.mrb[0].mxu0
    %v1346 = vadd.f32 %v293, %v1345
    %v1347 = vpop.f32.mrb[0].mxu0
    %1348 = vmatprep.mubr.f32.mxu0 0.0
    %1349 = vmatmul.mubr.f32.gmra.mrb[0].mxu0 %v429
    %v1350 = vpop.f32.mrb[0].mxu0
    %v1351 = vadd.f32 %v293, %v1350
    %v1352 = vpop.f32.mrb[0].mxu0
    %1353 = vmatprep.mubr.f32.mxu0 0.0
    %1354 = vmatmul.mubr.f32.gmra.mrb[0].mxu0 %v432
    %v1355 = vpop.f32.mrb[0].mxu0
    %v1356 = vadd.f32 %v293, %v1355
    %v1357 = vpop.f32.mrb[0].mxu0
    %1358 = vmatprep.mubr.f32.mxu0 0.0
    %1359 = vmatmul.mubr.f32.gmra.mrb[0].mxu0 %v435
    %v1360 = vpop.f32.mrb[0].mxu0
    %v1361 = vadd.f32 %v293, %v1360
    %v1362 = vpop.f32.mrb[0].mxu0
    %1363 = vmatprep.mubr.f32.mxu0 0.0
    %1364 = vmatmul.mubr.f32.gmra.mrb[0].mxu0 %v438
    %v1365 = vpop.f32.mrb[0].mxu0
    %v1366 = vadd.f32 %v293, %v1365
    %v1367 = vpop.f32.mrb[0].mxu0
    %1368 = vmatprep.mubr.f32.mxu0 0.0
    %1369 = vmatmul.mubr.f32.gmra.mrb[0].mxu0 %v441
    %v1370 = vpop.f32.mrb[0].mxu0
    %v1371 = vadd.f32 %v293, %v1370
    %v1372 = vpop.f32.mrb[0].mxu0
    %1373 = vmatprep.mubr.f32.mxu0 0.0
    %1374 = vmatmul.mubr.f32.gmra.mrb[0].mxu0 %v444
    %v1375 = vpop.f32.mrb[0].mxu0
    %v1376 = vadd.f32 %v293, %v1375
    %v1377 = vpop.f32.mrb[0].mxu0
    %1378 = vmatprep.mubr.f32.mxu0 0.0
    %1379 = vmatmul.mubr.f32.gmra.mrb[0].mxu0 %v447
    %v1380 = vpop.f32.mrb[0].mxu0
    %v1381 = vadd.f32 %v293, %v1380
    %v1382 = vpop.f32.mrb[0].mxu0
    %1383 = vmatprep.mubr.f32.mxu0 0.0
    %1384 = vmatmul.mubr.f32.gmra.mrb[0].mxu0 %v450
    %v1385 = vpop.f32.mrb[0].mxu0
    %v1386 = vadd.f32 %v293, %v1385
    %v1387 = vpop.f32.mrb[0].mxu0
    %1388 = vmatprep.mubr.f32.mxu0 0.0
    %1389 = vmatmul.mubr.f32.gmra.mrb[0].mxu0 %v453
    %v1390 = vpop.f32.mrb[0].mxu0
    %v1391 = vadd.f32 %v293, %v1390
    %v1392 = vpop.f32.mrb[0].mxu0
    %1393 = vmatprep.mubr.f32.mxu0 0.0
    %1394 = vmatmul.mubr.f32.gmra.mrb[0].mxu0 %v456
    %v1395 = vpop.f32.mrb[0].mxu0
    %v1396 = vadd.f32 %v293, %v1395
    %v1397 = vpop.f32.mrb[0].mxu0
    %1398 = vmatprep.mubr.f32.mxu0 0.0
    %1399 = vmatmul.mubr.f32.gmra.mrb[0].mxu0 %v459
    %v1400 = vpop.f32.mrb[0].mxu0
    %v1401 = vadd.f32 %v293, %v1400
    %v1402 = vpop.f32.mrb[0].mxu0
    %1403 = vmatprep.mubr.f32.mxu0 0.0
    %1404 = vmatmul.mubr.f32.gmra.mrb[0].mxu0 %v462
    %v1405 = vpop.f32.mrb[0].mxu0
    %v1406 = vadd.f32 %v293, %v1405
    %v1407 = vpop.f32.mrb[0].mxu0
    %1408 = vmatprep.mubr.f32.mxu0 0.0
    %1409 = vmatmul.mubr.f32.gmra.mrb[0].mxu0 %v465
    %v1410 = vpop.f32.mrb[0].mxu0
    %v1411 = vadd.f32 %v293, %v1410
    %v1412 = vpop.f32.mrb[0].mxu0
    %1413 = vmatprep.mubr.f32.mxu0 0.0
    %1414 = vmatmul.mubr.f32.gmra.mrb[0].mxu0 %v468
    %v1415 = vpop.f32.mrb[0].mxu0
    %v1416 = vadd.f32 %v293, %v1415
    %v1417 = vpop.f32.mrb[0].mxu0
    %1418 = vmatprep.mubr.f32.mxu0 0.0
    %1419 = vmatmul.mubr.f32.gmra.mrb[0].mxu0 %v471
    %v1420 = vpop.f32.mrb[0].mxu0
    %v1421 = vadd.f32 %v293, %v1420
    %v1422 = vpop.f32.mrb[0].mxu0
    %1423 = vmatprep.mubr.f32.mxu0 0.0
    %1424 = vmatmul.mubr.f32.gmra.mrb[0].mxu0 %v474
    %v1425 = vpop.f32.mrb[0].mxu0
    %v1426 = vadd.f32 %v293, %v1425
    %v1427 = vpop.f32.mrb[0].mxu0
    %1428 = vmatprep.mubr.f32.mxu0 0.0
    %1429 = vmatmul.mubr.f32.gmra.mrb[0].mxu0 %v477
    %v1430 = vpop.f32.mrb[0].mxu0
    %v1431 = vadd.f32 %v293, %v1430
    %v1432 = vpop.f32.mrb[0].mxu0
    %1433 = vmatprep.mubr.f32.mxu0 0.0
    %1434 = vmatmul.mubr.f32.gmra.mrb[0].mxu0 %v480
    %v1435 = vpop.f32.mrb[0].mxu0
    %v1436 = vadd.f32 %v293, %v1435
    %v1437 = vpop.f32.mrb[0].mxu0
    %1438 = vmatprep.mubr.f32.mxu0 0.0
    %1439 = vmatmul.mubr.f32.gmra.mrb[0].mxu0 %v483
    %v1440 = vpop.f32.mrb[0].mxu0
    %v1441 = vadd.f32 %v293, %v1440
    %v1442 = vpop.f32.mrb[0].mxu0
    %1443 = vmatprep.mubr.f32.mxu0 0.0
    %1444 = vmatmul.mubr.f32.gmra.mrb[0].mxu0 %v486
    %v1445 = vpop.f32.mrb[0].mxu0
    %v1446 = vadd.f32 %v293, %v1445
    %v1447 = vpop.f32.mrb[0].mxu0
    %1448 = vmatprep.mubr.f32.mxu0 0.0
    %1449 = vmatmul.mubr.f32.gmra.mrb[0].mxu0 %v489
    %v1450 = vpop.f32.mrb[0].mxu0
    %v1451 = vadd.f32 %v293, %v1450
    %v1452 = vpop.f32.mrb[0].mxu0
    %1453 = vmatprep.mubr.f32.mxu0 0.0
    %1454 = vmatmul.mubr.f32.gmra.mrb[0].mxu0 %v492
    %v1455 = vpop.f32.mrb[0].mxu0
    %v1456 = vadd.f32 %v293, %v1455
    %v1457 = vpop.f32.mrb[0].mxu0
    %1458 = vmatprep.mubr.f32.mxu0 0.0
    %1459 = vmatmul.mubr.f32.gmra.mrb[0].mxu0 %v495
    %v1460 = vpop.f32.mrb[0].mxu0
    %v1461 = vadd.f32 %v293, %v1460
    %v1462 = vpop.f32.mrb[0].mxu0
    %1463 = vmatprep.mubr.f32.mxu0 0.0
    %1464 = vmatmul.mubr.f32.gmra.mrb[0].mxu0 %v498
    %v1465 = vpop.f32.mrb[0].mxu0
    %v1466 = vadd.f32 %v293, %v1465
    %v1467 = vpop.f32.mrb[0].mxu0
    %1468 = vmatprep.mubr.f32.mxu0 0.0
    %1469 = vmatmul.mubr.f32.gmra.mrb[0].mxu0 %v501
    %v1470 = vpop.f32.mrb[0].mxu0
    %v1471 = vadd.f32 %v293, %v1470
    %v1472 = vpop.f32.mrb[0].mxu0
    %1473 = vmatprep.mubr.f32.mxu0 0.0
    %1474 = vmatmul.mubr.f32.gmra.mrb[0].mxu0 %v504
    %v1475 = vpop.f32.mrb[0].mxu0
    %v1476 = vadd.f32 %v293, %v1475
    %v1477 = vpop.f32.mrb[0].mxu0
    %1478 = vmatprep.mubr.f32.mxu0 0.0
    %1479 = vmatmul.mubr.f32.gmra.mrb[0].mxu0 %v507
    %v1480 = vpop.f32.mrb[0].mxu0
    %v1481 = vadd.f32 %v293, %v1480
    %v1482 = vpop.f32.mrb[0].mxu0
    %1483 = vmatprep.mubr.f32.mxu0 0.0
    %1484 = vmatmul.mubr.f32.gmra.mrb[0].mxu0 %v510
    %v1485 = vpop.f32.mrb[0].mxu0
    %v1486 = vadd.f32 %v293, %v1485
    %v1487 = vpop.f32.mrb[0].mxu0
    %1488 = vmatprep.mubr.f32.mxu0 0.0
    %1489 = vmatmul.mubr.f32.gmra.mrb[0].mxu0 %v513
    %v1490 = vpop.f32.mrb[0].mxu0
    %v1491 = vadd.f32 %v293, %v1490
    %v1492 = vpop.f32.mrb[0].mxu0
    %1493 = vmatprep.mubr.f32.mxu0 0.0
    %1494 = vmatmul.mubr.f32.gmra.mrb[0].mxu0 %v516
    %v1495 = vpop.f32.mrb[0].mxu0
    %v1496 = vadd.f32 %v293, %v1495
    %v1497 = vpop.f32.mrb[0].mxu0
    %1498 = vmatprep.mubr.f32.mxu0 0.0
    %1499 = vmatmul.mubr.f32.gmra.mrb[0].mxu0 %v519
    %v1500 = vpop.f32.mrb[0].mxu0
    %v1501 = vadd.f32 %v293, %v1500
    %v1502 = vpop.f32.mrb[0].mxu0
    %1503 = vmatprep.mubr.f32.mxu0 0.0
    %1504 = vmatmul.mubr.f32.gmra.mrb[0].mxu0 %v522
    %v1505 = vpop.f32.mrb[0].mxu0
    %v1506 = vadd.f32 %v293, %v1505
    %v1507 = vpop.f32.mrb[0].mxu0
    %1508 = vmatprep.mubr.f32.mxu0 0.0
    %1509 = vmatmul.mubr.f32.gmra.mrb[0].mxu0 %v525
    %v1510 = vpop.f32.mrb[0].mxu0
    %v1511 = vadd.f32 %v293, %v1510
    %v1512 = vpop.f32.mrb[0].mxu0
    %1513 = vmatprep.mubr.f32.mxu0 0.0
    %1514 = vmatmul.mubr.f32.gmra.mrb[0].mxu0 %v528
    %v1515 = vpop.f32.mrb[0].mxu0
    %v1516 = vadd.f32 %v293, %v1515
    %v1517 = vpop.f32.mrb[0].mxu0
    %1518 = vmatprep.mubr.f32.mxu0 0.0
    %1519 = vmatmul.mubr.f32.gmra.mrb[0].mxu0 %v531
    %v1520 = vpop.f32.mrb[0].mxu0
    %v1521 = vadd.f32 %v293, %v1520
    %v1522 = vpop.f32.mrb[0].mxu0
    %1523 = vmatprep.mubr.f32.mxu0 0.0
    %1524 = vmatmul.mubr.f32.gmra.mrb[0].mxu0 %v534
    %v1525 = vpop.f32.mrb[0].mxu0
    %v1526 = vadd.f32 %v293, %v1525
    %v1527 = vpop.f32.mrb[0].mxu0
    %1528 = vmatprep.mubr.f32.mxu0 0.0
    %1529 = vmatmul.mubr.f32.gmra.mrb[0].mxu0 %v537
    %v1530 = vpop.f32.mrb[0].mxu0
    %v1531 = vadd.f32 %v293, %v1530
    %v1532 = vpop.f32.mrb[0].mxu0
    %1533 = vmatprep.mubr.f32.mxu0 0.0
    %1534 = vmatmul.mubr.f32.gmra.mrb[0].mxu0 %v540
    %v1535 = vpop.f32.mrb[0].mxu0
    %v1536 = vadd.f32 %v293, %v1535
    %v1537 = vpop.f32.mrb[0].mxu0
    %1538 = vmatprep.mubr.f32.mxu0 0.0
    %1539 = vmatmul.mubr.f32.gmra.mrb[0].mxu0 %v543
    %v1540 = vpop.f32.mrb[0].mxu0
    %v1541 = vadd.f32 %v293, %v1540
    %v1542 = vpop.f32.mrb[0].mxu0
    %1543 = vmatprep.mubr.f32.mxu0 0.0
    %1544 = vmatmul.mubr.f32.gmra.mrb[0].mxu0 %v546
    %v1545 = vpop.f32.mrb[0].mxu0
    %v1546 = vadd.f32 %v293, %v1545
    %v1547 = vpop.f32.mrb[0].mxu0
    %1548 = vmatprep.mubr.f32.mxu0 0.0
    %1549 = vmatmul.mubr.f32.gmra.mrb[0].mxu0 %v549
    %v1550 = vpop.f32.mrb[0].mxu0
    %v1551 = vadd.f32 %v293, %v1550
    %v1552 = vpop.f32.mrb[0].mxu0
    %1553 = vmatprep.mubr.f32.mxu0 0.0
    %1554 = vmatmul.mubr.f32.gmra.mrb[0].mxu0 %v552
    %v1555 = vpop.f32.mrb[0].mxu0
    %v1556 = vadd.f32 %v293, %v1555
    %v1557 = vpop.f32.mrb[0].mxu0
    %1558 = vmatprep.mubr.f32.mxu0 0.0
    %1559 = vmatmul.mubr.f32.gmra.mrb[0].mxu0 %v555
    %v1560 = vpop.f32.mrb[0].mxu0
    %v1561 = vadd.f32 %v293, %v1560
    %v1562 = vpop.f32.mrb[0].mxu0
    %1563 = vmatprep.mubr.f32.mxu0 0.0
    %1564 = vmatmul.mubr.f32.gmra.mrb[0].mxu0 %v558
    %v1565 = vpop.f32.mrb[0].mxu0
    %v1566 = vadd.f32 %v293, %v1565
    %v1567 = vpop.f32.mrb[0].mxu0
    %1568 = vmatprep.mubr.f32.mxu0 0.0
    %1569 = vmatmul.mubr.f32.gmra.mrb[0].mxu0 %v561
    %v1570 = vpop.f32.mrb[0].mxu0
    %v1571 = vadd.f32 %v293, %v1570
    %v1572 = vpop.f32.mrb[0].mxu0
    %1573 = vmatprep.mubr.f32.mxu0 0.0
    %1574 = vmatmul.mubr.f32.gmra.mrb[0].mxu0 %v564
    %v1575 = vpop.f32.mrb[0].mxu0
    %v1576 = vadd.f32 %v293, %v1575
    %v1577 = vpop.f32.mrb[0].mxu0
    %1578 = vmatprep.mubr.f32.mxu0 0.0
    %1579 = vmatmul.mubr.f32.gmra.mrb[0].mxu0 %v567
    %v1580 = vpop.f32.mrb[0].mxu0
    %v1581 = vadd.f32 %v293, %v1580
    %v1582 = vpop.f32.mrb[0].mxu0
    %1583 = vmatprep.mubr.f32.mxu0 0.0
    %1584 = vmatmul.mubr.f32.gmra.mrb[0].mxu0 %v570
    %v1585 = vpop.f32.mrb[0].mxu0
    %v1586 = vadd.f32 %v293, %v1585
    %v1587 = vpop.f32.mrb[0].mxu0
    %1588 = vmatprep.mubr.f32.mxu0 0.0
    %1589 = vmatmul.mubr.f32.gmra.mrb[0].mxu0 %v573
    %v1590 = vpop.f32.mrb[0].mxu0
    %v1591 = vadd.f32 %v293, %v1590
    %v1592 = vpop.f32.mrb[0].mxu0
    %1593 = vmatprep.mubr.f32.mxu0 0.0
    %1594 = vmatmul.mubr.f32.gmra.mrb[0].mxu0 %v576
    %v1595 = vpop.f32.mrb[0].mxu0
    %v1596 = vadd.f32 %v293, %v1595
    %v1597 = vpop.f32.mrb[0].mxu0
    %1598 = vmatprep.mubr.f32.mxu0 0.0
    %1599 = vmatmul.mubr.f32.gmra.mrb[0].mxu0 %v579
    %v1600 = vpop.f32.mrb[0].mxu0
    %v1601 = vadd.f32 %v293, %v1600
    %v1602 = vpop.f32.mrb[0].mxu0
    %1603 = vmatprep.mubr.f32.mxu0 0.0
    %1604 = vmatmul.mubr.f32.gmra.mrb[0].mxu0 %v582
    %v1605 = vpop.f32.mrb[0].mxu0
    %v1606 = vadd.f32 %v293, %v1605
    %v1607 = vpop.f32.mrb[0].mxu0
    %1608 = vmatprep.mubr.f32.mxu0 0.0
    %1609 = vmatmul.mubr.f32.gmra.mrb[0].mxu0 %v585
    %v1610 = vpop.f32.mrb[0].mxu0
    %v1611 = vadd.f32 %v293, %v1610
    %v1612 = vpop.f32.mrb[0].mxu0
    %1613 = vmatprep.mubr.f32.mxu0 0.0
    %1614 = vmatmul.mubr.f32.gmra.mrb[0].mxu0 %v588
    %v1615 = vpop.f32.mrb[0].mxu0
    %v1616 = vadd.f32 %v293, %v1615
    %v1617 = vpop.f32.mrb[0].mxu0
    %1618 = vmatprep.mubr.f32.mxu0 0.0
    %1619 = vmatmul.mubr.f32.gmra.mrb[0].mxu0 %v591
    %v1620 = vpop.f32.mrb[0].mxu0
    %v1621 = vadd.f32 %v293, %v1620
    %v1622 = vpop.f32.mrb[0].mxu0
    %1623 = vmatprep.mubr.f32.mxu0 0.0
    %1624 = vmatmul.mubr.f32.gmra.mrb[0].mxu0 %v594
    %v1625 = vpop.f32.mrb[0].mxu0
    %v1626 = vadd.f32 %v293, %v1625
    %v1627 = vpop.f32.mrb[0].mxu0
    %1628 = vmatprep.mubr.f32.mxu0 0.0
    %1629 = vmatmul.mubr.f32.gmra.mrb[0].mxu0 %v597
    %v1630 = vpop.f32.mrb[0].mxu0
    %v1631 = vadd.f32 %v293, %v1630
    %v1632 = vpop.f32.mrb[0].mxu0
    %1633 = vmatprep.mubr.f32.mxu0 0.0
    %1634 = vmatmul.mubr.f32.gmra.mrb[0].mxu0 %v600
    %v1635 = vpop.f32.mrb[0].mxu0
    %v1636 = vadd.f32 %v293, %v1635
    %v1637 = vpop.f32.mrb[0].mxu0
    %1638 = vmatprep.mubr.f32.mxu0 0.0
    %1639 = vmatmul.mubr.f32.gmra.mrb[0].mxu0 %v603
    %v1640 = vpop.f32.mrb[0].mxu0
    %v1641 = vadd.f32 %v293, %v1640
    %v1642 = vpop.f32.mrb[0].mxu0
    %1643 = vmatprep.mubr.f32.mxu0 0.0
    %1644 = vmatmul.mubr.f32.gmra.mrb[0].mxu0 %v606
    %v1645 = vpop.f32.mrb[0].mxu0
    %v1646 = vadd.f32 %v293, %v1645
    %v1647 = vpop.f32.mrb[0].mxu0
    %1648 = vmatprep.mubr.f32.mxu0 0.0
    %1649 = vmatmul.mubr.f32.gmra.mrb[0].mxu0 %v609
    %v1650 = vpop.f32.mrb[0].mxu0
    %v1651 = vadd.f32 %v293, %v1650
    %v1652 = vpop.f32.mrb[0].mxu0
    %1653 = vmatprep.mubr.f32.mxu0 0.0
    %1654 = vmatmul.mubr.f32.gmra.mrb[0].mxu0 %v612
    %v1655 = vpop.f32.mrb[0].mxu0
    %v1656 = vadd.f32 %v293, %v1655
    %v1657 = vpop.f32.mrb[0].mxu0
    %1658 = vmatprep.mubr.f32.mxu0 0.0
    %1659 = vmatmul.mubr.f32.gmra.mrb[0].mxu0 %v615
    %v1660 = vpop.f32.mrb[0].mxu0
    %v1661 = vadd.f32 %v293, %v1660
    %v1662 = vpop.f32.mrb[0].mxu0
    %1663 = vmatprep.mubr.f32.mxu0 0.0
    %1664 = vmatmul.mubr.f32.gmra.mrb[0].mxu0 %v618
    %v1665 = vpop.f32.mrb[0].mxu0
    %v1666 = vadd.f32 %v293, %v1665
    %v1667 = vpop.f32.mrb[0].mxu0
    %1668 = vmatprep.mubr.f32.mxu0 0.0
    %1669 = vmatmul.mubr.f32.gmra.mrb[0].mxu0 %v621
    %v1670 = vpop.f32.mrb[0].mxu0
    %v1671 = vadd.f32 %v293, %v1670
    %v1672 = vpop.f32.mrb[0].mxu0
    %1673 = vmatprep.mubr.f32.mxu0 0.0
    %1674 = vmatmul.mubr.f32.gmra.mrb[0].mxu0 %v624
    %v1675 = vpop.f32.mrb[0].mxu0
    %v1676 = vadd.f32 %v293, %v1675
    %v1677 = vpop.f32.mrb[0].mxu0
    %1678 = vmatprep.mubr.f32.mxu0 0.0
    %1679 = vmatmul.mubr.f32.gmra.mrb[0].mxu0 %v627
    %v1680 = vpop.f32.mrb[0].mxu0
    %v1681 = vadd.f32 %v293, %v1680
    %v1682 = vpop.f32.mrb[0].mxu0
    %1683 = vmatprep.mubr.f32.mxu0 0.0
    %1684 = vmatmul.mubr.f32.gmra.mrb[0].mxu0 %v630
    %v1685 = vpop.f32.mrb[0].mxu0
    %v1686 = vadd.f32 %v293, %v1685
    %v1687 = vpop.f32.mrb[0].mxu0
    %1688 = vmatprep.mubr.f32.mxu0 0.0
    %1689 = vmatmul.mubr.f32.gmra.mrb[0].mxu0 %v633
    %v1690 = vpop.f32.mrb[0].mxu0
    %v1691 = vadd.f32 %v293, %v1690
    %v1692 = vpop.f32.mrb[0].mxu0
    %1693 = vmatprep.mubr.f32.mxu0 0.0
    %1694 = vmatmul.mubr.f32.gmra.mrb[0].mxu0 %v636
    %v1695 = vpop.f32.mrb[0].mxu0
    %v1696 = vadd.f32 %v293, %v1695
    %v1697 = vpop.f32.mrb[0].mxu0
    %1698 = vmatprep.mubr.f32.mxu0 0.0
    %1699 = vmatmul.mubr.f32.gmra.mrb[0].mxu0 %v639
    %v1700 = vpop.f32.mrb[0].mxu0
    %v1701 = vadd.f32 %v293, %v1700
    %v1702 = vpop.f32.mrb[0].mxu0
    %1703 = vmatprep.mubr.f32.mxu0 0.0
    %1704 = vmatmul.mubr.f32.gmra.mrb[0].mxu0 %v642
    %v1705 = vpop.f32.mrb[0].mxu0
    %v1706 = vadd.f32 %v293, %v1705
    %v1707 = vpop.f32.mrb[0].mxu0
    %1708 = vmatprep.mubr.f32.mxu0 0.0
    %1709 = vmatmul.mubr.f32.gmra.mrb[0].mxu0 %v645
    %v1710 = vpop.f32.mrb[0].mxu0
    %v1711 = vadd.f32 %v293, %v1710
    %v1712 = vpop.f32.mrb[0].mxu0
    %1713 = vmatprep.mubr.f32.mxu0 0.0
    %1714 = vmatmul.mubr.f32.gmra.mrb[0].mxu0 %v648
    %v1715 = vpop.f32.mrb[0].mxu0
    %v1716 = vadd.f32 %v293, %v1715
    %v1717 = vpop.f32.mrb[0].mxu0
    %1718 = vmatprep.mubr.f32.mxu0 0.0
    %1719 = vmatmul.mubr.f32.gmra.mrb[0].mxu0 %v651
    %v1720 = vpop.f32.mrb[0].mxu0
    %v1721 = vadd.f32 %v293, %v1720
    %v1722 = vpop.f32.mrb[0].mxu0
    %1723 = vmatprep.mubr.f32.mxu0 0.0
    %1724 = vmatmul.mubr.f32.gmra.mrb[0].mxu0 %v654
    %v1725 = vpop.f32.mrb[0].mxu0
    %v1726 = vadd.f32 %v293, %v1725
    %v1727 = vpop.f32.mrb[0].mxu0
    %1728 = vmatprep.mubr.f32.mxu0 0.0
    %1729 = vmatmul.mubr.f32.gmra.mrb[0].mxu0 %v657
    %v1730 = vpop.f32.mrb[0].mxu0
    %v1731 = vadd.f32 %v293, %v1730
    %v1732 = vpop.f32.mrb[0].mxu0
    %1733 = vmatprep.mubr.f32.mxu0 0.0
    %1734 = vmatmul.mubr.f32.gmra.mrb[0].mxu0 %v660
    %v1735 = vpop.f32.mrb[0].mxu0
    %v1736 = vadd.f32 %v293, %v1735
    %v1737 = vpop.f32.mrb[0].mxu0
    %1738 = vmatprep.mubr.f32.mxu0 0.0
    %1739 = vmatmul.mubr.f32.gmra.mrb[0].mxu0 %v663
    %v1740 = vpop.f32.mrb[0].mxu0
    %v1741 = vadd.f32 %v293, %v1740
    %v1742 = vpop.f32.mrb[0].mxu0
    %1743 = vmatprep.mubr.f32.mxu0 0.0
    %1744 = vmatmul.mubr.f32.gmra.mrb[0].mxu0 %v666
    %v1745 = vpop.f32.mrb[0].mxu0
    %v1746 = vadd.f32 %v293, %v1745
    %v1747 = vpop.f32.mrb[0].mxu0
    %1748 = vmatprep.mubr.f32.mxu0 0.0
    %1749 = vmatmul.mubr.f32.gmra.mrb[0].mxu0 %v669
    %v1750 = vpop.f32.mrb[0].mxu0
    %v1751 = vadd.f32 %v293, %v1750
    %v1752 = vpop.f32.mrb[0].mxu0
    %1753 = vmatprep.mubr.f32.mxu0 0.0
    %1754 = vmatmul.mubr.f32.gmra.mrb[0].mxu0 %v672
    %v1755 = vpop.f32.mrb[0].mxu0
    %v1756 = vadd.f32 %v293, %v1755
    %v1757 = vpop.f32.mrb[0].mxu0
    %1758 = vmatprep.mubr.f32.mxu0 0.0
    %1759 = vmatmul.mubr.f32.gmra.mrb[0].mxu0 %v675
    %v1760 = vpop.f32.mrb[0].mxu0
    %v1761 = vadd.f32 %v293, %v1760
    %v1762 = vpop.f32.mrb[0].mxu0
    %1763 = vmatprep.mubr.f32.mxu0 0.0
    %1764 = vmatmul.mubr.f32.gmra.mrb[0].mxu0 %v678
    %v1765 = vpop.f32.mrb[0].mxu0
    %v1766 = vadd.f32 %v293, %v1765
    %v1767 = vpop.f32.mrb[0].mxu0
    %1768 = vmatprep.mubr.f32.mxu0 0.0
    %1769 = vmatmul.mubr.f32.gmra.mrb[0].mxu0 %v681
    %v1770 = vpop.f32.mrb[0].mxu0
    %v1771 = vadd.f32 %v293, %v1770
    %v1772 = vpop.f32.mrb[0].mxu0
    %1773 = vmatprep.mubr.f32.mxu0 0.0
    %1774 = vmatmul.mubr.f32.gmra.mrb[0].mxu0 %v684
    %v1775 = vpop.f32.mrb[0].mxu0
    %v1776 = vadd.f32 %v293, %v1775
    %v1777 = vpop.f32.mrb[0].mxu0
    %1778 = vmatprep.mubr.f32.mxu0 0.0
    %1779 = vmatmul.mubr.f32.gmra.mrb[0].mxu0 %v687
    %v1780 = vpop.f32.mrb[0].mxu0
    %v1781 = vadd.f32 %v293, %v1780
    %v1782 = vpop.f32.mrb[0].mxu0
    %1783 = vmatprep.mubr.f32.mxu0 0.0
    %1784 = vmatmul.mubr.f32.gmra.mrb[0].mxu0 %v690
    %v1785 = vpop.f32.mrb[0].mxu0
    %v1786 = vadd.f32 %v293, %v1785
    %v1787 = vpop.f32.mrb[0].mxu0
    %1788 = vmatprep.mubr.f32.mxu0 0.0
    %1789 = vmatmul.mubr.f32.gmra.mrb[0].mxu0 %v693
    %v1790 = vpop.f32.mrb[0].mxu0
    %v1791 = vadd.f32 %v293, %v1790
    %v1792 = vpop.f32.mrb[0].mxu0
    %1793 = vmatprep.mubr.f32.mxu0 0.0
    %1794 = vmatmul.mubr.f32.gmra.mrb[0].mxu0 %v696
    %v1795 = vpop.f32.mrb[0].mxu0
    %v1796 = vadd.f32 %v293, %v1795
    %v1797 = vpop.f32.mrb[0].mxu0
    %1798 = vmatprep.mubr.f32.mxu0 0.0
    %1799 = vmatmul.mubr.f32.gmra.mrb[0].mxu0 %v699
    %v1800 = vpop.f32.mrb[0].mxu0
    %v1801 = vadd.f32 %v293, %v1800
    %v1802 = vpop.f32.mrb[0].mxu0
    %1803 = vmatprep.mubr.f32.mxu0 0.0
    %1804 = vmatmul.mubr.f32.gmra.mrb[0].mxu0 %v702
    %v1805 = vpop.f32.mrb[0].mxu0
    %v1806 = vadd.f32 %v293, %v1805
    %v1807 = vpop.f32.mrb[0].mxu0
    %1808 = vmatprep.mubr.f32.mxu0 0.0
    %1809 = vmatmul.mubr.f32.gmra.mrb[0].mxu0 %v705
    %v1810 = vpop.f32.mrb[0].mxu0
    %v1811 = vadd.f32 %v293, %v1810
    %v1812 = vpop.f32.mrb[0].mxu0
    %1813 = vmatprep.mubr.f32.mxu0 0.0
    %1814 = vmatmul.mubr.f32.gmra.mrb[0].mxu0 %v708
    %v1815 = vpop.f32.mrb[0].mxu0
    %v1816 = vadd.f32 %v293, %v1815
    %v1817 = vpop.f32.mrb[0].mxu0
    %1818 = vmatprep.mubr.f32.mxu0 0.0
    %1819 = vmatmul.mubr.f32.gmra.mrb[0].mxu0 %v711
    %v1820 = vpop.f32.mrb[0].mxu0
    %v1821 = vadd.f32 %v293, %v1820
    %v1822 = vpop.f32.mrb[0].mxu0
    %1823 = vmatprep.mubr.f32.mxu0 0.0
    %1824 = vmatmul.mubr.f32.gmra.mrb[0].mxu0 %v714
    %v1825 = vpop.f32.mrb[0].mxu0
    %v1826 = vadd.f32 %v293, %v1825
    %v1827 = vpop.f32.mrb[0].mxu0
    %1828 = vmatprep.mubr.f32.mxu0 0.0
    %1829 = vmatmul.mubr.f32.gmra.mrb[0].mxu0 %v717
    %v1830 = vpop.f32.mrb[0].mxu0
    %v1831 = vadd.f32 %v293, %v1830
    %v1832 = vpop.f32.mrb[0].mxu0
    %1833 = vmatprep.mubr.f32.mxu0 0.0
    %1834 = vmatmul.mubr.f32.gmra.mrb[0].mxu0 %v720
    %v1835 = vpop.f32.mrb[0].mxu0
    %v1836 = vadd.f32 %v293, %v1835
    %v1837 = vpop.f32.mrb[0].mxu0
    %1838 = vmatprep.mubr.f32.mxu0 0.0
    %1839 = vmatmul.mubr.f32.gmra.mrb[0].mxu0 %v723
    %v1840 = vpop.f32.mrb[0].mxu0
    %v1841 = vadd.f32 %v293, %v1840
    %v1842 = vpop.f32.mrb[0].mxu0
    %1843 = vmatprep.mubr.f32.mxu0 0.0
    %1844 = vmatmul.mubr.f32.gmra.mrb[0].mxu0 %v726
    %v1845 = vpop.f32.mrb[0].mxu0
    %v1846 = vadd.f32 %v293, %v1845
    %v1847 = vpop.f32.mrb[0].mxu0
    %1848 = vmatprep.mubr.f32.mxu0 0.0
    %1849 = vmatmul.mubr.f32.gmra.mrb[0].mxu0 %v729
    %v1850 = vpop.f32.mrb[0].mxu0
    %v1851 = vadd.f32 %v293, %v1850
    %v1852 = vpop.f32.mrb[0].mxu0
    %1853 = vmatprep.mubr.f32.mxu0 0.0
    %1854 = vmatmul.mubr.f32.gmra.mrb[0].mxu0 %v732
    %v1855 = vpop.f32.mrb[0].mxu0
    %v1856 = vadd.f32 %v293, %v1855
    %v1857 = vpop.f32.mrb[0].mxu0
    %1858 = vmatprep.mubr.f32.mxu0 0.0
    %1859 = vmatmul.mubr.f32.gmra.mrb[0].mxu0 %v735
    %v1860 = vpop.f32.mrb[0].mxu0
    %v1861 = vadd.f32 %v293, %v1860
    %v1862 = vpop.f32.mrb[0].mxu0
    %1863 = vmatprep.mubr.f32.mxu0 0.0
    %1864 = vmatmul.mubr.f32.gmra.mrb[0].mxu0 %v738
    %v1865 = vpop.f32.mrb[0].mxu0
    %v1866 = vadd.f32 %v293, %v1865
    %v1867 = vpop.f32.mrb[0].mxu0
    %1868 = vmatprep.mubr.f32.mxu0 0.0
    %1869 = vmatmul.mubr.f32.gmra.mrb[0].mxu0 %v741
    %v1870 = vpop.f32.mrb[0].mxu0
    %v1871 = vadd.f32 %v293, %v1870
    %v1872 = vpop.f32.mrb[0].mxu0
    %1873 = vmatprep.mubr.f32.mxu0 0.0
    %1874 = vmatmul.mubr.f32.gmra.mrb[0].mxu0 %v744
    %v1875 = vpop.f32.mrb[0].mxu0
    %v1876 = vadd.f32 %v293, %v1875
    %v1877 = vpop.f32.mrb[0].mxu0
    %1878 = vmatprep.mubr.f32.mxu0 0.0
    %1879 = vmatmul.mubr.f32.gmra.mrb[0].mxu0 %v747
    %v1880 = vpop.f32.mrb[0].mxu0
    %v1881 = vadd.f32 %v293, %v1880
    %v1882 = vpop.f32.mrb[0].mxu0
    %1883 = vmatprep.mubr.f32.mxu0 0.0
    %1884 = vmatmul.mubr.f32.gmra.mrb[0].mxu0 %v750
    %v1885 = vpop.f32.mrb[0].mxu0
    %v1886 = vadd.f32 %v293, %v1885
    %v1887 = vpop.f32.mrb[0].mxu0
    %1888 = vmatprep.mubr.f32.mxu0 0.0
    %1889 = vmatmul.mubr.f32.gmra.mrb[0].mxu0 %v753
    %v1890 = vpop.f32.mrb[0].mxu0
    %v1891 = vadd.f32 %v293, %v1890
    %v1892 = vpop.f32.mrb[0].mxu0
    %1893 = vmatprep.mubr.f32.mxu0 0.0
    %1894 = vmatmul.mubr.f32.gmra.mrb[0].mxu0 %v756
    %v1895 = vpop.f32.mrb[0].mxu0
    %v1896 = vadd.f32 %v293, %v1895
    %v1897 = vpop.f32.mrb[0].mxu0
    %1898 = vmatprep.mubr.f32.mxu0 0.0
    %1899 = vmatmul.mubr.f32.gmra.mrb[0].mxu0 %v759
    %v1900 = vpop.f32.mrb[0].mxu0
    %v1901 = vadd.f32 %v293, %v1900
    %v1902 = vpop.f32.mrb[0].mxu0
    %1903 = vmatprep.mubr.f32.mxu0 0.0
    %1904 = vmatmul.mubr.f32.gmra.mrb[0].mxu0 %v762
    %v1905 = vpop.f32.mrb[0].mxu0
    %v1906 = vadd.f32 %v293, %v1905
    %v1907 = vpop.f32.mrb[0].mxu0
    %1908 = vmatprep.mubr.f32.mxu0 0.0
    %1909 = vmatmul.mubr.f32.gmra.mrb[0].mxu0 %v765
    %v1910 = vpop.f32.mrb[0].mxu0
    %v1911 = vadd.f32 %v293, %v1910
    %v1912 = vpop.f32.mrb[0].mxu0
    %1913 = vmatprep.mubr.f32.mxu0 0.0
    %1914 = vmatmul.mubr.f32.gmra.mrb[0].mxu0 %v768
    %v1915 = vpop.f32.mrb[0].mxu0
    %v1916 = vadd.f32 %v293, %v1915
    %v1917 = vpop.f32.mrb[0].mxu0
    %1918 = vmatprep.mubr.f32.mxu0 0.0
    %1919 = vmatmul.mubr.f32.gmra.mrb[0].mxu0 %v771
    %v1920 = vpop.f32.mrb[0].mxu0
    %v1921 = vadd.f32 %v293, %v1920
    %v1922 = vpop.f32.mrb[0].mxu0
    %1923 = vmatprep.mubr.f32.mxu0 0.0
    %1924 = vmatmul.mubr.f32.gmra.mrb[0].mxu0 %v774
    %v1925 = vpop.f32.mrb[0].mxu0
    %v1926 = vadd.f32 %v293, %v1925
    %v1927 = vpop.f32.mrb[0].mxu0
    %1928 = vmatprep.mubr.f32.mxu0 0.0
    %1929 = vmatmul.mubr.f32.gmra.mrb[0].mxu0 %v777
    %v1930 = vpop.f32.mrb[0].mxu0
    %v1931 = vadd.f32 %v293, %v1930
    %v1932 = vpop.f32.mrb[0].mxu0
    %1933 = vmatprep.mubr.f32.mxu0 0.0
    %1934 = vmatmul.mubr.f32.gmra.mrb[0].mxu0 %v780
    %v1935 = vpop.f32.mrb[0].mxu0
    %v1936 = vadd.f32 %v293, %v1935
    %v1937 = vpop.f32.mrb[0].mxu0
    %1938 = vmatprep.mubr.f32.mxu0 0.0
    %1939 = vmatmul.mubr.f32.gmra.mrb[0].mxu0 %v783
    %v1940 = vpop.f32.mrb[0].mxu0
    %v1941 = vadd.f32 %v293, %v1940
    %v1942 = vpop.f32.mrb[0].mxu0
    %1943 = vmatprep.mubr.f32.mxu0 0.0
    %1944 = vmatmul.mubr.f32.gmra.mrb[0].mxu0 %v786
    %v1945 = vpop.f32.mrb[0].mxu0
    %v1946 = vadd.f32 %v293, %v1945
    %v1947 = vpop.f32.mrb[0].mxu0
    %1948 = vmatprep.mubr.f32.mxu0 0.0
    %1949 = vmatmul.mubr.f32.gmra.mrb[0].mxu0 %v789
    %v1950 = vpop.f32.mrb[0].mxu0
    %v1951 = vadd.f32 %v293, %v1950
    %v1952 = vpop.f32.mrb[0].mxu0
    %1953 = vmatprep.mubr.f32.mxu0 0.0
    %1954 = vmatmul.mubr.f32.gmra.mrb[0].mxu0 %v792
    %v1955 = vpop.f32.mrb[0].mxu0
    %v1956 = vadd.f32 %v293, %v1955
    %v1957 = vpop.f32.mrb[0].mxu0
    %1958 = vmatprep.mubr.f32.mxu0 0.0
    %1959 = vmatmul.mubr.f32.gmra.mrb[0].mxu0 %v795
    %v1960 = vpop.f32.mrb[0].mxu0
    %v1961 = vadd.f32 %v293, %v1960
    %v1962 = vpop.f32.mrb[0].mxu0
    %1963 = vmatprep.mubr.f32.mxu0 0.0
    %1964 = vmatmul.mubr.f32.gmra.mrb[0].mxu0 %v798
    %v1965 = vpop.f32.mrb[0].mxu0
    %v1966 = vadd.f32 %v293, %v1965
    %v1967 = vpop.f32.mrb[0].mxu0
    %1968 = vmatprep.mubr.f32.mxu0 0.0
    %1969 = vmatmul.mubr.f32.gmra.mrb[0].mxu0 %v801
    %v1970 = vpop.f32.mrb[0].mxu0
    %v1971 = vadd.f32 %v293, %v1970
    %v1972 = vpop.f32.mrb[0].mxu0
    %1973 = vmatprep.mubr.f32.mxu0 0.0
    %1974 = vmatmul.mubr.f32.gmra.mrb[0].mxu0 %v804
    %v1975 = vpop.f32.mrb[0].mxu0
    %v1976 = vadd.f32 %v293, %v1975
    %v1977 = vpop.f32.mrb[0].mxu0
    %1978 = vmatprep.mubr.f32.mxu0 0.0
    %1979 = vmatmul.mubr.f32.gmra.mrb[0].mxu0 %v807
    %v1980 = vpop.f32.mrb[0].mxu0
    %v1981 = vadd.f32 %v293, %v1980
    %v1982 = vpop.f32.mrb[0].mxu0
    %1983 = vmatprep.mubr.f32.mxu0 0.0
    %1984 = vmatmul.mubr.f32.gmra.mrb[0].mxu0 %v810
    %v1985 = vpop.f32.mrb[0].mxu0
    %v1986 = vadd.f32 %v293, %v1985
    %v1987 = vpop.f32.mrb[0].mxu0
    %1988 = vmatprep.mubr.f32.mxu0 0.0
    %1989 = vmatmul.mubr.f32.gmra.mrb[0].mxu0 %v813
    %v1990 = vpop.f32.mrb[0].mxu0
    %v1991 = vadd.f32 %v293, %v1990
    %v1992 = vpop.f32.mrb[0].mxu0
    %1993 = vmatprep.mubr.f32.mxu0 0.0
    %1994 = vmatmul.mubr.f32.gmra.mrb[0].mxu0 %v816
    %v1995 = vpop.f32.mrb[0].mxu0
    %v1996 = vadd.f32 %v293, %v1995
    %v1997 = vpop.f32.mrb[0].mxu0
    %1998 = vmatprep.mubr.f32.mxu0 0.0
    %1999 = vmatmul.mubr.f32.gmra.mrb[0].mxu0 %v819
    %v2000 = vpop.f32.mrb[0].mxu0
    %v2001 = vadd.f32 %v293, %v2000
    %v2002 = vpop.f32.mrb[0].mxu0
    %2003 = vmatprep.mubr.f32.mxu0 0.0
    %2004 = vmatmul.mubr.f32.gmra.mrb[0].mxu0 %v822
    %v2005 = vpop.f32.mrb[0].mxu0
    %v2006 = vadd.f32 %v293, %v2005
    %v2007 = vpop.f32.mrb[0].mxu0
    %2008 = vmatprep.mubr.f32.mxu0 0.0
    %2009 = vmatmul.mubr.f32.gmra.mrb[0].mxu0 %v825
    %v2010 = vpop.f32.mrb[0].mxu0
    %v2011 = vadd.f32 %v293, %v2010
    %v2012 = vpop.f32.mrb[0].mxu0
    %2013 = vmatprep.mubr.f32.mxu0 0.0
    %2014 = vmatmul.mubr.f32.gmra.mrb[0].mxu0 %v828
    %v2015 = vpop.f32.mrb[0].mxu0
    %v2016 = vadd.f32 %v293, %v2015
    %v2017 = vpop.f32.mrb[0].mxu0
    %2018 = vmatprep.mubr.f32.mxu0 0.0
    %2019 = vmatmul.mubr.f32.gmra.mrb[0].mxu0 %v831
    %v2020 = vpop.f32.mrb[0].mxu0
    %v2021 = vadd.f32 %v293, %v2020
    %v2022 = vpop.f32.mrb[0].mxu0
    %2023 = vmatprep.mubr.f32.mxu0 0.0
    %2024 = vmatmul.mubr.f32.gmra.mrb[0].mxu0 %v834
    %v2025 = vpop.f32.mrb[0].mxu0
    %v2026 = vadd.f32 %v293, %v2025
    %v2027 = vpop.f32.mrb[0].mxu0
    %2028 = vmatprep.mubr.f32.mxu0 0.0
    %2029 = vmatmul.mubr.f32.gmra.mrb[0].mxu0 %v837
    %v2030 = vpop.f32.mrb[0].mxu0
    %v2031 = vadd.f32 %v293, %v2030
    %v2032 = vpop.f32.mrb[0].mxu0
    %2033 = vmatprep.mubr.f32.mxu0 0.0
    %2034 = vmatmul.mubr.f32.gmra.mrb[0].mxu0 %v840
    %v2035 = vpop.f32.mrb[0].mxu0
    %v2036 = vadd.f32 %v293, %v2035
    %v2037 = vpop.f32.mrb[0].mxu0
    %2038 = vmatprep.mubr.f32.mxu0 0.0
    %2039 = vmatmul.mubr.f32.gmra.mrb[0].mxu0 %v843
    %v2040 = vpop.f32.mrb[0].mxu0
    %v2041 = vadd.f32 %v293, %v2040
    %v2042 = vpop.f32.mrb[0].mxu0
    %2043 = vmatprep.mubr.f32.mxu0 0.0
    %2044 = vmatmul.mubr.f32.gmra.mrb[0].mxu0 %v846
    %v2045 = vpop.f32.mrb[0].mxu0
    %v2046 = vadd.f32 %v293, %v2045
    %v2047 = vpop.f32.mrb[0].mxu0
    %2048 = vmatprep.mubr.f32.mxu0 0.0
    %2049 = vmatmul.mubr.f32.gmra.mrb[0].mxu0 %v849
    %v2050 = vpop.f32.mrb[0].mxu0
    %v2051 = vadd.f32 %v293, %v2050
    %v2052 = vpop.f32.mrb[0].mxu0
    %2053 = vmatprep.mubr.f32.mxu0 0.0
    %2054 = vmatmul.mubr.f32.gmra.mrb[0].mxu0 %v852
    %v2055 = vpop.f32.mrb[0].mxu0
    %v2056 = vadd.f32 %v293, %v2055
    %v2057 = vpop.f32.mrb[0].mxu0
    %2058 = vmatprep.mubr.f32.mxu0 0.0
    %2059 = vmatmul.mubr.f32.gmra.mrb[0].mxu0 %v855
    %v2060 = vpop.f32.mrb[0].mxu0
    %v2061 = vadd.f32 %v293, %v2060
    %v2062 = vpop.f32.mrb[0].mxu0
    %2063 = vmatprep.mubr.f32.mxu0 0.0
    %2064 = vmatmul.mubr.f32.gmra.mrb[0].mxu0 %v858
    %v2065 = vpop.f32.mrb[0].mxu0
    %v2066 = vadd.f32 %v293, %v2065
    %v2067 = vpop.f32.mrb[0].mxu0
    %2068 = vmatprep.mubr.f32.mxu0 0.0
    %2069 = vmatmul.mubr.f32.gmra.mrb[0].mxu0 %v861
    %v2070 = vpop.f32.mrb[0].mxu0
    %v2071 = vadd.f32 %v293, %v2070
    %v2072 = vpop.f32.mrb[0].mxu0
    %2073 = vmatprep.mubr.f32.mxu0 0.0
    %2074 = vmatmul.mubr.f32.gmra.mrb[0].mxu0 %v864
    %v2075 = vpop.f32.mrb[0].mxu0
    %v2076 = vadd.f32 %v293, %v2075
    %v2077 = vpop.f32.mrb[0].mxu0
    %2078 = vmatprep.mubr.f32.mxu0 0.0
    %2079 = vmatmul.mubr.f32.gmra.mrb[0].mxu0 %v867
    %v2080 = vpop.f32.mrb[0].mxu0
    %v2081 = vadd.f32 %v293, %v2080
    %v2082 = vpop.f32.mrb[0].mxu0
    %2083 = vmatprep.mubr.f32.mxu0 0.0
    %2084 = vmatmul.mubr.f32.gmra.mrb[0].mxu0 %v870
    %v2085 = vpop.f32.mrb[0].mxu0
    %v2086 = vadd.f32 %v293, %v2085
    %v2087 = vpop.f32.mrb[0].mxu0
    %2088 = vmatprep.mubr.f32.mxu0 0.0
    %2089 = vmatmul.mubr.f32.gmra.mrb[0].mxu0 %v873
    %v2090 = vpop.f32.mrb[0].mxu0
    %v2091 = vadd.f32 %v293, %v2090
    %v2092 = vpop.f32.mrb[0].mxu0
    %2093 = vmatprep.mubr.f32.mxu0 0.0
    %2094 = vmatmul.mubr.f32.gmra.mrb[0].mxu0 %v876
    %v2095 = vpop.f32.mrb[0].mxu0
    %v2096 = vadd.f32 %v293, %v2095
    %v2097 = vpop.f32.mrb[0].mxu0
    %2098 = vmatprep.mubr.f32.mxu0 0.0
    %2099 = vmatmul.mubr.f32.gmra.mrb[0].mxu0 %v879
    %v2100 = vpop.f32.mrb[0].mxu0
    %v2101 = vadd.f32 %v293, %v2100
    %v2102 = vpop.f32.mrb[0].mxu0
    %2103 = vmatprep.mubr.f32.mxu0 0.0
    %2104 = vmatmul.mubr.f32.gmra.mrb[0].mxu0 %v882
    %v2105 = vpop.f32.mrb[0].mxu0
    %v2106 = vadd.f32 %v293, %v2105
    %v2107 = vpop.f32.mrb[0].mxu0
    %2108 = vmatprep.mubr.f32.mxu0 0.0
    %2109 = vmatmul.mubr.f32.gmra.mrb[0].mxu0 %v885
    %v2110 = vpop.f32.mrb[0].mxu0
    %v2111 = vadd.f32 %v293, %v2110
    %v2112 = vpop.f32.mrb[0].mxu0
    %2113 = vmatprep.mubr.f32.mxu0 0.0
    %2114 = vmatmul.mubr.f32.gmra.mrb[0].mxu0 %v888
    %v2115 = vpop.f32.mrb[0].mxu0
    %v2116 = vadd.f32 %v293, %v2115
    %v2117 = vpop.f32.mrb[0].mxu0
    %2118 = vmatprep.mubr.f32.mxu0 0.0
    %2119 = vmatmul.mubr.f32.gmra.mrb[0].mxu0 %v891
    %v2120 = vpop.f32.mrb[0].mxu0
    %v2121 = vadd.f32 %v293, %v2120
    %v2122 = vpop.f32.mrb[0].mxu0
    %2123 = vmatprep.mubr.f32.mxu0 0.0
    %2124 = vmatmul.mubr.f32.gmra.mrb[0].mxu0 %v894
    %v2125 = vpop.f32.mrb[0].mxu0
    %v2126 = vadd.f32 %v293, %v2125
    %v2127 = vpop.f32.mrb[0].mxu0
    %2128 = vmatprep.mubr.f32.mxu0 0.0
    %2129 = vmatmul.mubr.f32.gmra.mrb[0].mxu0 %v897
    %v2130 = vpop.f32.mrb[0].mxu0
    %v2131 = vadd.f32 %v293, %v2130
    %v2132 = vpop.f32.mrb[0].mxu0
    %2133 = vmatprep.mubr.f32.mxu0 0.0
    %2134 = vmatmul.mubr.f32.gmra.mrb[0].mxu0 %v900
    %v2135 = vpop.f32.mrb[0].mxu0
    %v2136 = vadd.f32 %v293, %v2135
    %v2137 = vpop.f32.mrb[0].mxu0
    %2138 = vmatprep.mubr.f32.mxu0 0.0
    %2139 = vmatmul.mubr.f32.gmra.mrb[0].mxu0 %v903
    %v2140 = vpop.f32.mrb[0].mxu0
    %v2141 = vadd.f32 %v293, %v2140
    %v2142 = vpop.f32.mrb[0].mxu0
    %2143 = vmatprep.mubr.f32.mxu0 0.0
    %2144 = vmatmul.mubr.f32.gmra.mrb[0].mxu0 %v906
    %v2145 = vpop.f32.mrb[0].mxu0
    %v2146 = vadd.f32 %v293, %v2145
    %v2147 = vpop.f32.mrb[0].mxu0
    %2148 = vmatprep.mubr.f32.mxu0 0.0
    %2149 = vmatmul.mubr.f32.gmra.mrb[0].mxu0 %v909
    %v2150 = vpop.f32.mrb[0].mxu0
    %v2151 = vadd.f32 %v293, %v2150
    %v2152 = vpop.f32.mrb[0].mxu0
    %2153 = vmatprep.mubr.f32.mxu0 0.0
    %2154 = vmatmul.mubr.f32.gmra.mrb[0].mxu0 %v912
    %v2155 = vpop.f32.mrb[0].mxu0
    %v2156 = vadd.f32 %v293, %v2155
    %v2157 = vpop.f32.mrb[0].mxu0
    %2158 = vmatprep.mubr.f32.mxu0 0.0
    %2159 = vmatmul.mubr.f32.gmra.mrb[0].mxu0 %v915
    %v2160 = vpop.f32.mrb[0].mxu0
    %v2161 = vadd.f32 %v293, %v2160
    %v2162 = vpop.f32.mrb[0].mxu0
    %2163 = vmatprep.mubr.f32.mxu0 0.0
    %2164 = vmatmul.mubr.f32.gmra.mrb[0].mxu0 %v918
    %v2165 = vpop.f32.mrb[0].mxu0
    %v2166 = vadd.f32 %v293, %v2165
    %v2167 = vpop.f32.mrb[0].mxu0
    %2168 = vmatprep.mubr.f32.mxu0 0.0
    %2169 = vmatmul.mubr.f32.gmra.mrb[0].mxu0 %v921
    %v2170 = vpop.f32.mrb[0].mxu0
    %v2171 = vadd.f32 %v293, %v2170
    %v2172 = vpop.f32.mrb[0].mxu0
    %2173 = vmatprep.mubr.f32.mxu0 0.0
    %2174 = vmatmul.mubr.f32.gmra.mrb[0].mxu0 %v924
    %v2175 = vpop.f32.mrb[0].mxu0
    %v2176 = vadd.f32 %v293, %v2175
    %v2177 = vpop.f32.mrb[0].mxu0
    %2178 = vmatprep.mubr.f32.mxu0 0.0
    %2179 = vmatmul.mubr.f32.gmra.mrb[0].mxu0 %v927
    %v2180 = vpop.f32.mrb[0].mxu0
    %v2181 = vadd.f32 %v293, %v2180
    %v2182 = vpop.f32.mrb[0].mxu0
    %2183 = vmatprep.mubr.f32.mxu0 0.0
    %2184 = vmatmul.mubr.f32.gmra.mrb[0].mxu0 %v930
    %v2185 = vpop.f32.mrb[0].mxu0
    %v2186 = vadd.f32 %v293, %v2185
    %v2187 = vpop.f32.mrb[0].mxu0
    %2188 = vmatprep.mubr.f32.mxu0 0.0
    %2189 = vmatmul.mubr.f32.gmra.mrb[0].mxu0 %v933
    %v2190 = vpop.f32.mrb[0].mxu0
    %v2191 = vadd.f32 %v293, %v2190
    %v2192 = vpop.f32.mrb[0].mxu0
    %2193 = vmatprep.mubr.f32.mxu0 0.0
    %2194 = vmatmul.mubr.f32.gmra.mrb[0].mxu0 %v936
    %v2195 = vpop.f32.mrb[0].mxu0
    %v2196 = vadd.f32 %v293, %v2195
    %v2197 = vpop.f32.mrb[0].mxu0
    %2198 = vmatprep.mubr.f32.mxu0 0.0
    %2199 = vmatmul.mubr.f32.gmra.mrb[0].mxu0 %v939
    %v2200 = vpop.f32.mrb[0].mxu0
    %v2201 = vadd.f32 %v293, %v2200
    %v2202 = vpop.f32.mrb[0].mxu0
    %2203 = vmatprep.mubr.f32.mxu0 0.0
    %2204 = vmatmul.mubr.f32.gmra.mrb[0].mxu0 %v942
    %v2205 = vpop.f32.mrb[0].mxu0
    %v2206 = vadd.f32 %v293, %v2205
    %v2207 = vpop.f32.mrb[0].mxu0
    %2208 = vmatprep.mubr.f32.mxu0 0.0
    %2209 = vmatmul.mubr.f32.gmra.mrb[0].mxu0 %v945
    %v2210 = vpop.f32.mrb[0].mxu0
    %v2211 = vadd.f32 %v293, %v2210
    %v2212 = vpop.f32.mrb[0].mxu0
    %2213 = vmatprep.mubr.f32.mxu0 0.0
    %2214 = vmatmul.mubr.f32.gmra.mrb[0].mxu0 %v948
    %v2215 = vpop.f32.mrb[0].mxu0
    %v2216 = vadd.f32 %v293, %v2215
    %v2217 = vpop.f32.mrb[0].mxu0
    %2218 = vmatprep.mubr.f32.mxu0 0.0
    %2219 = vmatmul.mubr.f32.gmra.mrb[0].mxu0 %v951
    %v2220 = vpop.f32.mrb[0].mxu0
    %v2221 = vadd.f32 %v293, %v2220
    %v2222 = vpop.f32.mrb[0].mxu0
    %2223 = vmatprep.mubr.f32.mxu0 0.0
    %2224 = vmatmul.mubr.f32.gmra.mrb[0].mxu0 %v954
    %v2225 = vpop.f32.mrb[0].mxu0
    %v2226 = vadd.f32 %v293, %v2225
    %v2227 = vpop.f32.mrb[0].mxu0
    %2228 = vmatprep.mubr.f32.mxu0 0.0
    %2229 = vmatmul.mubr.f32.gmra.mrb[0].mxu0 %v957
    %v2230 = vpop.f32.mrb[0].mxu0
    %v2231 = vadd.f32 %v293, %v2230
    %v2232 = vpop.f32.mrb[0].mxu0
    %2233 = vmatprep.mubr.f32.mxu0 0.0
    %2234 = vmatmul.mubr.f32.gmra.mrb[0].mxu0 %v960
    %v2235 = vpop.f32.mrb[0].mxu0
    %v2236 = vadd.f32 %v293, %v2235
    %v2237 = vpop.f32.mrb[0].mxu0
    %2238 = vmatprep.mubr.f32.mxu0 0.0
    %2239 = vmatmul.mubr.f32.gmra.mrb[0].mxu0 %v963
    %v2240 = vpop.f32.mrb[0].mxu0
    %v2241 = vadd.f32 %v293, %v2240
    %v2242 = vpop.f32.mrb[0].mxu0
    %2243 = vmatprep.mubr.f32.mxu0 0.0
    %2244 = vmatmul.mubr.f32.gmra.mrb[0].mxu0 %v966
    %v2245 = vpop.f32.mrb[0].mxu0
    %v2246 = vadd.f32 %v293, %v2245
    %v2247 = vpop.f32.mrb[0].mxu0
    %2248 = vmatprep.mubr.f32.mxu0 0.0
    %2249 = vmatmul.mubr.f32.gmra.mrb[0].mxu0 %v969
    %v2250 = vpop.f32.mrb[0].mxu0
    %v2251 = vadd.f32 %v293, %v2250
    %v2252 = vpop.f32.mrb[0].mxu0
    %2253 = vmatprep.mubr.f32.mxu0 0.0
    %2254 = vmatmul.mubr.f32.gmra.mrb[0].mxu0 %v972
    %v2255 = vpop.f32.mrb[0].mxu0
    %v2256 = vadd.f32 %v293, %v2255
    %v2257 = vpop.f32.mrb[0].mxu0
    %2258 = vmatprep.mubr.f32.mxu0 0.0
    %2259 = vmatmul.mubr.f32.gmra.mrb[0].mxu0 %v975
    %v2260 = vpop.f32.mrb[0].mxu0
    %v2261 = vadd.f32 %v293, %v2260
    %v2262 = vpop.f32.mrb[0].mxu0
    %2263 = vmatprep.mubr.f32.mxu0 0.0
    %2264 = vmatmul.mubr.f32.gmra.mrb[0].mxu0 %v978
    %v2265 = vpop.f32.mrb[0].mxu0
    %v2266 = vadd.f32 %v293, %v2265
    %v2267 = vpop.f32.mrb[0].mxu0
    %2268 = vmatprep.mubr.f32.mxu0 0.0
    %2269 = vmatmul.mubr.f32.gmra.mrb[0].mxu0 %v981
    %v2270 = vpop.f32.mrb[0].mxu0
    %v2271 = vadd.f32 %v293, %v2270
    %v2272 = vpop.f32.mrb[0].mxu0
    %2273 = vmatprep.mubr.f32.mxu0 0.0
    %2274 = vmatmul.mubr.f32.gmra.mrb[0].mxu0 %v984
    %v2275 = vpop.f32.mrb[0].mxu0
    %v2276 = vadd.f32 %v293, %v2275
    %v2277 = vpop.f32.mrb[0].mxu0
    %2278 = vmatprep.mubr.f32.mxu0 0.0
    %2279 = vmatmul.mubr.f32.gmra.mrb[0].mxu0 %v987
    %v2280 = vpop.f32.mrb[0].mxu0
    %v2281 = vadd.f32 %v293, %v2280
    %v2282 = vpop.f32.mrb[0].mxu0
    %2283 = vmatprep.mubr.f32.mxu0 0.0
    %2284 = vmatmul.mubr.f32.gmra.mrb[0].mxu0 %v990
    %v2285 = vpop.f32.mrb[0].mxu0
    %v2286 = vadd.f32 %v293, %v2285
    %v2287 = vpop.f32.mrb[0].mxu0
    %2288 = vmatprep.mubr.f32.mxu0 0.0
    %2289 = vmatmul.mubr.f32.gmra.mrb[0].mxu0 %v993
    %v2290 = vpop.f32.mrb[0].mxu0
    %v2291 = vadd.f32 %v293, %v2290
    %v2292 = vpop.f32.mrb[0].mxu0
    %2293 = vmatprep.mubr.f32.mxu0 0.0
    %2294 = vmatmul.mubr.f32.gmra.mrb[0].mxu0 %v996
    %v2295 = vpop.f32.mrb[0].mxu0
    %v2296 = vadd.f32 %v293, %v2295
    %v2297 = vpop.f32.mrb[0].mxu0
    %2298 = vmatprep.mubr.f32.mxu0 0.0
    %2299 = vmatmul.mubr.f32.gmra.mrb[0].mxu0 %v999
    %v2300 = vpop.f32.mrb[0].mxu0
    %v2301 = vadd.f32 %v293, %v2300
    %v2302 = vpop.f32.mrb[0].mxu0
    %2303 = vmatprep.mubr.f32.mxu0 0.0
    %2304 = vmatmul.mubr.f32.gmra.mrb[0].mxu0 %v1002
    %v2305 = vpop.f32.mrb[0].mxu0
    %v2306 = vadd.f32 %v293, %v2305
    %v2307 = vpop.f32.mrb[0].mxu0
    %2308 = vmatprep.mubr.f32.mxu0 0.0
    %2309 = vmatmul.mubr.f32.gmra.mrb[0].mxu0 %v1005
    %v2310 = vpop.f32.mrb[0].mxu0
    %v2311 = vadd.f32 %v293, %v2310
    %v2312 = vpop.f32.mrb[0].mxu0
    %2313 = vmatprep.mubr.f32.mxu0 0.0
    %2314 = vmatmul.mubr.f32.gmra.mrb[0].mxu0 %v1008
    %v2315 = vpop.f32.mrb[0].mxu0
    %v2316 = vadd.f32 %v293, %v2315
    %v2317 = vpop.f32.mrb[0].mxu0
    %2318 = vmatprep.mubr.f32.mxu0 0.0
    %2319 = vmatmul.mubr.f32.gmra.mrb[0].mxu0 %v1011
    %v2320 = vpop.f32.mrb[0].mxu0
    %v2321 = vadd.f32 %v293, %v2320
    %v2322 = vpop.f32.mrb[0].mxu0
    %2323 = vmatprep.mubr.f32.mxu0 0.0
    %2324 = vmatmul.mubr.f32.gmra.mrb[0].mxu0 %v1014
    %v2325 = vpop.f32.mrb[0].mxu0
    %v2326 = vadd.f32 %v293, %v2325
    %v2327 = vpop.f32.mrb[0].mxu0
    %2328 = vmatprep.mubr.f32.mxu0 0.0
    %2329 = vmatmul.mubr.f32.gmra.mrb[0].mxu0 %v1017
    %v2330 = vpop.f32.mrb[0].mxu0
    %v2331 = vadd.f32 %v293, %v2330
    %v2332 = vpop.f32.mrb[0].mxu0
    %2333 = vmatprep.mubr.f32.mxu0 0.0
    %2334 = vmatmul.mubr.f32.gmra.mrb[0].mxu0 %v1020
    %v2335 = vpop.f32.mrb[0].mxu0
    %v2336 = vadd.f32 %v293, %v2335
    %v2337 = vpop.f32.mrb[0].mxu0
    %2338 = vmatprep.mubr.f32.mxu0 0.0
    %2339 = vmatmul.mubr.f32.gmra.mrb[0].mxu0 %v1023
    %v2340 = vpop.f32.mrb[0].mxu0
    %v2341 = vadd.f32 %v293, %v2340
    %v2342 = vpop.f32.mrb[0].mxu0
    %2343 = vmatprep.mubr.f32.mxu0 0.0
    %2344 = vmatmul.mubr.f32.gmra.mrb[0].mxu0 %v1026
    %v2345 = vpop.f32.mrb[0].mxu0
    %v2346 = vadd.f32 %v293, %v2345
    %v2347 = vpop.f32.mrb[0].mxu0
    %2348 = vmatprep.mubr.f32.mxu0 0.0
    %2349 = vmatmul.mubr.f32.gmra.mrb[0].mxu0 %v1029
    %v2350 = vpop.f32.mrb[0].mxu0
    %v2351 = vadd.f32 %v293, %v2350
    %v2352 = vpop.f32.mrb[0].mxu0
    %2353 = vmatprep.mubr.f32.mxu0 0.0
    %2354 = vmatmul.mubr.f32.gmra.mrb[0].mxu0 %v1032
    %v2355 = vpop.f32.mrb[0].mxu0
    %v2356 = vadd.f32 %v293, %v2355
    %v2357 = vpop.f32.mrb[0].mxu0
    %2358 = vmatprep.mubr.f32.mxu0 0.0
    %2359 = vmatmul.mubr.f32.gmra.mrb[0].mxu0 %v1035
    %v2360 = vpop.f32.mrb[0].mxu0
    %v2361 = vadd.f32 %v293, %v2360
    %v2362 = vpop.f32.mrb[0].mxu0
    %2363 = vmatprep.mubr.f32.mxu0 0.0
    %2364 = vmatmul.mubr.f32.gmra.mrb[0].mxu0 %v1038
    %v2365 = vpop.f32.mrb[0].mxu0
    %v2366 = vadd.f32 %v293, %v2365
    %v2367 = vpop.f32.mrb[0].mxu0
    %2368 = vmatprep.mubr.f32.mxu0 0.0
    %2369 = vmatmul.mubr.f32.gmra.mrb[0].mxu0 %v1041
    %v2370 = vpop.f32.mrb[0].mxu0
    %v2371 = vadd.f32 %v293, %v2370
    %v2372 = vpop.f32.mrb[0].mxu0
    %2373 = vmatprep.mubr.f32.mxu0 0.0
    %2374 = vmatmul.mubr.f32.gmra.mrb[0].mxu0 %v1044
    %v2375 = vpop.f32.mrb[0].mxu0
    %v2376 = vadd.f32 %v293, %v2375
    %v2377 = vpop.f32.mrb[0].mxu0
    %2378 = vmatprep.mubr.f32.mxu0 0.0
    %2379 = vmatmul.mubr.f32.gmra.mrb[0].mxu0 %v1047
    %v2380 = vpop.f32.mrb[0].mxu0
    %v2381 = vadd.f32 %v293, %v2380
    %v2382 = vpop.f32.mrb[0].mxu0
    %2383 = vmatprep.mubr.f32.mxu0 0.0
    %2384 = vmatmul.mubr.f32.gmra.mrb[0].mxu0 %v1050
    %v2385 = vpop.f32.mrb[0].mxu0
    %v2386 = vadd.f32 %v293, %v2385
    %v2387 = vpop.f32.mrb[0].mxu0
    %2388 = vmatprep.mubr.f32.mxu0 0.0
    %2389 = vmatmul.mubr.f32.gmra.mrb[0].mxu0 %v1053
    %v2390 = vpop.f32.mrb[0].mxu0
    %v2391 = vadd.f32 %v293, %v2390
    %v2392 = vpop.f32.mrb[0].mxu0
    %2393 = vmatprep.mubr.f32.mxu0 0.0
    %2394 = vmatmul.mubr.f32.gmra.mrb[0].mxu0 %v1056
    %v2395 = vpop.f32.mrb[0].mxu0
    %v2396 = vadd.f32 %v293, %v2395
    %v2397 = vpop.f32.mrb[0].mxu0
    %2398 = vmatprep.mubr.f32.mxu0 0.0
    %2399 = vmatmul.mubr.f32.gmra.mrb[0].mxu0 %v1059
    %v2400 = vpop.f32.mrb[0].mxu0
    %v2401 = vadd.f32 %v293, %v2400
    %v2402 = vpop.f32.mrb[0].mxu0
    %2403 = vmatprep.mubr.f32.mxu0 0.0
    %2404 = vmatmul.mubr.f32.gmra.mrb[0].mxu0 %v1062
    %v2405 = vpop.f32.mrb[0].mxu0
    %v2406 = vadd.f32 %v293, %v2405
    %v2407 = vpop.f32.mrb[0].mxu0
    %2408 = vdwg.mxu0
    %v2409 = vtanh.pop %v1131
    %v2410 = vtanh.pop %v1136
    %v2411 = vtanh.pop %v1141
    %v2412 = vtanh.pop %v1146
    %v2413 = vtanh.pop %v1151
    %v2414 = vtanh.pop %v1156
    %v2415 = vtanh.pop %v1161
    %v2416 = vtanh.pop %v1166
    %v2417 = vtanh.pop %v1171
    %v2418 = vtanh.pop %v1176
    %v2419 = vtanh.pop %v1181
    %v2420 = vtanh.pop %v1186
    %v2421 = vtanh.pop %v1191
    %v2422 = vtanh.pop %v1196
    %v2423 = vtanh.pop %v1201
    %v2424 = vtanh.pop %v1206
    %v2425 = vtanh.pop %v1211
    %v2426 = vtanh.pop %v1216
    %v2427 = vtanh.pop %v1221
    %v2428 = vtanh.pop %v1226
    %v2429 = vtanh.pop %v1231
    %v2430 = vtanh.pop %v1236
    %v2431 = vtanh.pop %v1241
    %v2432 = vtanh.pop %v1246
    %v2433 = vtanh.pop %v1251
    %v2434 = vtanh.pop %v1256
    %v2435 = vtanh.pop %v1261
    %v2436 = vtanh.pop %v1266
    %v2437 = vtanh.pop %v1271
    %v2438 = vtanh.pop %v1276
    %v2439 = vtanh.pop %v1281
    %v2440 = vtanh.pop %v1286
    %v2441 = vtanh.pop %v1291
    %v2442 = vtanh.pop %v1296
    %v2443 = vtanh.pop %v1301
    %v2444 = vtanh.pop %v1306
    %v2445 = vtanh.pop %v1311
    %v2446 = vtanh.pop %v1316
    %v2447 = vtanh.pop %v1321
    %v2448 = vtanh.pop %v1326
    %v2449 = vtanh.pop %v1331
    %v2450 = vtanh.pop %v1336
    %v2451 = vtanh.pop %v1341
    %v2452 = vtanh.pop %v1346
    %v2453 = vtanh.pop %v1351
    %v2454 = vtanh.pop %v1356
    %v2455 = vtanh.pop %v1361
    %v2456 = vtanh.pop %v1366
    %v2457 = vtanh.pop %v1371
    %v2458 = vtanh.pop %v1376
    %v2459 = vtanh.pop %v1381
    %v2460 = vtanh.pop %v1386
    %v2461 = vtanh.pop %v1391
    %v2462 = vtanh.pop %v1396
    %v2463 = vtanh.pop %v1401
    %v2464 = vtanh.pop %v1406
    %v2465 = vtanh.pop %v1411
    %v2466 = vtanh.pop %v1416
    %v2467 = vtanh.pop %v1421
    %v2468 = vtanh.pop %v1426
    %v2469 = vtanh.pop %v1431
    %v2470 = vtanh.pop %v1436
    %v2471 = vtanh.pop %v1441
    %v2472 = vtanh.pop %v1446
    %v2473 = vtanh.pop %v1451
    %v2474 = vtanh.pop %v1456
    %v2475 = vtanh.pop %v1461
    %v2476 = vtanh.pop %v1466
    %v2477 = vtanh.pop %v1471
    %v2478 = vtanh.pop %v1476
    %v2479 = vtanh.pop %v1481
    %v2480 = vtanh.pop %v1486
    %v2481 = vtanh.pop %v1491
    %v2482 = vtanh.pop %v1496
    %v2483 = vtanh.pop %v1501
    %v2484 = vtanh.pop %v1506
    %v2485 = vtanh.pop %v1511
    %v2486 = vtanh.pop %v1516
    %v2487 = vtanh.pop %v1521
    %v2488 = vtanh.pop %v1526
    %v2489 = vtanh.pop %v1531
    %v2490 = vtanh.pop %v1536
    %v2491 = vtanh.pop %v1541
    %v2492 = vtanh.pop %v1546
    %v2493 = vtanh.pop %v1551
    %v2494 = vtanh.pop %v1556
    %v2495 = vtanh.pop %v1561
    %v2496 = vtanh.pop %v1566
    %v2497 = vtanh.pop %v1571
    %v2498 = vtanh.pop %v1576
    %v2499 = vtanh.pop %v1581
    %v2500 = vtanh.pop %v1586
    %v2501 = vtanh.pop %v1591
    %v2502 = vtanh.pop %v1596
    %v2503 = vtanh.pop %v1601
    %v2504 = vtanh.pop %v1606
    %v2505 = vtanh.pop %v1611
    %v2506 = vtanh.pop %v1616
    %v2507 = vtanh.pop %v1621
    %v2508 = vtanh.pop %v1626
    %v2509 = vtanh.pop %v1631
    %v2510 = vtanh.pop %v1636
    %v2511 = vtanh.pop %v1641
    %v2512 = vtanh.pop %v1646
    %v2513 = vtanh.pop %v1651
    %v2514 = vtanh.pop %v1656
    %v2515 = vtanh.pop %v1661
    %v2516 = vtanh.pop %v1666
    %v2517 = vtanh.pop %v1671
    %v2518 = vtanh.pop %v1676
    %v2519 = vtanh.pop %v1681
    %v2520 = vtanh.pop %v1686
    %v2521 = vtanh.pop %v1691
    %v2522 = vtanh.pop %v1696
    %v2523 = vtanh.pop %v1701
    %v2524 = vtanh.pop %v1706
    %v2525 = vtanh.pop %v1711
    %v2526 = vtanh.pop %v1716
    %v2527 = vtanh.pop %v1721
    %v2528 = vtanh.pop %v1726
    %v2529 = vtanh.pop %v1731
    %v2530 = vtanh.pop %v1736
    %v2531 = vtanh.pop %v1741
    %v2532 = vtanh.pop %v1746
    %v2533 = vtanh.pop %v1751
    %v2534 = vtanh.pop %v1756
    %v2535 = vtanh.pop %v1761
    %v2536 = vtanh.pop %v1766
    %v2537 = vtanh.pop %v1771
    %v2538 = vtanh.pop %v1776
    %v2539 = vtanh.pop %v1781
    %v2540 = vtanh.pop %v1786
    %v2541 = vtanh.pop %v1791
    %v2542 = vtanh.pop %v1796
    %v2543 = vtanh.pop %v1801
    %v2544 = vtanh.pop %v1806
    %v2545 = vtanh.pop %v1811
    %v2546 = vtanh.pop %v1816
    %v2547 = vtanh.pop %v1821
    %v2548 = vtanh.pop %v1826
    %v2549 = vtanh.pop %v1831
    %v2550 = vtanh.pop %v1836
    %v2551 = vtanh.pop %v1841
    %v2552 = vtanh.pop %v1846
    %v2553 = vtanh.pop %v1851
    %v2554 = vtanh.pop %v1856
    %v2555 = vtanh.pop %v1861
    %v2556 = vtanh.pop %v1866
    %v2557 = vtanh.pop %v1871
    %v2558 = vtanh.pop %v1876
    %v2559 = vtanh.pop %v1881
    %v2560 = vtanh.pop %v1886
    %v2561 = vtanh.pop %v1891
    %v2562 = vtanh.pop %v1896
    %v2563 = vtanh.pop %v1901
    %v2564 = vtanh.pop %v1906
    %v2565 = vtanh.pop %v1911
    %v2566 = vtanh.pop %v1916
    %v2567 = vtanh.pop %v1921
    %v2568 = vtanh.pop %v1926
    %v2569 = vtanh.pop %v1931
    %v2570 = vtanh.pop %v1936
    %v2571 = vtanh.pop %v1941
    %v2572 = vtanh.pop %v1946
    %v2573 = vtanh.pop %v1951
    %v2574 = vtanh.pop %v1956
    %v2575 = vtanh.pop %v1961
    %v2576 = vtanh.pop %v1966
    %v2577 = vtanh.pop %v1971
    %v2578 = vtanh.pop %v1976
    %v2579 = vtanh.pop %v1981
    %v2580 = vtanh.pop %v1986
    %v2581 = vtanh.pop %v1991
    %v2582 = vtanh.pop %v1996
    %v2583 = vtanh.pop %v2001
    %v2584 = vtanh.pop %v2006
    %v2585 = vtanh.pop %v2011
    %v2586 = vtanh.pop %v2016
    %v2587 = vtanh.pop %v2021
    %v2588 = vtanh.pop %v2026
    %v2589 = vtanh.pop %v2031
    %v2590 = vtanh.pop %v2036
    %v2591 = vtanh.pop %v2041
    %v2592 = vtanh.pop %v2046
    %v2593 = vtanh.pop %v2051
    %v2594 = vtanh.pop %v2056
    %v2595 = vtanh.pop %v2061
    %v2596 = vtanh.pop %v2066
    %v2597 = vtanh.pop %v2071
    %v2598 = vtanh.pop %v2076
    %v2599 = vtanh.pop %v2081
    %v2600 = vtanh.pop %v2086
    %v2601 = vtanh.pop %v2091
    %v2602 = vtanh.pop %v2096
    %v2603 = vtanh.pop %v2101
    %v2604 = vtanh.pop %v2106
    %v2605 = vtanh.pop %v2111
    %v2606 = vtanh.pop %v2116
    %v2607 = vtanh.pop %v2121
    %v2608 = vtanh.pop %v2126
    %v2609 = vtanh.pop %v2131
    %v2610 = vtanh.pop %v2136
    %v2611 = vtanh.pop %v2141
    %v2612 = vtanh.pop %v2146
    %v2613 = vtanh.pop %v2151
    %v2614 = vtanh.pop %v2156
    %v2615 = vtanh.pop %v2161
    %v2616 = vtanh.pop %v2166
    %v2617 = vtanh.pop %v2171
    %v2618 = vtanh.pop %v2176
    %v2619 = vtanh.pop %v2181
    %v2620 = vtanh.pop %v2186
    %v2621 = vtanh.pop %v2191
    %v2622 = vtanh.pop %v2196
    %v2623 = vtanh.pop %v2201
    %v2624 = vtanh.pop %v2206
    %v2625 = vtanh.pop %v2211
    %v2626 = vtanh.pop %v2216
    %v2627 = vtanh.pop %v2221
    %v2628 = vtanh.pop %v2226
    %v2629 = vtanh.pop %v2231
    %v2630 = vtanh.pop %v2236
    %v2631 = vtanh.pop %v2241
    %v2632 = vtanh.pop %v2246
    %v2633 = vtanh.pop %v2251
    %v2634 = vtanh.pop %v2256
    %v2635 = vtanh.pop %v2261
    %v2636 = vtanh.pop %v2266
    %v2637 = vtanh.pop %v2271
    %v2638 = vtanh.pop %v2276
    %v2639 = vtanh.pop %v2281
    %v2640 = vtanh.pop %v2286
    %v2641 = vtanh.pop %v2291
    %v2642 = vtanh.pop %v2296
    %v2643 = vtanh.pop %v2301
    %v2644 = vtanh.pop %v2306
    %v2645 = vtanh.pop %v2311
    %v2646 = vtanh.pop %v2316
    %v2647 = vtanh.pop %v2321
    %v2648 = vtanh.pop %v2326
    %v2649 = vtanh.pop %v2331
    %v2650 = vtanh.pop %v2336
    %v2651 = vtanh.pop %v2341
    %v2652 = vtanh.pop %v2346
    %v2653 = vtanh.pop %v2351
    %v2654 = vtanh.pop %v2356
    %v2655 = vtanh.pop %v2361
    %v2656 = vtanh.pop %v2366
    %v2657 = vtanh.pop %v2371
    %v2658 = vtanh.pop %v2376
    %v2659 = vtanh.pop %v2381
    %v2660 = vtanh.pop %v2386
    %v2661 = vtanh.pop %v2391
    %v2662 = vtanh.pop %v2396
    %v2663 = vtanh.pop %v2401
    %v2664 = vtanh.pop %v2406
    %v2665 = vld [vmem:[%s3] sm:$0x1]
    %vm2666 = vcmask 130048
    %v2668 = vsel %vm2666, %v2665, 0
    %v2671 = vsel %vm2666, %v2409, 0
    %v2674 = vsel %vm2666, %v2410, 0
    %v2677 = vsel %vm2666, %v2411, 0
    %v2680 = vsel %vm2666, %v2412, 0
    %v2683 = vsel %vm2666, %v2413, 0
    %v2686 = vsel %vm2666, %v2414, 0
    %v2689 = vsel %vm2666, %v2415, 0
    %v2692 = vsel %vm2666, %v2416, 0
    %v2695 = vsel %vm2666, %v2417, 0
    %v2698 = vsel %vm2666, %v2418, 0
    %v2701 = vsel %vm2666, %v2419, 0
    %v2704 = vsel %vm2666, %v2420, 0
    %v2707 = vsel %vm2666, %v2421, 0
    %v2710 = vsel %vm2666, %v2422, 0
    %v2713 = vsel %vm2666, %v2423, 0
    %v2716 = vsel %vm2666, %v2424, 0
    %v2719 = vsel %vm2666, %v2425, 0
    %v2722 = vsel %vm2666, %v2426, 0
    %v2725 = vsel %vm2666, %v2427, 0
    %v2728 = vsel %vm2666, %v2428, 0
    %v2731 = vsel %vm2666, %v2429, 0
    %v2734 = vsel %vm2666, %v2430, 0
    %v2737 = vsel %vm2666, %v2431, 0
    %v2740 = vsel %vm2666, %v2432, 0
    %v2743 = vsel %vm2666, %v2433, 0
    %v2746 = vsel %vm2666, %v2434, 0
    %v2749 = vsel %vm2666, %v2435, 0
    %v2752 = vsel %vm2666, %v2436, 0
    %v2755 = vsel %vm2666, %v2437, 0
    %v2758 = vsel %vm2666, %v2438, 0
    %v2761 = vsel %vm2666, %v2439, 0
    %v2764 = vsel %vm2666, %v2440, 0
    %2766 = vmatprep.subr.mxu0 0.0
    %2767 = vmatpush1.xpose.msra.mxu0 %v2671
    %2768 = vmatprep.subr.mxu0 0.0
    %2769 = vmatpush1.xpose.msra.mxu0 %v2674
    %2770 = vmatprep.subr.mxu0 0.0
    %2771 = vmatpush1.xpose.msra.mxu0 %v2677
    %2772 = vmatprep.subr.mxu0 0.0
    %2773 = vmatpush1.xpose.msra.mxu0 %v2680
    %2774 = vmatprep.subr.mxu0 0.0
    %2775 = vmatpush1.xpose.msra.mxu0 %v2683
    %2776 = vmatprep.subr.mxu0 0.0
    %2777 = vmatpush1.xpose.msra.mxu0 %v2686
    %2778 = vmatprep.subr.mxu0 0.0
    %2779 = vmatpush1.xpose.msra.mxu0 %v2689
    %2780 = vmatprep.subr.mxu0 0.0
    %2781 = vmatpush1.xpose.msra.mxu0 %v2692
    %2782 = vmatprep.subr.mxu0 0.0
    %2783 = vmatpush1.xpose.msra.mxu0 %v2695
    %2784 = vmatprep.subr.mxu0 0.0
    %2785 = vmatpush1.xpose.msra.mxu0 %v2698
    %2786 = vmatprep.subr.mxu0 0.0
    %2787 = vmatpush1.xpose.msra.mxu0 %v2701
    %2788 = vmatprep.subr.mxu0 0.0
    %2789 = vmatpush1.xpose.msra.mxu0 %v2704
    %2790 = vmatprep.subr.mxu0 0.0
    %2791 = vmatpush1.xpose.msra.mxu0 %v2707
    %2792 = vmatprep.subr.mxu0 0.0
    %2793 = vmatpush1.xpose.msra.mxu0 %v2710
    %2794 = vmatprep.subr.mxu0 0.0
    %2795 = vmatpush1.xpose.msra.mxu0 %v2713
    %2796 = vmatprep.subr.mxu0 0.0
    %2797 = vmatpush1.xpose.msra.mxu0 %v2716
    %2798 = vmatprep.subr.mxu0 0.0
    %2799 = vmatpush1.xpose.msra.mxu0 %v2719
    %2800 = vmatprep.subr.mxu0 0.0
    %2801 = vmatpush1.xpose.msra.mxu0 %v2722
    %2802 = vmatprep.subr.mxu0 0.0
    %2803 = vmatpush1.xpose.msra.mxu0 %v2725
    %2804 = vmatprep.subr.mxu0 0.0
    %2805 = vmatpush1.xpose.msra.mxu0 %v2728
    %2806 = vmatprep.subr.mxu0 0.0
    %2807 = vmatpush1.xpose.msra.mxu0 %v2731
    %2808 = vmatprep.subr.mxu0 0.0
    %2809 = vmatpush1.xpose.msra.mxu0 %v2734
    %2810 = vmatprep.subr.mxu0 0.0
    %2811 = vmatpush1.xpose.msra.mxu0 %v2737
    %2812 = vmatprep.subr.mxu0 0.0
    %2813 = vmatpush1.xpose.msra.mxu0 %v2740
    %2814 = vmatprep.subr.mxu0 0.0
    %2815 = vmatpush1.xpose.msra.mxu0 %v2743
    %2816 = vmatprep.subr.mxu0 0.0
    %2817 = vmatpush1.xpose.msra.mxu0 %v2746
    %2818 = vmatprep.subr.mxu0 0.0
    %2819 = vmatpush1.xpose.msra.mxu0 %v2749
    %2820 = vmatprep.subr.mxu0 0.0
    %2821 = vmatpush1.xpose.msra.mxu0 %v2752
    %2822 = vmatprep.subr.mxu0 0.0
    %2823 = vmatpush1.xpose.msra.mxu0 %v2755
    %2824 = vmatprep.subr.mxu0 0.0
    %2825 = vmatpush1.xpose.msra.mxu0 %v2758
    %2826 = vmatprep.subr.mxu0 0.0
    %2827 = vmatpush1.xpose.msra.mxu0 %v2761
    %2828 = vmatprep.subr.mxu0 0.0
    %2829 = vmatpush1.xpose.msra.mxu0 %v2764
    %2830 = vmatprep.mubr.f32.mxu0 0.0
    %2831 = vmatmul.mubr.f32.gmra.mrb[0].mxu0 %v2668
    %v2832 = vpop.f32.mrb[0].mxu0
    %v2833 = vadd.f32 0.0, %v2832
    %v2834 = vpop.f32.mrb[0].mxu0
    %v2835 = vadd.f32 0.0, %v2834
    %2836 = vdwg.mxu0
    %v2838 = vsel %vm2666, %v2441, 0
    %v2841 = vsel %vm2666, %v2442, 0
    %v2844 = vsel %vm2666, %v2443, 0
    %v2847 = vsel %vm2666, %v2444, 0
    %v2850 = vsel %vm2666, %v2445, 0
    %v2853 = vsel %vm2666, %v2446, 0
    %v2856 = vsel %vm2666, %v2447, 0
    %v2859 = vsel %vm2666, %v2448, 0
    %v2862 = vsel %vm2666, %v2449, 0
    %v2865 = vsel %vm2666, %v2450, 0
    %v2868 = vsel %vm2666, %v2451, 0
    %v2871 = vsel %vm2666, %v2452, 0
    %v2874 = vsel %vm2666, %v2453, 0
    %v2877 = vsel %vm2666, %v2454, 0
    %v2880 = vsel %vm2666, %v2455, 0
    %v2883 = vsel %vm2666, %v2456, 0
    %v2886 = vsel %vm2666, %v2457, 0
    %v2889 = vsel %vm2666, %v2458, 0
    %v2892 = vsel %vm2666, %v2459, 0
    %v2895 = vsel %vm2666, %v2460, 0
    %v2898 = vsel %vm2666, %v2461, 0
    %v2901 = vsel %vm2666, %v2462, 0
    %v2904 = vsel %vm2666, %v2463, 0
    %v2907 = vsel %vm2666, %v2464, 0
    %v2910 = vsel %vm2666, %v2465, 0
    %v2913 = vsel %vm2666, %v2466, 0
    %v2916 = vsel %vm2666, %v2467, 0
    %v2919 = vsel %vm2666, %v2468, 0
    %v2922 = vsel %vm2666, %v2469, 0
    %v2925 = vsel %vm2666, %v2470, 0
    %v2928 = vsel %vm2666, %v2471, 0
    %v2931 = vsel %vm2666, %v2472, 0
    %2933 = vmatprep.subr.mxu0 0.0
    %2934 = vmatpush1.xpose.msra.mxu0 %v2838
    %2935 = vmatprep.subr.mxu0 0.0
    %2936 = vmatpush1.xpose.msra.mxu0 %v2841
    %2937 = vmatprep.subr.mxu0 0.0
    %2938 = vmatpush1.xpose.msra.mxu0 %v2844
    %2939 = vmatprep.subr.mxu0 0.0
    %2940 = vmatpush1.xpose.msra.mxu0 %v2847
    %2941 = vmatprep.subr.mxu0 0.0
    %2942 = vmatpush1.xpose.msra.mxu0 %v2850
    %2943 = vmatprep.subr.mxu0 0.0
    %2944 = vmatpush1.xpose.msra.mxu0 %v2853
    %2945 = vmatprep.subr.mxu0 0.0
    %2946 = vmatpush1.xpose.msra.mxu0 %v2856
    %2947 = vmatprep.subr.mxu0 0.0
    %2948 = vmatpush1.xpose.msra.mxu0 %v2859
    %2949 = vmatprep.subr.mxu0 0.0
    %2950 = vmatpush1.xpose.msra.mxu0 %v2862
    %2951 = vmatprep.subr.mxu0 0.0
    %2952 = vmatpush1.xpose.msra.mxu0 %v2865
    %2953 = vmatprep.subr.mxu0 0.0
    %2954 = vmatpush1.xpose.msra.mxu0 %v2868
    %2955 = vmatprep.subr.mxu0 0.0
    %2956 = vmatpush1.xpose.msra.mxu0 %v2871
    %2957 = vmatprep.subr.mxu0 0.0
    %2958 = vmatpush1.xpose.msra.mxu0 %v2874
    %2959 = vmatprep.subr.mxu0 0.0
    %2960 = vmatpush1.xpose.msra.mxu0 %v2877
    %2961 = vmatprep.subr.mxu0 0.0
    %2962 = vmatpush1.xpose.msra.mxu0 %v2880
    %2963 = vmatprep.subr.mxu0 0.0
    %2964 = vmatpush1.xpose.msra.mxu0 %v2883
    %2965 = vmatprep.subr.mxu0 0.0
    %2966 = vmatpush1.xpose.msra.mxu0 %v2886
    %2967 = vmatprep.subr.mxu0 0.0
    %2968 = vmatpush1.xpose.msra.mxu0 %v2889
    %2969 = vmatprep.subr.mxu0 0.0
    %2970 = vmatpush1.xpose.msra.mxu0 %v2892
    %2971 = vmatprep.subr.mxu0 0.0
    %2972 = vmatpush1.xpose.msra.mxu0 %v2895
    %2973 = vmatprep.subr.mxu0 0.0
    %2974 = vmatpush1.xpose.msra.mxu0 %v2898
    %2975 = vmatprep.subr.mxu0 0.0
    %2976 = vmatpush1.xpose.msra.mxu0 %v2901
    %2977 = vmatprep.subr.mxu0 0.0
    %2978 = vmatpush1.xpose.msra.mxu0 %v2904
    %2979 = vmatprep.subr.mxu0 0.0
    %2980 = vmatpush1.xpose.msra.mxu0 %v2907
    %2981 = vmatprep.subr.mxu0 0.0
    %2982 = vmatpush1.xpose.msra.mxu0 %v2910
    %2983 = vmatprep.subr.mxu0 0.0
    %2984 = vmatpush1.xpose.msra.mxu0 %v2913
    %2985 = vmatprep.subr.mxu0 0.0
    %2986 = vmatpush1.xpose.msra.mxu0 %v2916
    %2987 = vmatprep.subr.mxu0 0.0
    %2988 = vmatpush1.xpose.msra.mxu0 %v2919
    %2989 = vmatprep.subr.mxu0 0.0
    %2990 = vmatpush1.xpose.msra.mxu0 %v2922
    %2991 = vmatprep.subr.mxu0 0.0
    %2992 = vmatpush1.xpose.msra.mxu0 %v2925
    %2993 = vmatprep.subr.mxu0 0.0
    %2994 = vmatpush1.xpose.msra.mxu0 %v2928
    %2995 = vmatprep.subr.mxu0 0.0
    %2996 = vmatpush1.xpose.msra.mxu0 %v2931
    %2997 = vmatprep.mubr.f32.mxu0 0.0
    %2998 = vmatmul.mubr.f32.gmra.mrb[0].mxu0 %v2668
    %v2999 = vpop.f32.mrb[0].mxu0
    %v3000 = vadd.f32 0.0, %v2999
    %v3001 = vpop.f32.mrb[0].mxu0
    %v3002 = vadd.f32 0.0, %v3001
    %3003 = vdwg.mxu0
    %v3005 = vsel %vm2666, %v2473, 0
    %v3008 = vsel %vm2666, %v2474, 0
    %v3011 = vsel %vm2666, %v2475, 0
    %v3014 = vsel %vm2666, %v2476, 0
    %v3017 = vsel %vm2666, %v2477, 0
    %v3020 = vsel %vm2666, %v2478, 0
    %v3023 = vsel %vm2666, %v2479, 0
    %v3026 = vsel %vm2666, %v2480, 0
    %v3029 = vsel %vm2666, %v2481, 0
    %v3032 = vsel %vm2666, %v2482, 0
    %v3035 = vsel %vm2666, %v2483, 0
    %v3038 = vsel %vm2666, %v2484, 0
    %v3041 = vsel %vm2666, %v2485, 0
    %v3044 = vsel %vm2666, %v2486, 0
    %v3047 = vsel %vm2666, %v2487, 0
    %v3050 = vsel %vm2666, %v2488, 0
    %v3053 = vsel %vm2666, %v2489, 0
    %v3056 = vsel %vm2666, %v2490, 0
    %v3059 = vsel %vm2666, %v2491, 0
    %v3062 = vsel %vm2666, %v2492, 0
    %v3065 = vsel %vm2666, %v2493, 0
    %v3068 = vsel %vm2666, %v2494, 0
    %v3071 = vsel %vm2666, %v2495, 0
    %v3074 = vsel %vm2666, %v2496, 0
    %v3077 = vsel %vm2666, %v2497, 0
    %v3080 = vsel %vm2666, %v2498, 0
    %v3083 = vsel %vm2666, %v2499, 0
    %v3086 = vsel %vm2666, %v2500, 0
    %v3089 = vsel %vm2666, %v2501, 0
    %v3092 = vsel %vm2666, %v2502, 0
    %v3095 = vsel %vm2666, %v2503, 0
    %v3098 = vsel %vm2666, %v2504, 0
    %3100 = vmatprep.subr.mxu0 0.0
    %3101 = vmatpush1.xpose.msra.mxu0 %v3005
    %3102 = vmatprep.subr.mxu0 0.0
    %3103 = vmatpush1.xpose.msra.mxu0 %v3008
    %3104 = vmatprep.subr.mxu0 0.0
    %3105 = vmatpush1.xpose.msra.mxu0 %v3011
    %3106 = vmatprep.subr.mxu0 0.0
    %3107 = vmatpush1.xpose.msra.mxu0 %v3014
    %3108 = vmatprep.subr.mxu0 0.0
    %3109 = vmatpush1.xpose.msra.mxu0 %v3017
    %3110 = vmatprep.subr.mxu0 0.0
    %3111 = vmatpush1.xpose.msra.mxu0 %v3020
    %3112 = vmatprep.subr.mxu0 0.0
    %3113 = vmatpush1.xpose.msra.mxu0 %v3023
    %3114 = vmatprep.subr.mxu0 0.0
    %3115 = vmatpush1.xpose.msra.mxu0 %v3026
    %3116 = vmatprep.subr.mxu0 0.0
    %3117 = vmatpush1.xpose.msra.mxu0 %v3029
    %3118 = vmatprep.subr.mxu0 0.0
    %3119 = vmatpush1.xpose.msra.mxu0 %v3032
    %3120 = vmatprep.subr.mxu0 0.0
    %3121 = vmatpush1.xpose.msra.mxu0 %v3035
    %3122 = vmatprep.subr.mxu0 0.0
    %3123 = vmatpush1.xpose.msra.mxu0 %v3038
    %3124 = vmatprep.subr.mxu0 0.0
    %3125 = vmatpush1.xpose.msra.mxu0 %v3041
    %3126 = vmatprep.subr.mxu0 0.0
    %3127 = vmatpush1.xpose.msra.mxu0 %v3044
    %3128 = vmatprep.subr.mxu0 0.0
    %3129 = vmatpush1.xpose.msra.mxu0 %v3047
    %3130 = vmatprep.subr.mxu0 0.0
    %3131 = vmatpush1.xpose.msra.mxu0 %v3050
    %3132 = vmatprep.subr.mxu0 0.0
    %3133 = vmatpush1.xpose.msra.mxu0 %v3053
    %3134 = vmatprep.subr.mxu0 0.0
    %3135 = vmatpush1.xpose.msra.mxu0 %v3056
    %3136 = vmatprep.subr.mxu0 0.0
    %3137 = vmatpush1.xpose.msra.mxu0 %v3059
    %3138 = vmatprep.subr.mxu0 0.0
    %3139 = vmatpush1.xpose.msra.mxu0 %v3062
    %3140 = vmatprep.subr.mxu0 0.0
    %3141 = vmatpush1.xpose.msra.mxu0 %v3065
    %3142 = vmatprep.subr.mxu0 0.0
    %3143 = vmatpush1.xpose.msra.mxu0 %v3068
    %3144 = vmatprep.subr.mxu0 0.0
    %3145 = vmatpush1.xpose.msra.mxu0 %v3071
    %3146 = vmatprep.subr.mxu0 0.0
    %3147 = vmatpush1.xpose.msra.mxu0 %v3074
    %3148 = vmatprep.subr.mxu0 0.0
    %3149 = vmatpush1.xpose.msra.mxu0 %v3077
    %3150 = vmatprep.subr.mxu0 0.0
    %3151 = vmatpush1.xpose.msra.mxu0 %v3080
    %3152 = vmatprep.subr.mxu0 0.0
    %3153 = vmatpush1.xpose.msra.mxu0 %v3083
    %3154 = vmatprep.subr.mxu0 0.0
    %3155 = vmatpush1.xpose.msra.mxu0 %v3086
    %3156 = vmatprep.subr.mxu0 0.0
    %3157 = vmatpush1.xpose.msra.mxu0 %v3089
    %3158 = vmatprep.subr.mxu0 0.0
    %3159 = vmatpush1.xpose.msra.mxu0 %v3092
    %3160 = vmatprep.subr.mxu0 0.0
    %3161 = vmatpush1.xpose.msra.mxu0 %v3095
    %3162 = vmatprep.subr.mxu0 0.0
    %3163 = vmatpush1.xpose.msra.mxu0 %v3098
    %3164 = vmatprep.mubr.f32.mxu0 0.0
    %3165 = vmatmul.mubr.f32.gmra.mrb[0].mxu0 %v2668
    %v3166 = vpop.f32.mrb[0].mxu0
    %v3167 = vadd.f32 0.0, %v3166
    %v3168 = vpop.f32.mrb[0].mxu0
    %v3169 = vadd.f32 0.0, %v3168
    %3170 = vdwg.mxu0
    %v3172 = vsel %vm2666, %v2505, 0
    %v3175 = vsel %vm2666, %v2506, 0
    %v3178 = vsel %vm2666, %v2507, 0
    %v3181 = vsel %vm2666, %v2508, 0
    %v3184 = vsel %vm2666, %v2509, 0
    %v3187 = vsel %vm2666, %v2510, 0
    %v3190 = vsel %vm2666, %v2511, 0
    %v3193 = vsel %vm2666, %v2512, 0
    %v3196 = vsel %vm2666, %v2513, 0
    %v3199 = vsel %vm2666, %v2514, 0
    %v3202 = vsel %vm2666, %v2515, 0
    %v3205 = vsel %vm2666, %v2516, 0
    %v3208 = vsel %vm2666, %v2517, 0
    %v3211 = vsel %vm2666, %v2518, 0
    %v3214 = vsel %vm2666, %v2519, 0
    %v3217 = vsel %vm2666, %v2520, 0
    %v3220 = vsel %vm2666, %v2521, 0
    %v3223 = vsel %vm2666, %v2522, 0
    %v3226 = vsel %vm2666, %v2523, 0
    %v3229 = vsel %vm2666, %v2524, 0
    %v3232 = vsel %vm2666, %v2525, 0
    %v3235 = vsel %vm2666, %v2526, 0
    %v3238 = vsel %vm2666, %v2527, 0
    %v3241 = vsel %vm2666, %v2528, 0
    %v3244 = vsel %vm2666, %v2529, 0
    %v3247 = vsel %vm2666, %v2530, 0
    %v3250 = vsel %vm2666, %v2531, 0
    %v3253 = vsel %vm2666, %v2532, 0
    %v3256 = vsel %vm2666, %v2533, 0
    %v3259 = vsel %vm2666, %v2534, 0
    %v3262 = vsel %vm2666, %v2535, 0
    %v3265 = vsel %vm2666, %v2536, 0
    %3267 = vmatprep.subr.mxu0 0.0
    %3268 = vmatpush1.xpose.msra.mxu0 %v3172
    %3269 = vmatprep.subr.mxu0 0.0
    %3270 = vmatpush1.xpose.msra.mxu0 %v3175
    %3271 = vmatprep.subr.mxu0 0.0
    %3272 = vmatpush1.xpose.msra.mxu0 %v3178
    %3273 = vmatprep.subr.mxu0 0.0
    %3274 = vmatpush1.xpose.msra.mxu0 %v3181
    %3275 = vmatprep.subr.mxu0 0.0
    %3276 = vmatpush1.xpose.msra.mxu0 %v3184
    %3277 = vmatprep.subr.mxu0 0.0
    %3278 = vmatpush1.xpose.msra.mxu0 %v3187
    %3279 = vmatprep.subr.mxu0 0.0
    %3280 = vmatpush1.xpose.msra.mxu0 %v3190
    %3281 = vmatprep.subr.mxu0 0.0
    %3282 = vmatpush1.xpose.msra.mxu0 %v3193
    %3283 = vmatprep.subr.mxu0 0.0
    %3284 = vmatpush1.xpose.msra.mxu0 %v3196
    %3285 = vmatprep.subr.mxu0 0.0
    %3286 = vmatpush1.xpose.msra.mxu0 %v3199
    %3287 = vmatprep.subr.mxu0 0.0
    %3288 = vmatpush1.xpose.msra.mxu0 %v3202
    %3289 = vmatprep.subr.mxu0 0.0
    %3290 = vmatpush1.xpose.msra.mxu0 %v3205
    %3291 = vmatprep.subr.mxu0 0.0
    %3292 = vmatpush1.xpose.msra.mxu0 %v3208
    %3293 = vmatprep.subr.mxu0 0.0
    %3294 = vmatpush1.xpose.msra.mxu0 %v3211
    %3295 = vmatprep.subr.mxu0 0.0
    %3296 = vmatpush1.xpose.msra.mxu0 %v3214
    %3297 = vmatprep.subr.mxu0 0.0
    %3298 = vmatpush1.xpose.msra.mxu0 %v3217
    %3299 = vmatprep.subr.mxu0 0.0
    %3300 = vmatpush1.xpose.msra.mxu0 %v3220
    %3301 = vmatprep.subr.mxu0 0.0
    %3302 = vmatpush1.xpose.msra.mxu0 %v3223
    %3303 = vmatprep.subr.mxu0 0.0
    %3304 = vmatpush1.xpose.msra.mxu0 %v3226
    %3305 = vmatprep.subr.mxu0 0.0
    %3306 = vmatpush1.xpose.msra.mxu0 %v3229
    %3307 = vmatprep.subr.mxu0 0.0
    %3308 = vmatpush1.xpose.msra.mxu0 %v3232
    %3309 = vmatprep.subr.mxu0 0.0
    %3310 = vmatpush1.xpose.msra.mxu0 %v3235
    %3311 = vmatprep.subr.mxu0 0.0
    %3312 = vmatpush1.xpose.msra.mxu0 %v3238
    %3313 = vmatprep.subr.mxu0 0.0
    %3314 = vmatpush1.xpose.msra.mxu0 %v3241
    %3315 = vmatprep.subr.mxu0 0.0
    %3316 = vmatpush1.xpose.msra.mxu0 %v3244
    %3317 = vmatprep.subr.mxu0 0.0
    %3318 = vmatpush1.xpose.msra.mxu0 %v3247
    %3319 = vmatprep.subr.mxu0 0.0
    %3320 = vmatpush1.xpose.msra.mxu0 %v3250
    %3321 = vmatprep.subr.mxu0 0.0
    %3322 = vmatpush1.xpose.msra.mxu0 %v3253
    %3323 = vmatprep.subr.mxu0 0.0
    %3324 = vmatpush1.xpose.msra.mxu0 %v3256
    %3325 = vmatprep.subr.mxu0 0.0
    %3326 = vmatpush1.xpose.msra.mxu0 %v3259
    %3327 = vmatprep.subr.mxu0 0.0
    %3328 = vmatpush1.xpose.msra.mxu0 %v3262
    %3329 = vmatprep.subr.mxu0 0.0
    %3330 = vmatpush1.xpose.msra.mxu0 %v3265
    %3331 = vmatprep.mubr.f32.mxu0 0.0
    %3332 = vmatmul.mubr.f32.gmra.mrb[0].mxu0 %v2668
    %v3333 = vpop.f32.mrb[0].mxu0
    %v3334 = vadd.f32 0.0, %v3333
    %v3335 = vpop.f32.mrb[0].mxu0
    %v3336 = vadd.f32 0.0, %v3335
    %3337 = vdwg.mxu0
    %v3339 = vsel %vm2666, %v2537, 0
    %v3342 = vsel %vm2666, %v2538, 0
    %v3345 = vsel %vm2666, %v2539, 0
    %v3348 = vsel %vm2666, %v2540, 0
    %v3351 = vsel %vm2666, %v2541, 0
    %v3354 = vsel %vm2666, %v2542, 0
    %v3357 = vsel %vm2666, %v2543, 0
    %v3360 = vsel %vm2666, %v2544, 0
    %v3363 = vsel %vm2666, %v2545, 0
    %v3366 = vsel %vm2666, %v2546, 0
    %v3369 = vsel %vm2666, %v2547, 0
    %v3372 = vsel %vm2666, %v2548, 0
    %v3375 = vsel %vm2666, %v2549, 0
    %v3378 = vsel %vm2666, %v2550, 0
    %v3381 = vsel %vm2666, %v2551, 0
    %v3384 = vsel %vm2666, %v2552, 0
    %v3387 = vsel %vm2666, %v2553, 0
    %v3390 = vsel %vm2666, %v2554, 0
    %v3393 = vsel %vm2666, %v2555, 0
    %v3396 = vsel %vm2666, %v2556, 0
    %v3399 = vsel %vm2666, %v2557, 0
    %v3402 = vsel %vm2666, %v2558, 0
    %v3405 = vsel %vm2666, %v2559, 0
    %v3408 = vsel %vm2666, %v2560, 0
    %v3411 = vsel %vm2666, %v2561, 0
    %v3414 = vsel %vm2666, %v2562, 0
    %v3417 = vsel %vm2666, %v2563, 0
    %v3420 = vsel %vm2666, %v2564, 0
    %v3423 = vsel %vm2666, %v2565, 0
    %v3426 = vsel %vm2666, %v2566, 0
    %v3429 = vsel %vm2666, %v2567, 0
    %v3432 = vsel %vm2666, %v2568, 0
    %3434 = vmatprep.subr.mxu0 0.0
    %3435 = vmatpush1.xpose.msra.mxu0 %v3339
    %3436 = vmatprep.subr.mxu0 0.0
    %3437 = vmatpush1.xpose.msra.mxu0 %v3342
    %3438 = vmatprep.subr.mxu0 0.0
    %3439 = vmatpush1.xpose.msra.mxu0 %v3345
    %3440 = vmatprep.subr.mxu0 0.0
    %3441 = vmatpush1.xpose.msra.mxu0 %v3348
    %3442 = vmatprep.subr.mxu0 0.0
    %3443 = vmatpush1.xpose.msra.mxu0 %v3351
    %3444 = vmatprep.subr.mxu0 0.0
    %3445 = vmatpush1.xpose.msra.mxu0 %v3354
    %3446 = vmatprep.subr.mxu0 0.0
    %3447 = vmatpush1.xpose.msra.mxu0 %v3357
    %3448 = vmatprep.subr.mxu0 0.0
    %3449 = vmatpush1.xpose.msra.mxu0 %v3360
    %3450 = vmatprep.subr.mxu0 0.0
    %3451 = vmatpush1.xpose.msra.mxu0 %v3363
    %3452 = vmatprep.subr.mxu0 0.0
    %3453 = vmatpush1.xpose.msra.mxu0 %v3366
    %3454 = vmatprep.subr.mxu0 0.0
    %3455 = vmatpush1.xpose.msra.mxu0 %v3369
    %3456 = vmatprep.subr.mxu0 0.0
    %3457 = vmatpush1.xpose.msra.mxu0 %v3372
    %3458 = vmatprep.subr.mxu0 0.0
    %3459 = vmatpush1.xpose.msra.mxu0 %v3375
    %3460 = vmatprep.subr.mxu0 0.0
    %3461 = vmatpush1.xpose.msra.mxu0 %v3378
    %3462 = vmatprep.subr.mxu0 0.0
    %3463 = vmatpush1.xpose.msra.mxu0 %v3381
    %3464 = vmatprep.subr.mxu0 0.0
    %3465 = vmatpush1.xpose.msra.mxu0 %v3384
    %3466 = vmatprep.subr.mxu0 0.0
    %3467 = vmatpush1.xpose.msra.mxu0 %v3387
    %3468 = vmatprep.subr.mxu0 0.0
    %3469 = vmatpush1.xpose.msra.mxu0 %v3390
    %3470 = vmatprep.subr.mxu0 0.0
    %3471 = vmatpush1.xpose.msra.mxu0 %v3393
    %3472 = vmatprep.subr.mxu0 0.0
    %3473 = vmatpush1.xpose.msra.mxu0 %v3396
    %3474 = vmatprep.subr.mxu0 0.0
    %3475 = vmatpush1.xpose.msra.mxu0 %v3399
    %3476 = vmatprep.subr.mxu0 0.0
    %3477 = vmatpush1.xpose.msra.mxu0 %v3402
    %3478 = vmatprep.subr.mxu0 0.0
    %3479 = vmatpush1.xpose.msra.mxu0 %v3405
    %3480 = vmatprep.subr.mxu0 0.0
    %3481 = vmatpush1.xpose.msra.mxu0 %v3408
    %3482 = vmatprep.subr.mxu0 0.0
    %3483 = vmatpush1.xpose.msra.mxu0 %v3411
    %3484 = vmatprep.subr.mxu0 0.0
    %3485 = vmatpush1.xpose.msra.mxu0 %v3414
    %3486 = vmatprep.subr.mxu0 0.0
    %3487 = vmatpush1.xpose.msra.mxu0 %v3417
    %3488 = vmatprep.subr.mxu0 0.0
    %3489 = vmatpush1.xpose.msra.mxu0 %v3420
    %3490 = vmatprep.subr.mxu0 0.0
    %3491 = vmatpush1.xpose.msra.mxu0 %v3423
    %3492 = vmatprep.subr.mxu0 0.0
    %3493 = vmatpush1.xpose.msra.mxu0 %v3426
    %3494 = vmatprep.subr.mxu0 0.0
    %3495 = vmatpush1.xpose.msra.mxu0 %v3429
    %3496 = vmatprep.subr.mxu0 0.0
    %3497 = vmatpush1.xpose.msra.mxu0 %v3432
    %3498 = vmatprep.mubr.f32.mxu0 0.0
    %3499 = vmatmul.mubr.f32.gmra.mrb[0].mxu0 %v2668
    %v3500 = vpop.f32.mrb[0].mxu0
    %v3501 = vadd.f32 0.0, %v3500
    %v3502 = vpop.f32.mrb[0].mxu0
    %v3503 = vadd.f32 0.0, %v3502
    %3504 = vdwg.mxu0
    %v3506 = vsel %vm2666, %v2569, 0
    %v3509 = vsel %vm2666, %v2570, 0
    %v3512 = vsel %vm2666, %v2571, 0
    %v3515 = vsel %vm2666, %v2572, 0
    %v3518 = vsel %vm2666, %v2573, 0
    %v3521 = vsel %vm2666, %v2574, 0
    %v3524 = vsel %vm2666, %v2575, 0
    %v3527 = vsel %vm2666, %v2576, 0
    %v3530 = vsel %vm2666, %v2577, 0
    %v3533 = vsel %vm2666, %v2578, 0
    %v3536 = vsel %vm2666, %v2579, 0
    %v3539 = vsel %vm2666, %v2580, 0
    %v3542 = vsel %vm2666, %v2581, 0
    %v3545 = vsel %vm2666, %v2582, 0
    %v3548 = vsel %vm2666, %v2583, 0
    %v3551 = vsel %vm2666, %v2584, 0
    %v3554 = vsel %vm2666, %v2585, 0
    %v3557 = vsel %vm2666, %v2586, 0
    %v3560 = vsel %vm2666, %v2587, 0
    %v3563 = vsel %vm2666, %v2588, 0
    %v3566 = vsel %vm2666, %v2589, 0
    %v3569 = vsel %vm2666, %v2590, 0
    %v3572 = vsel %vm2666, %v2591, 0
    %v3575 = vsel %vm2666, %v2592, 0
    %v3578 = vsel %vm2666, %v2593, 0
    %v3581 = vsel %vm2666, %v2594, 0
    %v3584 = vsel %vm2666, %v2595, 0
    %v3587 = vsel %vm2666, %v2596, 0
    %v3590 = vsel %vm2666, %v2597, 0
    %v3593 = vsel %vm2666, %v2598, 0
    %v3596 = vsel %vm2666, %v2599, 0
    %v3599 = vsel %vm2666, %v2600, 0
    %3601 = vmatprep.subr.mxu0 0.0
    %3602 = vmatpush1.xpose.msra.mxu0 %v3506
    %3603 = vmatprep.subr.mxu0 0.0
    %3604 = vmatpush1.xpose.msra.mxu0 %v3509
    %3605 = vmatprep.subr.mxu0 0.0
    %3606 = vmatpush1.xpose.msra.mxu0 %v3512
    %3607 = vmatprep.subr.mxu0 0.0
    %3608 = vmatpush1.xpose.msra.mxu0 %v3515
    %3609 = vmatprep.subr.mxu0 0.0
    %3610 = vmatpush1.xpose.msra.mxu0 %v3518
    %3611 = vmatprep.subr.mxu0 0.0
    %3612 = vmatpush1.xpose.msra.mxu0 %v3521
    %3613 = vmatprep.subr.mxu0 0.0
    %3614 = vmatpush1.xpose.msra.mxu0 %v3524
    %3615 = vmatprep.subr.mxu0 0.0
    %3616 = vmatpush1.xpose.msra.mxu0 %v3527
    %3617 = vmatprep.subr.mxu0 0.0
    %3618 = vmatpush1.xpose.msra.mxu0 %v3530
    %3619 = vmatprep.subr.mxu0 0.0
    %3620 = vmatpush1.xpose.msra.mxu0 %v3533
    %3621 = vmatprep.subr.mxu0 0.0
    %3622 = vmatpush1.xpose.msra.mxu0 %v3536
    %3623 = vmatprep.subr.mxu0 0.0
    %3624 = vmatpush1.xpose.msra.mxu0 %v3539
    %3625 = vmatprep.subr.mxu0 0.0
    %3626 = vmatpush1.xpose.msra.mxu0 %v3542
    %3627 = vmatprep.subr.mxu0 0.0
    %3628 = vmatpush1.xpose.msra.mxu0 %v3545
    %3629 = vmatprep.subr.mxu0 0.0
    %3630 = vmatpush1.xpose.msra.mxu0 %v3548
    %3631 = vmatprep.subr.mxu0 0.0
    %3632 = vmatpush1.xpose.msra.mxu0 %v3551
    %3633 = vmatprep.subr.mxu0 0.0
    %3634 = vmatpush1.xpose.msra.mxu0 %v3554
    %3635 = vmatprep.subr.mxu0 0.0
    %3636 = vmatpush1.xpose.msra.mxu0 %v3557
    %3637 = vmatprep.subr.mxu0 0.0
    %3638 = vmatpush1.xpose.msra.mxu0 %v3560
    %3639 = vmatprep.subr.mxu0 0.0
    %3640 = vmatpush1.xpose.msra.mxu0 %v3563
    %3641 = vmatprep.subr.mxu0 0.0
    %3642 = vmatpush1.xpose.msra.mxu0 %v3566
    %3643 = vmatprep.subr.mxu0 0.0
    %3644 = vmatpush1.xpose.msra.mxu0 %v3569
    %3645 = vmatprep.subr.mxu0 0.0
    %3646 = vmatpush1.xpose.msra.mxu0 %v3572
    %3647 = vmatprep.subr.mxu0 0.0
    %3648 = vmatpush1.xpose.msra.mxu0 %v3575
    %3649 = vmatprep.subr.mxu0 0.0
    %3650 = vmatpush1.xpose.msra.mxu0 %v3578
    %3651 = vmatprep.subr.mxu0 0.0
    %3652 = vmatpush1.xpose.msra.mxu0 %v3581
    %3653 = vmatprep.subr.mxu0 0.0
    %3654 = vmatpush1.xpose.msra.mxu0 %v3584
    %3655 = vmatprep.subr.mxu0 0.0
    %3656 = vmatpush1.xpose.msra.mxu0 %v3587
    %3657 = vmatprep.subr.mxu0 0.0
    %3658 = vmatpush1.xpose.msra.mxu0 %v3590
    %3659 = vmatprep.subr.mxu0 0.0
    %3660 = vmatpush1.xpose.msra.mxu0 %v3593
    %3661 = vmatprep.subr.mxu0 0.0
    %3662 = vmatpush1.xpose.msra.mxu0 %v3596
    %3663 = vmatprep.subr.mxu0 0.0
    %3664 = vmatpush1.xpose.msra.mxu0 %v3599
    %3665 = vmatprep.mubr.f32.mxu0 0.0
    %3666 = vmatmul.mubr.f32.gmra.mrb[0].mxu0 %v2668
    %v3667 = vpop.f32.mrb[0].mxu0
    %v3668 = vadd.f32 0.0, %v3667
    %v3669 = vpop.f32.mrb[0].mxu0
    %v3670 = vadd.f32 0.0, %v3669
    %3671 = vdwg.mxu0
    %v3673 = vsel %vm2666, %v2601, 0
    %v3676 = vsel %vm2666, %v2602, 0
    %v3679 = vsel %vm2666, %v2603, 0
    %v3682 = vsel %vm2666, %v2604, 0
    %v3685 = vsel %vm2666, %v2605, 0
    %v3688 = vsel %vm2666, %v2606, 0
    %v3691 = vsel %vm2666, %v2607, 0
    %v3694 = vsel %vm2666, %v2608, 0
    %v3697 = vsel %vm2666, %v2609, 0
    %v3700 = vsel %vm2666, %v2610, 0
    %v3703 = vsel %vm2666, %v2611, 0
    %v3706 = vsel %vm2666, %v2612, 0
    %v3709 = vsel %vm2666, %v2613, 0
    %v3712 = vsel %vm2666, %v2614, 0
    %v3715 = vsel %vm2666, %v2615, 0
    %v3718 = vsel %vm2666, %v2616, 0
    %v3721 = vsel %vm2666, %v2617, 0
    %v3724 = vsel %vm2666, %v2618, 0
    %v3727 = vsel %vm2666, %v2619, 0
    %v3730 = vsel %vm2666, %v2620, 0
    %v3733 = vsel %vm2666, %v2621, 0
    %v3736 = vsel %vm2666, %v2622, 0
    %v3739 = vsel %vm2666, %v2623, 0
    %v3742 = vsel %vm2666, %v2624, 0
    %v3745 = vsel %vm2666, %v2625, 0
    %v3748 = vsel %vm2666, %v2626, 0
    %v3751 = vsel %vm2666, %v2627, 0
    %v3754 = vsel %vm2666, %v2628, 0
    %v3757 = vsel %vm2666, %v2629, 0
    %v3760 = vsel %vm2666, %v2630, 0
    %v3763 = vsel %vm2666, %v2631, 0
    %v3766 = vsel %vm2666, %v2632, 0
    %3768 = vmatprep.subr.mxu0 0.0
    %3769 = vmatpush1.xpose.msra.mxu0 %v3673
    %3770 = vmatprep.subr.mxu0 0.0
    %3771 = vmatpush1.xpose.msra.mxu0 %v3676
    %3772 = vmatprep.subr.mxu0 0.0
    %3773 = vmatpush1.xpose.msra.mxu0 %v3679
    %3774 = vmatprep.subr.mxu0 0.0
    %3775 = vmatpush1.xpose.msra.mxu0 %v3682
    %3776 = vmatprep.subr.mxu0 0.0
    %3777 = vmatpush1.xpose.msra.mxu0 %v3685
    %3778 = vmatprep.subr.mxu0 0.0
    %3779 = vmatpush1.xpose.msra.mxu0 %v3688
    %3780 = vmatprep.subr.mxu0 0.0
    %3781 = vmatpush1.xpose.msra.mxu0 %v3691
    %3782 = vmatprep.subr.mxu0 0.0
    %3783 = vmatpush1.xpose.msra.mxu0 %v3694
    %3784 = vmatprep.subr.mxu0 0.0
    %3785 = vmatpush1.xpose.msra.mxu0 %v3697
    %3786 = vmatprep.subr.mxu0 0.0
    %3787 = vmatpush1.xpose.msra.mxu0 %v3700
    %3788 = vmatprep.subr.mxu0 0.0
    %3789 = vmatpush1.xpose.msra.mxu0 %v3703
    %3790 = vmatprep.subr.mxu0 0.0
    %3791 = vmatpush1.xpose.msra.mxu0 %v3706
    %3792 = vmatprep.subr.mxu0 0.0
    %3793 = vmatpush1.xpose.msra.mxu0 %v3709
    %3794 = vmatprep.subr.mxu0 0.0
    %3795 = vmatpush1.xpose.msra.mxu0 %v3712
    %3796 = vmatprep.subr.mxu0 0.0
    %3797 = vmatpush1.xpose.msra.mxu0 %v3715
    %3798 = vmatprep.subr.mxu0 0.0
    %3799 = vmatpush1.xpose.msra.mxu0 %v3718
    %3800 = vmatprep.subr.mxu0 0.0
    %3801 = vmatpush1.xpose.msra.mxu0 %v3721
    %3802 = vmatprep.subr.mxu0 0.0
    %3803 = vmatpush1.xpose.msra.mxu0 %v3724
    %3804 = vmatprep.subr.mxu0 0.0
    %3805 = vmatpush1.xpose.msra.mxu0 %v3727
    %3806 = vmatprep.subr.mxu0 0.0
    %3807 = vmatpush1.xpose.msra.mxu0 %v3730
    %3808 = vmatprep.subr.mxu0 0.0
    %3809 = vmatpush1.xpose.msra.mxu0 %v3733
    %3810 = vmatprep.subr.mxu0 0.0
    %3811 = vmatpush1.xpose.msra.mxu0 %v3736
    %3812 = vmatprep.subr.mxu0 0.0
    %3813 = vmatpush1.xpose.msra.mxu0 %v3739
    %3814 = vmatprep.subr.mxu0 0.0
    %3815 = vmatpush1.xpose.msra.mxu0 %v3742
    %3816 = vmatprep.subr.mxu0 0.0
    %3817 = vmatpush1.xpose.msra.mxu0 %v3745
    %3818 = vmatprep.subr.mxu0 0.0
    %3819 = vmatpush1.xpose.msra.mxu0 %v3748
    %3820 = vmatprep.subr.mxu0 0.0
    %3821 = vmatpush1.xpose.msra.mxu0 %v3751
    %3822 = vmatprep.subr.mxu0 0.0
    %3823 = vmatpush1.xpose.msra.mxu0 %v3754
    %3824 = vmatprep.subr.mxu0 0.0
    %3825 = vmatpush1.xpose.msra.mxu0 %v3757
    %3826 = vmatprep.subr.mxu0 0.0
    %3827 = vmatpush1.xpose.msra.mxu0 %v3760
    %3828 = vmatprep.subr.mxu0 0.0
    %3829 = vmatpush1.xpose.msra.mxu0 %v3763
    %3830 = vmatprep.subr.mxu0 0.0
    %3831 = vmatpush1.xpose.msra.mxu0 %v3766
    %3832 = vmatprep.mubr.f32.mxu0 0.0
    %3833 = vmatmul.mubr.f32.gmra.mrb[0].mxu0 %v2668
    %v3834 = vpop.f32.mrb[0].mxu0
    %v3835 = vadd.f32 0.0, %v3834
    %v3836 = vpop.f32.mrb[0].mxu0
    %v3837 = vadd.f32 0.0, %v3836
    %3838 = vdwg.mxu0
    %v3840 = vsel %vm2666, %v2633, 0
    %v3843 = vsel %vm2666, %v2634, 0
    %v3846 = vsel %vm2666, %v2635, 0
    %v3849 = vsel %vm2666, %v2636, 0
    %v3852 = vsel %vm2666, %v2637, 0
    %v3855 = vsel %vm2666, %v2638, 0
    %v3858 = vsel %vm2666, %v2639, 0
    %v3861 = vsel %vm2666, %v2640, 0
    %v3864 = vsel %vm2666, %v2641, 0
    %v3867 = vsel %vm2666, %v2642, 0
    %v3870 = vsel %vm2666, %v2643, 0
    %v3873 = vsel %vm2666, %v2644, 0
    %v3876 = vsel %vm2666, %v2645, 0
    %v3879 = vsel %vm2666, %v2646, 0
    %v3882 = vsel %vm2666, %v2647, 0
    %v3885 = vsel %vm2666, %v2648, 0
    %v3888 = vsel %vm2666, %v2649, 0
    %v3891 = vsel %vm2666, %v2650, 0
    %v3894 = vsel %vm2666, %v2651, 0
    %v3897 = vsel %vm2666, %v2652, 0
    %v3900 = vsel %vm2666, %v2653, 0
    %v3903 = vsel %vm2666, %v2654, 0
    %v3906 = vsel %vm2666, %v2655, 0
    %v3909 = vsel %vm2666, %v2656, 0
    %v3912 = vsel %vm2666, %v2657, 0
    %v3915 = vsel %vm2666, %v2658, 0
    %v3918 = vsel %vm2666, %v2659, 0
    %v3921 = vsel %vm2666, %v2660, 0
    %v3924 = vsel %vm2666, %v2661, 0
    %v3927 = vsel %vm2666, %v2662, 0
    %v3930 = vsel %vm2666, %v2663, 0
    %v3933 = vsel %vm2666, %v2664, 0
    %3935 = vmatprep.subr.mxu0 0.0
    %3936 = vmatpush1.xpose.msra.mxu0 %v3840
    %3937 = vmatprep.subr.mxu0 0.0
    %3938 = vmatpush1.xpose.msra.mxu0 %v3843
    %3939 = vmatprep.subr.mxu0 0.0
    %3940 = vmatpush1.xpose.msra.mxu0 %v3846
    %3941 = vmatprep.subr.mxu0 0.0
    %3942 = vmatpush1.xpose.msra.mxu0 %v3849
    %3943 = vmatprep.subr.mxu0 0.0
    %3944 = vmatpush1.xpose.msra.mxu0 %v3852
    %3945 = vmatprep.subr.mxu0 0.0
    %3946 = vmatpush1.xpose.msra.mxu0 %v3855
    %3947 = vmatprep.subr.mxu0 0.0
    %3948 = vmatpush1.xpose.msra.mxu0 %v3858
    %3949 = vmatprep.subr.mxu0 0.0
    %3950 = vmatpush1.xpose.msra.mxu0 %v3861
    %3951 = vmatprep.subr.mxu0 0.0
    %3952 = vmatpush1.xpose.msra.mxu0 %v3864
    %3953 = vmatprep.subr.mxu0 0.0
    %3954 = vmatpush1.xpose.msra.mxu0 %v3867
    %3955 = vmatprep.subr.mxu0 0.0
    %3956 = vmatpush1.xpose.msra.mxu0 %v3870
    %3957 = vmatprep.subr.mxu0 0.0
    %3958 = vmatpush1.xpose.msra.mxu0 %v3873
    %3959 = vmatprep.subr.mxu0 0.0
    %3960 = vmatpush1.xpose.msra.mxu0 %v3876
    %3961 = vmatprep.subr.mxu0 0.0
    %3962 = vmatpush1.xpose.msra.mxu0 %v3879
    %3963 = vmatprep.subr.mxu0 0.0
    %3964 = vmatpush1.xpose.msra.mxu0 %v3882
    %3965 = vmatprep.subr.mxu0 0.0
    %3966 = vmatpush1.xpose.msra.mxu0 %v3885
    %3967 = vmatprep.subr.mxu0 0.0
    %3968 = vmatpush1.xpose.msra.mxu0 %v3888
    %3969 = vmatprep.subr.mxu0 0.0
    %3970 = vmatpush1.xpose.msra.mxu0 %v3891
    %3971 = vmatprep.subr.mxu0 0.0
    %3972 = vmatpush1.xpose.msra.mxu0 %v3894
    %3973 = vmatprep.subr.mxu0 0.0
    %3974 = vmatpush1.xpose.msra.mxu0 %v3897
    %3975 = vmatprep.subr.mxu0 0.0
    %3976 = vmatpush1.xpose.msra.mxu0 %v3900
    %3977 = vmatprep.subr.mxu0 0.0
    %3978 = vmatpush1.xpose.msra.mxu0 %v3903
    %3979 = vmatprep.subr.mxu0 0.0
    %3980 = vmatpush1.xpose.msra.mxu0 %v3906
    %3981 = vmatprep.subr.mxu0 0.0
    %3982 = vmatpush1.xpose.msra.mxu0 %v3909
    %3983 = vmatprep.subr.mxu0 0.0
    %3984 = vmatpush1.xpose.msra.mxu0 %v3912
    %3985 = vmatprep.subr.mxu0 0.0
    %3986 = vmatpush1.xpose.msra.mxu0 %v3915
    %3987 = vmatprep.subr.mxu0 0.0
    %3988 = vmatpush1.xpose.msra.mxu0 %v3918
    %3989 = vmatprep.subr.mxu0 0.0
    %3990 = vmatpush1.xpose.msra.mxu0 %v3921
    %3991 = vmatprep.subr.mxu0 0.0
    %3992 = vmatpush1.xpose.msra.mxu0 %v3924
    %3993 = vmatprep.subr.mxu0 0.0
    %3994 = vmatpush1.xpose.msra.mxu0 %v3927
    %3995 = vmatprep.subr.mxu0 0.0
    %3996 = vmatpush1.xpose.msra.mxu0 %v3930
    %3997 = vmatprep.subr.mxu0 0.0
    %3998 = vmatpush1.xpose.msra.mxu0 %v3933
    %3999 = vmatprep.mubr.f32.mxu0 0.0
    %4000 = vmatmul.mubr.f32.gmra.mrb[0].mxu0 %v2668
    %v4001 = vpop.f32.mrb[0].mxu0
    %v4002 = vadd.f32 0.0, %v4001
    %v4003 = vpop.f32.mrb[0].mxu0
    %v4004 = vadd.f32 0.0, %v4003
    %4005 = vdwg.mxu0
    %vm4006 = vcmask 1040384
    %v4007 = vsel %vm4006, %v2833, -inf
    %v4008 = vsel %vm4006, %v2835, -inf
    %v4009 = vmax.f32 %v4007, %v4008
    %4010 = vmax.xlane.f32.xlu0 %v4009
    %v4011 = vpop.xlane.xlu0 %4010
    %v4012 = vsel %vm4006, %v3000, -inf
    %v4013 = vsel %vm4006, %v3002, -inf
    %v4014 = vmax.f32 %v4012, %v4013
    %4015 = vmax.xlane.f32.xlu0 %v4014
    %v4016 = vpop.xlane.xlu0 %4015
    %v4017 = vsel %vm4006, %v3167, -inf
    %v4018 = vsel %vm4006, %v3169, -inf
    %v4019 = vmax.f32 %v4017, %v4018
    %4020 = vmax.xlane.f32.xlu0 %v4019
    %v4021 = vpop.xlane.xlu0 %4020
    %v4022 = vsel %vm4006, %v3334, -inf
    %v4023 = vsel %vm4006, %v3336, -inf
    %v4024 = vmax.f32 %v4022, %v4023
    %4025 = vmax.xlane.f32.xlu0 %v4024
    %v4026 = vpop.xlane.xlu0 %4025
    %v4027 = vsel %vm4006, %v3501, -inf
    %v4028 = vsel %vm4006, %v3503, -inf
    %v4029 = vmax.f32 %v4027, %v4028
    %4030 = vmax.xlane.f32.xlu0 %v4029
    %v4031 = vpop.xlane.xlu0 %4030
    %v4032 = vsel %vm4006, %v3668, -inf
    %v4033 = vsel %vm4006, %v3670, -inf
    %v4034 = vmax.f32 %v4032, %v4033
    %4035 = vmax.xlane.f32.xlu0 %v4034
    %v4036 = vpop.xlane.xlu0 %4035
    %v4037 = vsel %vm4006, %v3835, -inf
    %v4038 = vsel %vm4006, %v3837, -inf
    %v4039 = vmax.f32 %v4037, %v4038
    %4040 = vmax.xlane.f32.xlu0 %v4039
    %v4041 = vpop.xlane.xlu0 %4040
    %v4042 = vsel %vm4006, %v4002, -inf
    %v4043 = vsel %vm4006, %v4004, -inf
    %v4044 = vmax.f32 %v4042, %v4043
    %4045 = vmax.xlane.f32.xlu0 %v4044
    %v4046 = vpop.xlane.xlu0 %4045
    %v4047 = vsub.f32 %v2833, %v4011
    %v4048 = vsub.f32 %v2835, %v4011
    %v4049 = vsub.f32 %v3000, %v4016
    %v4050 = vsub.f32 %v3002, %v4016
    %v4051 = vsub.f32 %v3167, %v4021
    %v4052 = vsub.f32 %v3169, %v4021
    %v4053 = vsub.f32 %v3334, %v4026
    %v4054 = vsub.f32 %v3336, %v4026
    %v4055 = vsub.f32 %v3501, %v4031
    %v4056 = vsub.f32 %v3503, %v4031
    %v4057 = vsub.f32 %v3668, %v4036
    %v4058 = vsub.f32 %v3670, %v4036
    %v4059 = vsub.f32 %v3835, %v4041
    %v4060 = vsub.f32 %v3837, %v4041
    %v4061 = vsub.f32 %v4002, %v4046
    %v4062 = vsub.f32 %v4004, %v4046
    %v4063 = vmul.f32 %v4047, 1.442695
    %v4064 = vpow.pop %v4063
    %v4065 = vmul.f32 %v4048, 1.442695
    %v4066 = vpow.pop %v4065
    %v4067 = vmul.f32 %v4049, 1.442695
    %v4068 = vpow.pop %v4067
    %v4069 = vmul.f32 %v4050, 1.442695
    %v4070 = vpow.pop %v4069
    %v4071 = vmul.f32 %v4051, 1.442695
    %v4072 = vpow.pop %v4071
    %v4073 = vmul.f32 %v4052, 1.442695
    %v4074 = vpow.pop %v4073
    %v4075 = vmul.f32 %v4053, 1.442695
    %v4076 = vpow.pop %v4075
    %v4077 = vmul.f32 %v4054, 1.442695
    %v4078 = vpow.pop %v4077
    %v4079 = vmul.f32 %v4055, 1.442695
    %v4080 = vpow.pop %v4079
    %v4081 = vmul.f32 %v4056, 1.442695
    %v4082 = vpow.pop %v4081
    %v4083 = vmul.f32 %v4057, 1.442695
    %v4084 = vpow.pop %v4083
    %v4085 = vmul.f32 %v4058, 1.442695
    %v4086 = vpow.pop %v4085
    %v4087 = vmul.f32 %v4059, 1.442695
    %v4088 = vpow.pop %v4087
    %v4089 = vmul.f32 %v4060, 1.442695
    %v4090 = vpow.pop %v4089
    %v4091 = vmul.f32 %v4061, 1.442695
    %v4092 = vpow.pop %v4091
    %v4093 = vmul.f32 %v4062, 1.442695
    %v4094 = vpow.pop %v4093
    %v4095 = vsel %vm4006, %v4064, 0.0
    %v4096 = vsel %vm4006, %v4066, 0.0
    %v4097 = vadd.f32 %v4095, %v4096
    %4098 = vadd.xlane.f32.xlu0 %v4097
    %v4099 = vpop.xlane.xlu0 %4098
    %v4100 = vsel %vm4006, %v4068, 0.0
    %v4101 = vsel %vm4006, %v4070, 0.0
    %v4102 = vadd.f32 %v4100, %v4101
    %4103 = vadd.xlane.f32.xlu0 %v4102
    %v4104 = vpop.xlane.xlu0 %4103
    %v4105 = vsel %vm4006, %v4072, 0.0
    %v4106 = vsel %vm4006, %v4074, 0.0
    %v4107 = vadd.f32 %v4105, %v4106
    %4108 = vadd.xlane.f32.xlu0 %v4107
    %v4109 = vpop.xlane.xlu0 %4108
    %v4110 = vsel %vm4006, %v4076, 0.0
    %v4111 = vsel %vm4006, %v4078, 0.0
    %v4112 = vadd.f32 %v4110, %v4111
    %4113 = vadd.xlane.f32.xlu0 %v4112
    %v4114 = vpop.xlane.xlu0 %4113
    %v4115 = vsel %vm4006, %v4080, 0.0
    %v4116 = vsel %vm4006, %v4082, 0.0
    %v4117 = vadd.f32 %v4115, %v4116
    %4118 = vadd.xlane.f32.xlu0 %v4117
    %v4119 = vpop.xlane.xlu0 %4118
    %v4120 = vsel %vm4006, %v4084, 0.0
    %v4121 = vsel %vm4006, %v4086, 0.0
    %v4122 = vadd.f32 %v4120, %v4121
    %4123 = vadd.xlane.f32.xlu0 %v4122
    %v4124 = vpop.xlane.xlu0 %4123
    %v4125 = vsel %vm4006, %v4088, 0.0
    %v4126 = vsel %vm4006, %v4090, 0.0
    %v4127 = vadd.f32 %v4125, %v4126
    %4128 = vadd.xlane.f32.xlu0 %v4127
    %v4129 = vpop.xlane.xlu0 %4128
    %v4130 = vsel %vm4006, %v4092, 0.0
    %v4131 = vsel %vm4006, %v4094, 0.0
    %v4132 = vadd.f32 %v4130, %v4131
    %4133 = vadd.xlane.f32.xlu0 %v4132
    %v4134 = vpop.xlane.xlu0 %4133
    %v4135 = vrcp.pop %v4099
    %v4136 = vmul.f32 %v4064, %v4135
    %v4137 = vmul.f32 %v4066, %v4135
    %v4138 = vrcp.pop %v4104
    %v4139 = vmul.f32 %v4068, %v4138
    %v4140 = vmul.f32 %v4070, %v4138
    %v4141 = vrcp.pop %v4109
    %v4142 = vmul.f32 %v4072, %v4141
    %v4143 = vmul.f32 %v4074, %v4141
    %v4144 = vrcp.pop %v4114
    %v4145 = vmul.f32 %v4076, %v4144
    %v4146 = vmul.f32 %v4078, %v4144
    %v4147 = vrcp.pop %v4119
    %v4148 = vmul.f32 %v4080, %v4147
    %v4149 = vmul.f32 %v4082, %v4147
    %v4150 = vrcp.pop %v4124
    %v4151 = vmul.f32 %v4084, %v4150
    %v4152 = vmul.f32 %v4086, %v4150
    %v4153 = vrcp.pop %v4129
    %v4154 = vmul.f32 %v4088, %v4153
    %v4155 = vmul.f32 %v4090, %v4153
    %v4156 = vrcp.pop %v4134
    %v4157 = vmul.f32 %v4092, %v4156
    %v4158 = vmul.f32 %v4094, %v4156
    %v4175 = vcombine.low %v4136, %v4137
    %v4177 = vunpack.c.l.s4 1966171168
    %v4178 = vunpack.c.0.s8 %v4177
    %v4179 = vlaneseq
    %v4180 = vshrl.u32 %v4179, 7
    %v4181 = vsub.s32 %v4178, %v4180
    %v4182 = vrot.slane %v4175, %v4181
    %v4184 = vunpack.c.l.s4 1966171168
    %v4185 = vunpack.c.0.s8 %v4184
    %v4186 = vlaneseq
    %v4187 = vshrl.u32 %v4186, 7
    %v4188 = vsub.s32 %v4185, %v4187
    %v4189 = vrot.slane %v4182, %v4188
    %v4190 = vcombine.low %v4139, %v4140
    %v4192 = vunpack.c.l.s4 1966171168
    %v4193 = vunpack.c.0.s8 %v4192
    %v4194 = vlaneseq
    %v4195 = vshrl.u32 %v4194, 7
    %v4196 = vsub.s32 %v4193, %v4195
    %v4197 = vrot.slane %v4190, %v4196
    %v4199 = vunpack.c.l.s4 1966171168
    %v4200 = vunpack.c.0.s8 %v4199
    %v4201 = vlaneseq
    %v4202 = vshrl.u32 %v4201, 7
    %v4203 = vsub.s32 %v4200, %v4202
    %v4204 = vrot.slane %v4197, %v4203
    %v4205 = vcombine.low %v4142, %v4143
    %v4207 = vunpack.c.l.s4 1966171168
    %v4208 = vunpack.c.0.s8 %v4207
    %v4209 = vlaneseq
    %v4210 = vshrl.u32 %v4209, 7
    %v4211 = vsub.s32 %v4208, %v4210
    %v4212 = vrot.slane %v4205, %v4211
    %v4214 = vunpack.c.l.s4 1966171168
    %v4215 = vunpack.c.0.s8 %v4214
    %v4216 = vlaneseq
    %v4217 = vshrl.u32 %v4216, 7
    %v4218 = vsub.s32 %v4215, %v4217
    %v4219 = vrot.slane %v4212, %v4218
    %v4220 = vcombine.low %v4145, %v4146
    %v4222 = vunpack.c.l.s4 1966171168
    %v4223 = vunpack.c.0.s8 %v4222
    %v4224 = vlaneseq
    %v4225 = vshrl.u32 %v4224, 7
    %v4226 = vsub.s32 %v4223, %v4225
    %v4227 = vrot.slane %v4220, %v4226
    %v4229 = vunpack.c.l.s4 1966171168
    %v4230 = vunpack.c.0.s8 %v4229
    %v4231 = vlaneseq
    %v4232 = vshrl.u32 %v4231, 7
    %v4233 = vsub.s32 %v4230, %v4232
    %v4234 = vrot.slane %v4227, %v4233
    %v4235 = vcombine.low %v4148, %v4149
    %v4237 = vunpack.c.l.s4 1966171168
    %v4238 = vunpack.c.0.s8 %v4237
    %v4239 = vlaneseq
    %v4240 = vshrl.u32 %v4239, 7
    %v4241 = vsub.s32 %v4238, %v4240
    %v4242 = vrot.slane %v4235, %v4241
    %v4244 = vunpack.c.l.s4 1966171168
    %v4245 = vunpack.c.0.s8 %v4244
    %v4246 = vlaneseq
    %v4247 = vshrl.u32 %v4246, 7
    %v4248 = vsub.s32 %v4245, %v4247
    %v4249 = vrot.slane %v4242, %v4248
    %v4250 = vcombine.low %v4151, %v4152
    %v4252 = vunpack.c.l.s4 1966171168
    %v4253 = vunpack.c.0.s8 %v4252
    %v4254 = vlaneseq
    %v4255 = vshrl.u32 %v4254, 7
    %v4256 = vsub.s32 %v4253, %v4255
    %v4257 = vrot.slane %v4250, %v4256
    %v4259 = vunpack.c.l.s4 1966171168
    %v4260 = vunpack.c.0.s8 %v4259
    %v4261 = vlaneseq
    %v4262 = vshrl.u32 %v4261, 7
    %v4263 = vsub.s32 %v4260, %v4262
    %v4264 = vrot.slane %v4257, %v4263
    %v4265 = vcombine.low %v4154, %v4155
    %v4267 = vunpack.c.l.s4 1966171168
    %v4268 = vunpack.c.0.s8 %v4267
    %v4269 = vlaneseq
    %v4270 = vshrl.u32 %v4269, 7
    %v4271 = vsub.s32 %v4268, %v4270
    %v4272 = vrot.slane %v4265, %v4271
    %v4274 = vunpack.c.l.s4 1966171168
    %v4275 = vunpack.c.0.s8 %v4274
    %v4276 = vlaneseq
    %v4277 = vshrl.u32 %v4276, 7
    %v4278 = vsub.s32 %v4275, %v4277
    %v4279 = vrot.slane %v4272, %v4278
    %v4280 = vcombine.low %v4157, %v4158
    %v4282 = vunpack.c.l.s4 1966171168
    %v4283 = vunpack.c.0.s8 %v4282
    %v4284 = vlaneseq
    %v4285 = vshrl.u32 %v4284, 7
    %v4286 = vsub.s32 %v4283, %v4285
    %v4287 = vrot.slane %v4280, %v4286
    %v4289 = vunpack.c.l.s4 1966171168
    %v4290 = vunpack.c.0.s8 %v4289
    %v4291 = vlaneseq
    %v4292 = vshrl.u32 %v4291, 7
    %v4293 = vsub.s32 %v4290, %v4292
    %v4294 = vrot.slane %v4287, %v4293
    %v4303 = vlaneseq
    %vm4304 = vcmp.ge.s32.totalorder %v4303, 0
    %vm4305 = vcmp.lt.s32.totalorder %v4303, 256
    %vm4306 = vmand %vm4304, %vm4305
    %4307 = vst.msk [vmem:[#allocation3] sm:$0x3] %vm4306, %v4189
    %4308 = vst.msk [vmem:[#allocation3 + $0x2] sm:$0x3] %vm4306, %v4204
    %4309 = vst.msk [vmem:[#allocation3 + $0x4] sm:$0x3] %vm4306, %v4219
    %4310 = vst.msk [vmem:[#allocation3 + $0x6] sm:$0x3] %vm4306, %v4234
    %4311 = vst.msk [vmem:[#allocation3 + $0x8] sm:$0x3] %vm4306, %v4249
    %4312 = vst.msk [vmem:[#allocation3 + $0xa] sm:$0x3] %vm4306, %v4264
    %4313 = vst.msk [vmem:[#allocation3 + $0xc] sm:$0x3] %vm4306, %v4279
    %4314 = vst.msk [vmem:[#allocation3 + $0xe] sm:$0x3] %vm4306, %v4294
    %4315 = vmatprep.subr.mxu0 0.0
    %4316 = vmatpush1.msra.mxu0 %v28
    %4317 = vmatprep.subr.mxu0 0.0
    %4318 = vmatpush1.msra.mxu0 %v29
    %4319 = vmatprep.subr.mxu0 0.0
    %4320 = vmatpush1.msra.mxu0 %v30
    %4321 = vmatprep.subr.mxu0 0.0
    %4322 = vmatpush1.msra.mxu0 %v31
    %4323 = vmatprep.subr.mxu0 0.0
    %4324 = vmatpush1.msra.mxu0 %v32
    %4325 = vmatprep.subr.mxu0 0.0
    %4326 = vmatpush1.msra.mxu0 %v33
    %4327 = vmatprep.subr.mxu0 0.0
    %4328 = vmatpush1.msra.mxu0 %v34
    %4329 = vmatprep.subr.mxu0 0.0
    %4330 = vmatpush1.msra.mxu0 %v35
    %4331 = vmatprep.subr.mxu0 0.0
    %4332 = vmatpush1.msra.mxu0 %v36
    %4333 = vmatprep.subr.mxu0 0.0
    %4334 = vmatpush1.msra.mxu0 %v37
    %4335 = vmatprep.subr.mxu0 0.0
    %4336 = vmatpush1.msra.mxu0 %v38
    %4337 = vmatprep.subr.mxu0 0.0
    %4338 = vmatpush1.msra.mxu0 %v39
    %4339 = vmatprep.subr.mxu0 0.0
    %4340 = vmatpush1.msra.mxu0 %v40
    %4341 = vmatprep.subr.mxu0 0.0
    %4342 = vmatpush1.msra.mxu0 %v41
    %4343 = vmatprep.subr.mxu0 0.0
    %4344 = vmatpush1.msra.mxu0 %v42
    %4345 = vmatprep.subr.mxu0 0.0
    %4346 = vmatpush1.msra.mxu0 %v43
    %4347 = vmatprep.subr.mxu0 0.0
    %4348 = vmatpush1.msra.mxu0 %v44
    %4349 = vmatprep.subr.mxu0 0.0
    %4350 = vmatpush1.msra.mxu0 %v45
    %4351 = vmatprep.subr.mxu0 0.0
    %4352 = vmatpush1.msra.mxu0 %v46
    %4353 = vmatprep.subr.mxu0 0.0
    %4354 = vmatpush1.msra.mxu0 %v47
    %4355 = vmatprep.subr.mxu0 0.0
    %4356 = vmatpush1.msra.mxu0 %v48
    %4357 = vmatprep.subr.mxu0 0.0
    %4358 = vmatpush1.msra.mxu0 %v49
    %4359 = vmatprep.subr.mxu0 0.0
    %4360 = vmatpush1.msra.mxu0 %v50
    %4361 = vmatprep.subr.mxu0 0.0
    %4362 = vmatpush1.msra.mxu0 %v51
    %4363 = vmatprep.subr.mxu0 0.0
    %4364 = vmatpush1.msra.mxu0 %v52
    %4365 = vmatprep.subr.mxu0 0.0
    %4366 = vmatpush1.msra.mxu0 %v53
    %4367 = vmatprep.subr.mxu0 0.0
    %4368 = vmatpush1.msra.mxu0 %v54
    %4369 = vmatprep.subr.mxu0 0.0
    %4370 = vmatpush1.msra.mxu0 %v55
    %4371 = vmatprep.subr.mxu0 0.0
    %4372 = vmatpush1.msra.mxu0 %v56
    %4373 = vmatprep.subr.mxu0 0.0
    %4374 = vmatpush1.msra.mxu0 %v57
    %4375 = vmatprep.subr.mxu0 0.0
    %4376 = vmatpush1.msra.mxu0 %v58
    %4377 = vmatprep.subr.mxu0 0.0
    %4378 = vmatpush1.msra.mxu0 %v59
    %4379 = vmatprep.mubr.f32.mxu0 %v4137
    %4380 = vmatmul.mubr.f32.gmra.mrb[0].mxu0 %v4136
    %v4381 = vpop.f32.mrb[0].mxu0
    %v4382 = vadd.f32 0.0, %v4381
    %v4383 = vpop.f32.mrb[0].mxu0
    %4384 = vdwg.mxu0
    %4385 = vmatprep.subr.mxu0 0.0
    %4386 = vmatpush1.msra.mxu0 %v60
    %4387 = vmatprep.subr.mxu0 0.0
    %4388 = vmatpush1.msra.mxu0 %v61
    %4389 = vmatprep.subr.mxu0 0.0
    %4390 = vmatpush1.msra.mxu0 %v62
    %4391 = vmatprep.subr.mxu0 0.0
    %4392 = vmatpush1.msra.mxu0 %v63
    %4393 = vmatprep.subr.mxu0 0.0
    %4394 = vmatpush1.msra.mxu0 %v64
    %4395 = vmatprep.subr.mxu0 0.0
    %4396 = vmatpush1.msra.mxu0 %v65
    %4397 = vmatprep.subr.mxu0 0.0
    %4398 = vmatpush1.msra.mxu0 %v66
    %4399 = vmatprep.subr.mxu0 0.0
    %4400 = vmatpush1.msra.mxu0 %v67
    %4401 = vmatprep.subr.mxu0 0.0
    %4402 = vmatpush1.msra.mxu0 %v68
    %4403 = vmatprep.subr.mxu0 0.0
    %4404 = vmatpush1.msra.mxu0 %v69
    %4405 = vmatprep.subr.mxu0 0.0
    %4406 = vmatpush1.msra.mxu0 %v70
    %4407 = vmatprep.subr.mxu0 0.0
    %4408 = vmatpush1.msra.mxu0 %v71
    %4409 = vmatprep.subr.mxu0 0.0
    %4410 = vmatpush1.msra.mxu0 %v72
    %4411 = vmatprep.subr.mxu0 0.0
    %4412 = vmatpush1.msra.mxu0 %v73
    %4413 = vmatprep.subr.mxu0 0.0
    %4414 = vmatpush1.msra.mxu0 %v74
    %4415 = vmatprep.subr.mxu0 0.0
    %4416 = vmatpush1.msra.mxu0 %v75
    %4417 = vmatprep.subr.mxu0 0.0
    %4418 = vmatpush1.msra.mxu0 %v76
    %4419 = vmatprep.subr.mxu0 0.0
    %4420 = vmatpush1.msra.mxu0 %v77
    %4421 = vmatprep.subr.mxu0 0.0
    %4422 = vmatpush1.msra.mxu0 %v78
    %4423 = vmatprep.subr.mxu0 0.0
    %4424 = vmatpush1.msra.mxu0 %v79
    %4425 = vmatprep.subr.mxu0 0.0
    %4426 = vmatpush1.msra.mxu0 %v80
    %4427 = vmatprep.subr.mxu0 0.0
    %4428 = vmatpush1.msra.mxu0 %v81
    %4429 = vmatprep.subr.mxu0 0.0
    %4430 = vmatpush1.msra.mxu0 %v82
    %4431 = vmatprep.subr.mxu0 0.0
    %4432 = vmatpush1.msra.mxu0 %v83
    %4433 = vmatprep.subr.mxu0 0.0
    %4434 = vmatpush1.msra.mxu0 %v84
    %4435 = vmatprep.subr.mxu0 0.0
    %4436 = vmatpush1.msra.mxu0 %v85
    %4437 = vmatprep.subr.mxu0 0.0
    %4438 = vmatpush1.msra.mxu0 %v86
    %4439 = vmatprep.subr.mxu0 0.0
    %4440 = vmatpush1.msra.mxu0 %v87
    %4441 = vmatprep.subr.mxu0 0.0
    %4442 = vmatpush1.msra.mxu0 %v88
    %4443 = vmatprep.subr.mxu0 0.0
    %4444 = vmatpush1.msra.mxu0 %v89
    %4445 = vmatprep.subr.mxu0 0.0
    %4446 = vmatpush1.msra.mxu0 %v90
    %4447 = vmatprep.subr.mxu0 0.0
    %4448 = vmatpush1.msra.mxu0 %v91
    %4449 = vmatprep.mubr.f32.mxu0 %v4140
    %4450 = vmatmul.mubr.f32.gmra.mrb[0].mxu0 %v4139
    %v4451 = vpop.f32.mrb[0].mxu0
    %v4452 = vadd.f32 0.0, %v4451
    %v4453 = vpop.f32.mrb[0].mxu0
    %4454 = vdwg.mxu0
    %4455 = vmatprep.subr.mxu0 0.0
    %4456 = vmatpush1.msra.mxu0 %v92
    %4457 = vmatprep.subr.mxu0 0.0
    %4458 = vmatpush1.msra.mxu0 %v93
    %4459 = vmatprep.subr.mxu0 0.0
    %4460 = vmatpush1.msra.mxu0 %v94
    %4461 = vmatprep.subr.mxu0 0.0
    %4462 = vmatpush1.msra.mxu0 %v95
    %4463 = vmatprep.subr.mxu0 0.0
    %4464 = vmatpush1.msra.mxu0 %v96
    %4465 = vmatprep.subr.mxu0 0.0
    %4466 = vmatpush1.msra.mxu0 %v97
    %4467 = vmatprep.subr.mxu0 0.0
    %4468 = vmatpush1.msra.mxu0 %v98
    %4469 = vmatprep.subr.mxu0 0.0
    %4470 = vmatpush1.msra.mxu0 %v99
    %4471 = vmatprep.subr.mxu0 0.0
    %4472 = vmatpush1.msra.mxu0 %v100
    %4473 = vmatprep.subr.mxu0 0.0
    %4474 = vmatpush1.msra.mxu0 %v101
    %4475 = vmatprep.subr.mxu0 0.0
    %4476 = vmatpush1.msra.mxu0 %v102
    %4477 = vmatprep.subr.mxu0 0.0
    %4478 = vmatpush1.msra.mxu0 %v103
    %4479 = vmatprep.subr.mxu0 0.0
    %4480 = vmatpush1.msra.mxu0 %v104
    %4481 = vmatprep.subr.mxu0 0.0
    %4482 = vmatpush1.msra.mxu0 %v105
    %4483 = vmatprep.subr.mxu0 0.0
    %4484 = vmatpush1.msra.mxu0 %v106
    %4485 = vmatprep.subr.mxu0 0.0
    %4486 = vmatpush1.msra.mxu0 %v107
    %4487 = vmatprep.subr.mxu0 0.0
    %4488 = vmatpush1.msra.mxu0 %v108
    %4489 = vmatprep.subr.mxu0 0.0
    %4490 = vmatpush1.msra.mxu0 %v109
    %4491 = vmatprep.subr.mxu0 0.0
    %4492 = vmatpush1.msra.mxu0 %v110
    %4493 = vmatprep.subr.mxu0 0.0
    %4494 = vmatpush1.msra.mxu0 %v111
    %4495 = vmatprep.subr.mxu0 0.0
    %4496 = vmatpush1.msra.mxu0 %v112
    %4497 = vmatprep.subr.mxu0 0.0
    %4498 = vmatpush1.msra.mxu0 %v113
    %4499 = vmatprep.subr.mxu0 0.0
    %4500 = vmatpush1.msra.mxu0 %v114
    %4501 = vmatprep.subr.mxu0 0.0
    %4502 = vmatpush1.msra.mxu0 %v115
    %4503 = vmatprep.subr.mxu0 0.0
    %4504 = vmatpush1.msra.mxu0 %v116
    %4505 = vmatprep.subr.mxu0 0.0
    %4506 = vmatpush1.msra.mxu0 %v117
    %4507 = vmatprep.subr.mxu0 0.0
    %4508 = vmatpush1.msra.mxu0 %v118
    %4509 = vmatprep.subr.mxu0 0.0
    %4510 = vmatpush1.msra.mxu0 %v119
    %4511 = vmatprep.subr.mxu0 0.0
    %4512 = vmatpush1.msra.mxu0 %v120
    %4513 = vmatprep.subr.mxu0 0.0
    %4514 = vmatpush1.msra.mxu0 %v121
    %4515 = vmatprep.subr.mxu0 0.0
    %4516 = vmatpush1.msra.mxu0 %v122
    %4517 = vmatprep.subr.mxu0 0.0
    %4518 = vmatpush1.msra.mxu0 %v123
    %4519 = vmatprep.mubr.f32.mxu0 %v4143
    %4520 = vmatmul.mubr.f32.gmra.mrb[0].mxu0 %v4142
    %v4521 = vpop.f32.mrb[0].mxu0
    %v4522 = vadd.f32 0.0, %v4521
    %v4523 = vpop.f32.mrb[0].mxu0
    %4524 = vdwg.mxu0
    %4525 = vmatprep.subr.mxu0 0.0
    %4526 = vmatpush1.msra.mxu0 %v124
    %4527 = vmatprep.subr.mxu0 0.0
    %4528 = vmatpush1.msra.mxu0 %v125
    %4529 = vmatprep.subr.mxu0 0.0
    %4530 = vmatpush1.msra.mxu0 %v126
    %4531 = vmatprep.subr.mxu0 0.0
    %4532 = vmatpush1.msra.mxu0 %v127
    %4533 = vmatprep.subr.mxu0 0.0
    %4534 = vmatpush1.msra.mxu0 %v128
    %4535 = vmatprep.subr.mxu0 0.0
    %4536 = vmatpush1.msra.mxu0 %v129
    %4537 = vmatprep.subr.mxu0 0.0
    %4538 = vmatpush1.msra.mxu0 %v130
    %4539 = vmatprep.subr.mxu0 0.0
    %4540 = vmatpush1.msra.mxu0 %v131
    %4541 = vmatprep.subr.mxu0 0.0
    %4542 = vmatpush1.msra.mxu0 %v132
    %4543 = vmatprep.subr.mxu0 0.0
    %4544 = vmatpush1.msra.mxu0 %v133
    %4545 = vmatprep.subr.mxu0 0.0
    %4546 = vmatpush1.msra.mxu0 %v134
    %4547 = vmatprep.subr.mxu0 0.0
    %4548 = vmatpush1.msra.mxu0 %v135
    %4549 = vmatprep.subr.mxu0 0.0
    %4550 = vmatpush1.msra.mxu0 %v136
    %4551 = vmatprep.subr.mxu0 0.0
    %4552 = vmatpush1.msra.mxu0 %v137
    %4553 = vmatprep.subr.mxu0 0.0
    %4554 = vmatpush1.msra.mxu0 %v138
    %4555 = vmatprep.subr.mxu0 0.0
    %4556 = vmatpush1.msra.mxu0 %v139
    %4557 = vmatprep.subr.mxu0 0.0
    %4558 = vmatpush1.msra.mxu0 %v140
    %4559 = vmatprep.subr.mxu0 0.0
    %4560 = vmatpush1.msra.mxu0 %v141
    %4561 = vmatprep.subr.mxu0 0.0
    %4562 = vmatpush1.msra.mxu0 %v142
    %4563 = vmatprep.subr.mxu0 0.0
    %4564 = vmatpush1.msra.mxu0 %v143
    %4565 = vmatprep.subr.mxu0 0.0
    %4566 = vmatpush1.msra.mxu0 %v144
    %4567 = vmatprep.subr.mxu0 0.0
    %4568 = vmatpush1.msra.mxu0 %v145
    %4569 = vmatprep.subr.mxu0 0.0
    %4570 = vmatpush1.msra.mxu0 %v146
    %4571 = vmatprep.subr.mxu0 0.0
    %4572 = vmatpush1.msra.mxu0 %v147
    %4573 = vmatprep.subr.mxu0 0.0
    %4574 = vmatpush1.msra.mxu0 %v148
    %4575 = vmatprep.subr.mxu0 0.0
    %4576 = vmatpush1.msra.mxu0 %v149
    %4577 = vmatprep.subr.mxu0 0.0
    %4578 = vmatpush1.msra.mxu0 %v150
    %4579 = vmatprep.subr.mxu0 0.0
    %4580 = vmatpush1.msra.mxu0 %v151
    %4581 = vmatprep.subr.mxu0 0.0
    %4582 = vmatpush1.msra.mxu0 %v152
    %4583 = vmatprep.subr.mxu0 0.0
    %4584 = vmatpush1.msra.mxu0 %v153
    %4585 = vmatprep.subr.mxu0 0.0
    %4586 = vmatpush1.msra.mxu0 %v154
    %4587 = vmatprep.subr.mxu0 0.0
    %4588 = vmatpush1.msra.mxu0 %v155
    %4589 = vmatprep.mubr.f32.mxu0 %v4146
    %4590 = vmatmul.mubr.f32.gmra.mrb[0].mxu0 %v4145
    %v4591 = vpop.f32.mrb[0].mxu0
    %v4592 = vadd.f32 0.0, %v4591
    %v4593 = vpop.f32.mrb[0].mxu0
    %4594 = vdwg.mxu0
    %4595 = vmatprep.subr.mxu0 0.0
    %4596 = vmatpush1.msra.mxu0 %v156
    %4597 = vmatprep.subr.mxu0 0.0
    %4598 = vmatpush1.msra.mxu0 %v157
    %4599 = vmatprep.subr.mxu0 0.0
    %4600 = vmatpush1.msra.mxu0 %v158
    %4601 = vmatprep.subr.mxu0 0.0
    %4602 = vmatpush1.msra.mxu0 %v159
    %4603 = vmatprep.subr.mxu0 0.0
    %4604 = vmatpush1.msra.mxu0 %v160
    %4605 = vmatprep.subr.mxu0 0.0
    %4606 = vmatpush1.msra.mxu0 %v161
    %4607 = vmatprep.subr.mxu0 0.0
    %4608 = vmatpush1.msra.mxu0 %v162
    %4609 = vmatprep.subr.mxu0 0.0
    %4610 = vmatpush1.msra.mxu0 %v163
    %4611 = vmatprep.subr.mxu0 0.0
    %4612 = vmatpush1.msra.mxu0 %v164
    %4613 = vmatprep.subr.mxu0 0.0
    %4614 = vmatpush1.msra.mxu0 %v165
    %4615 = vmatprep.subr.mxu0 0.0
    %4616 = vmatpush1.msra.mxu0 %v166
    %4617 = vmatprep.subr.mxu0 0.0
    %4618 = vmatpush1.msra.mxu0 %v167
    %4619 = vmatprep.subr.mxu0 0.0
    %4620 = vmatpush1.msra.mxu0 %v168
    %4621 = vmatprep.subr.mxu0 0.0
    %4622 = vmatpush1.msra.mxu0 %v169
    %4623 = vmatprep.subr.mxu0 0.0
    %4624 = vmatpush1.msra.mxu0 %v170
    %4625 = vmatprep.subr.mxu0 0.0
    %4626 = vmatpush1.msra.mxu0 %v171
    %4627 = vmatprep.subr.mxu0 0.0
    %4628 = vmatpush1.msra.mxu0 %v172
    %4629 = vmatprep.subr.mxu0 0.0
    %4630 = vmatpush1.msra.mxu0 %v173
    %4631 = vmatprep.subr.mxu0 0.0
    %4632 = vmatpush1.msra.mxu0 %v174
    %4633 = vmatprep.subr.mxu0 0.0
    %4634 = vmatpush1.msra.mxu0 %v175
    %4635 = vmatprep.subr.mxu0 0.0
    %4636 = vmatpush1.msra.mxu0 %v176
    %4637 = vmatprep.subr.mxu0 0.0
    %4638 = vmatpush1.msra.mxu0 %v177
    %4639 = vmatprep.subr.mxu0 0.0
    %4640 = vmatpush1.msra.mxu0 %v178
    %4641 = vmatprep.subr.mxu0 0.0
    %4642 = vmatpush1.msra.mxu0 %v179
    %4643 = vmatprep.subr.mxu0 0.0
    %4644 = vmatpush1.msra.mxu0 %v180
    %4645 = vmatprep.subr.mxu0 0.0
    %4646 = vmatpush1.msra.mxu0 %v181
    %4647 = vmatprep.subr.mxu0 0.0
    %4648 = vmatpush1.msra.mxu0 %v182
    %4649 = vmatprep.subr.mxu0 0.0
    %4650 = vmatpush1.msra.mxu0 %v183
    %4651 = vmatprep.subr.mxu0 0.0
    %4652 = vmatpush1.msra.mxu0 %v184
    %4653 = vmatprep.subr.mxu0 0.0
    %4654 = vmatpush1.msra.mxu0 %v185
    %4655 = vmatprep.subr.mxu0 0.0
    %4656 = vmatpush1.msra.mxu0 %v186
    %4657 = vmatprep.subr.mxu0 0.0
    %4658 = vmatpush1.msra.mxu0 %v187
    %4659 = vmatprep.mubr.f32.mxu0 %v4149
    %4660 = vmatmul.mubr.f32.gmra.mrb[0].mxu0 %v4148
    %v4661 = vpop.f32.mrb[0].mxu0
    %v4662 = vadd.f32 0.0, %v4661
    %v4663 = vpop.f32.mrb[0].mxu0
    %4664 = vdwg.mxu0
    %4665 = vmatprep.subr.mxu0 0.0
    %4666 = vmatpush1.msra.mxu0 %v188
    %4667 = vmatprep.subr.mxu0 0.0
    %4668 = vmatpush1.msra.mxu0 %v189
    %4669 = vmatprep.subr.mxu0 0.0
    %4670 = vmatpush1.msra.mxu0 %v190
    %4671 = vmatprep.subr.mxu0 0.0
    %4672 = vmatpush1.msra.mxu0 %v191
    %4673 = vmatprep.subr.mxu0 0.0
    %4674 = vmatpush1.msra.mxu0 %v192
    %4675 = vmatprep.subr.mxu0 0.0
    %4676 = vmatpush1.msra.mxu0 %v193
    %4677 = vmatprep.subr.mxu0 0.0
    %4678 = vmatpush1.msra.mxu0 %v194
    %4679 = vmatprep.subr.mxu0 0.0
    %4680 = vmatpush1.msra.mxu0 %v195
    %4681 = vmatprep.subr.mxu0 0.0
    %4682 = vmatpush1.msra.mxu0 %v196
    %4683 = vmatprep.subr.mxu0 0.0
    %4684 = vmatpush1.msra.mxu0 %v197
    %4685 = vmatprep.subr.mxu0 0.0
    %4686 = vmatpush1.msra.mxu0 %v198
    %4687 = vmatprep.subr.mxu0 0.0
    %4688 = vmatpush1.msra.mxu0 %v199
    %4689 = vmatprep.subr.mxu0 0.0
    %4690 = vmatpush1.msra.mxu0 %v200
    %4691 = vmatprep.subr.mxu0 0.0
    %4692 = vmatpush1.msra.mxu0 %v201
    %4693 = vmatprep.subr.mxu0 0.0
    %4694 = vmatpush1.msra.mxu0 %v202
    %4695 = vmatprep.subr.mxu0 0.0
    %4696 = vmatpush1.msra.mxu0 %v203
    %4697 = vmatprep.subr.mxu0 0.0
    %4698 = vmatpush1.msra.mxu0 %v204
    %4699 = vmatprep.subr.mxu0 0.0
    %4700 = vmatpush1.msra.mxu0 %v205
    %4701 = vmatprep.subr.mxu0 0.0
    %4702 = vmatpush1.msra.mxu0 %v206
    %4703 = vmatprep.subr.mxu0 0.0
    %4704 = vmatpush1.msra.mxu0 %v207
    %4705 = vmatprep.subr.mxu0 0.0
    %4706 = vmatpush1.msra.mxu0 %v208
    %4707 = vmatprep.subr.mxu0 0.0
    %4708 = vmatpush1.msra.mxu0 %v209
    %4709 = vmatprep.subr.mxu0 0.0
    %4710 = vmatpush1.msra.mxu0 %v210
    %4711 = vmatprep.subr.mxu0 0.0
    %4712 = vmatpush1.msra.mxu0 %v211
    %4713 = vmatprep.subr.mxu0 0.0
    %4714 = vmatpush1.msra.mxu0 %v212
    %4715 = vmatprep.subr.mxu0 0.0
    %4716 = vmatpush1.msra.mxu0 %v213
    %4717 = vmatprep.subr.mxu0 0.0
    %4718 = vmatpush1.msra.mxu0 %v214
    %4719 = vmatprep.subr.mxu0 0.0
    %4720 = vmatpush1.msra.mxu0 %v215
    %4721 = vmatprep.subr.mxu0 0.0
    %4722 = vmatpush1.msra.mxu0 %v216
    %4723 = vmatprep.subr.mxu0 0.0
    %4724 = vmatpush1.msra.mxu0 %v217
    %4725 = vmatprep.subr.mxu0 0.0
    %4726 = vmatpush1.msra.mxu0 %v218
    %4727 = vmatprep.subr.mxu0 0.0
    %4728 = vmatpush1.msra.mxu0 %v219
    %4729 = vmatprep.mubr.f32.mxu0 %v4152
    %4730 = vmatmul.mubr.f32.gmra.mrb[0].mxu0 %v4151
    %v4731 = vpop.f32.mrb[0].mxu0
    %v4732 = vadd.f32 0.0, %v4731
    %v4733 = vpop.f32.mrb[0].mxu0
    %4734 = vdwg.mxu0
    %4735 = vmatprep.subr.mxu0 0.0
    %4736 = vmatpush1.msra.mxu0 %v220
    %4737 = vmatprep.subr.mxu0 0.0
    %4738 = vmatpush1.msra.mxu0 %v221
    %4739 = vmatprep.subr.mxu0 0.0
    %4740 = vmatpush1.msra.mxu0 %v222
    %4741 = vmatprep.subr.mxu0 0.0
    %4742 = vmatpush1.msra.mxu0 %v223
    %4743 = vmatprep.subr.mxu0 0.0
    %4744 = vmatpush1.msra.mxu0 %v224
    %4745 = vmatprep.subr.mxu0 0.0
    %4746 = vmatpush1.msra.mxu0 %v225
    %4747 = vmatprep.subr.mxu0 0.0
    %4748 = vmatpush1.msra.mxu0 %v226
    %4749 = vmatprep.subr.mxu0 0.0
    %4750 = vmatpush1.msra.mxu0 %v227
    %4751 = vmatprep.subr.mxu0 0.0
    %4752 = vmatpush1.msra.mxu0 %v228
    %4753 = vmatprep.subr.mxu0 0.0
    %4754 = vmatpush1.msra.mxu0 %v229
    %4755 = vmatprep.subr.mxu0 0.0
    %4756 = vmatpush1.msra.mxu0 %v230
    %4757 = vmatprep.subr.mxu0 0.0
    %4758 = vmatpush1.msra.mxu0 %v231
    %4759 = vmatprep.subr.mxu0 0.0
    %4760 = vmatpush1.msra.mxu0 %v232
    %4761 = vmatprep.subr.mxu0 0.0
    %4762 = vmatpush1.msra.mxu0 %v233
    %4763 = vmatprep.subr.mxu0 0.0
    %4764 = vmatpush1.msra.mxu0 %v234
    %4765 = vmatprep.subr.mxu0 0.0
    %4766 = vmatpush1.msra.mxu0 %v235
    %4767 = vmatprep.subr.mxu0 0.0
    %4768 = vmatpush1.msra.mxu0 %v236
    %4769 = vmatprep.subr.mxu0 0.0
    %4770 = vmatpush1.msra.mxu0 %v237
    %4771 = vmatprep.subr.mxu0 0.0
    %4772 = vmatpush1.msra.mxu0 %v238
    %4773 = vmatprep.subr.mxu0 0.0
    %4774 = vmatpush1.msra.mxu0 %v239
    %4775 = vmatprep.subr.mxu0 0.0
    %4776 = vmatpush1.msra.mxu0 %v240
    %4777 = vmatprep.subr.mxu0 0.0
    %4778 = vmatpush1.msra.mxu0 %v241
    %4779 = vmatprep.subr.mxu0 0.0
    %4780 = vmatpush1.msra.mxu0 %v242
    %4781 = vmatprep.subr.mxu0 0.0
    %4782 = vmatpush1.msra.mxu0 %v243
    %4783 = vmatprep.subr.mxu0 0.0
    %4784 = vmatpush1.msra.mxu0 %v244
    %4785 = vmatprep.subr.mxu0 0.0
    %4786 = vmatpush1.msra.mxu0 %v245
    %4787 = vmatprep.subr.mxu0 0.0
    %4788 = vmatpush1.msra.mxu0 %v246
    %4789 = vmatprep.subr.mxu0 0.0
    %4790 = vmatpush1.msra.mxu0 %v247
    %4791 = vmatprep.subr.mxu0 0.0
    %4792 = vmatpush1.msra.mxu0 %v248
    %4793 = vmatprep.subr.mxu0 0.0
    %4794 = vmatpush1.msra.mxu0 %v249
    %4795 = vmatprep.subr.mxu0 0.0
    %4796 = vmatpush1.msra.mxu0 %v250
    %4797 = vmatprep.subr.mxu0 0.0
    %4798 = vmatpush1.msra.mxu0 %v251
    %4799 = vmatprep.mubr.f32.mxu0 %v4155
    %4800 = vmatmul.mubr.f32.gmra.mrb[0].mxu0 %v4154
    %v4801 = vpop.f32.mrb[0].mxu0
    %v4802 = vadd.f32 0.0, %v4801
    %v4803 = vpop.f32.mrb[0].mxu0
    %4804 = vdwg.mxu0
    %4805 = vmatprep.subr.mxu0 0.0
    %4806 = vmatpush1.msra.mxu0 %v252
    %4807 = vmatprep.subr.mxu0 0.0
    %4808 = vmatpush1.msra.mxu0 %v253
    %4809 = vmatprep.subr.mxu0 0.0
    %4810 = vmatpush1.msra.mxu0 %v254
    %4811 = vmatprep.subr.mxu0 0.0
    %4812 = vmatpush1.msra.mxu0 %v255
    %4813 = vmatprep.subr.mxu0 0.0
    %4814 = vmatpush1.msra.mxu0 %v256
    %4815 = vmatprep.subr.mxu0 0.0
    %4816 = vmatpush1.msra.mxu0 %v257
    %4817 = vmatprep.subr.mxu0 0.0
    %4818 = vmatpush1.msra.mxu0 %v258
    %4819 = vmatprep.subr.mxu0 0.0
    %4820 = vmatpush1.msra.mxu0 %v259
    %4821 = vmatprep.subr.mxu0 0.0
    %4822 = vmatpush1.msra.mxu0 %v260
    %4823 = vmatprep.subr.mxu0 0.0
    %4824 = vmatpush1.msra.mxu0 %v261
    %4825 = vmatprep.subr.mxu0 0.0
    %4826 = vmatpush1.msra.mxu0 %v262
    %4827 = vmatprep.subr.mxu0 0.0
    %4828 = vmatpush1.msra.mxu0 %v263
    %4829 = vmatprep.subr.mxu0 0.0
    %4830 = vmatpush1.msra.mxu0 %v264
    %4831 = vmatprep.subr.mxu0 0.0
    %4832 = vmatpush1.msra.mxu0 %v265
    %4833 = vmatprep.subr.mxu0 0.0
    %4834 = vmatpush1.msra.mxu0 %v266
    %4835 = vmatprep.subr.mxu0 0.0
    %4836 = vmatpush1.msra.mxu0 %v267
    %4837 = vmatprep.subr.mxu0 0.0
    %4838 = vmatpush1.msra.mxu0 %v268
    %4839 = vmatprep.subr.mxu0 0.0
    %4840 = vmatpush1.msra.mxu0 %v269
    %4841 = vmatprep.subr.mxu0 0.0
    %4842 = vmatpush1.msra.mxu0 %v270
    %4843 = vmatprep.subr.mxu0 0.0
    %4844 = vmatpush1.msra.mxu0 %v271
    %4845 = vmatprep.subr.mxu0 0.0
    %4846 = vmatpush1.msra.mxu0 %v272
    %4847 = vmatprep.subr.mxu0 0.0
    %4848 = vmatpush1.msra.mxu0 %v273
    %4849 = vmatprep.subr.mxu0 0.0
    %4850 = vmatpush1.msra.mxu0 %v274
    %4851 = vmatprep.subr.mxu0 0.0
    %4852 = vmatpush1.msra.mxu0 %v275
    %4853 = vmatprep.subr.mxu0 0.0
    %4854 = vmatpush1.msra.mxu0 %v276
    %4855 = vmatprep.subr.mxu0 0.0
    %4856 = vmatpush1.msra.mxu0 %v277
    %4857 = vmatprep.subr.mxu0 0.0
    %4858 = vmatpush1.msra.mxu0 %v278
    %4859 = vmatprep.subr.mxu0 0.0
    %4860 = vmatpush1.msra.mxu0 %v279
    %4861 = vmatprep.subr.mxu0 0.0
    %4862 = vmatpush1.msra.mxu0 %v280
    %4863 = vmatprep.subr.mxu0 0.0
    %4864 = vmatpush1.msra.mxu0 %v281
    %4865 = vmatprep.subr.mxu0 0.0
    %4866 = vmatpush1.msra.mxu0 %v282
    %4867 = vmatprep.subr.mxu0 0.0
    %4868 = vmatpush1.msra.mxu0 %v283
    %4869 = vmatprep.mubr.f32.mxu0 %v4158
    %4870 = vmatmul.mubr.f32.gmra.mrb[0].mxu0 %v4157
    %v4871 = vpop.f32.mrb[0].mxu0
    %v4872 = vadd.f32 0.0, %v4871
    %v4873 = vpop.f32.mrb[0].mxu0
    %4874 = vdwg.mxu0
    %v4875 = vld [vmem:[%s4] sm:$0x1]
    %v4876 = vmul.f32 %v4382, %v4875
    %v4877 = vmul.f32 %v4452, %v4875
    %v4878 = vmul.f32 %v4522, %v4875
    %v4879 = vmul.f32 %v4592, %v4875
    %v4880 = vmul.f32 %v4662, %v4875
    %v4881 = vmul.f32 %v4732, %v4875
    %v4882 = vmul.f32 %v4802, %v4875
    %v4883 = vmul.f32 %v4872, %v4875
    %vm4884 = vcmask 253952
    %v4885 = vsel %vm4884, %v4876, 0.0
    %4886 = vadd.xlane.f32.xlu0 %v4885
    %v4887 = vpop.xlane.xlu0 %4886
    %v4888 = vsel %vm4884, %v4877, 0.0
    %4889 = vadd.xlane.f32.xlu0 %v4888
    %v4890 = vpop.xlane.xlu0 %4889
    %v4891 = vsel %vm4884, %v4878, 0.0
    %4892 = vadd.xlane.f32.xlu0 %v4891
    %v4893 = vpop.xlane.xlu0 %4892
    %v4894 = vsel %vm4884, %v4879, 0.0
    %4895 = vadd.xlane.f32.xlu0 %v4894
    %v4896 = vpop.xlane.xlu0 %4895
    %v4897 = vsel %vm4884, %v4880, 0.0
    %4898 = vadd.xlane.f32.xlu0 %v4897
    %v4899 = vpop.xlane.xlu0 %4898
    %v4900 = vsel %vm4884, %v4881, 0.0
    %4901 = vadd.xlane.f32.xlu0 %v4900
    %v4902 = vpop.xlane.xlu0 %4901
    %v4903 = vsel %vm4884, %v4882, 0.0
    %4904 = vadd.xlane.f32.xlu0 %v4903
    %v4905 = vpop.xlane.xlu0 %4904
    %v4906 = vsel %vm4884, %v4883, 0.0
    %4907 = vadd.xlane.f32.xlu0 %v4906
    %v4908 = vpop.xlane.xlu0 %4907
    %v4909 = vld [vmem:[#allocation2] sm:$0x1]
    %v4910 = vadd.f32 %v4887, %v4909
    %v4911 = vadd.f32 %v4890, %v4909
    %v4912 = vadd.f32 %v4893, %v4909
    %v4913 = vadd.f32 %v4896, %v4909
    %v4914 = vadd.f32 %v4899, %v4909
    %v4915 = vadd.f32 %v4902, %v4909
    %v4916 = vadd.f32 %v4905, %v4909
    %v4917 = vadd.f32 %v4908, %v4909
    %v4918 = vxor.u32 %v4910, 2147483648
    %v4919 = vxor.u32 %v4911, 2147483648
    %v4920 = vxor.u32 %v4912, 2147483648
    %v4921 = vxor.u32 %v4913, 2147483648
    %v4922 = vxor.u32 %v4914, 2147483648
    %v4923 = vxor.u32 %v4915, 2147483648
    %v4924 = vxor.u32 %v4916, 2147483648
    %v4925 = vxor.u32 %v4917, 2147483648
    %v4926 = vmul.f32 %v4918, 1.442695
    %v4927 = vpow.pop %v4926
    %v4928 = vmul.f32 %v4919, 1.442695
    %v4929 = vpow.pop %v4928
    %v4930 = vmul.f32 %v4920, 1.442695
    %v4931 = vpow.pop %v4930
    %v4932 = vmul.f32 %v4921, 1.442695
    %v4933 = vpow.pop %v4932
    %v4934 = vmul.f32 %v4922, 1.442695
    %v4935 = vpow.pop %v4934
    %v4936 = vmul.f32 %v4923, 1.442695
    %v4937 = vpow.pop %v4936
    %v4938 = vmul.f32 %v4924, 1.442695
    %v4939 = vpow.pop %v4938
    %v4940 = vmul.f32 %v4925, 1.442695
    %v4941 = vpow.pop %v4940
    %v4942 = vadd.f32 %v4927, 1.0
    %v4943 = vadd.f32 %v4929, 1.0
    %v4944 = vadd.f32 %v4931, 1.0
    %v4945 = vadd.f32 %v4933, 1.0
    %v4946 = vadd.f32 %v4935, 1.0
    %v4947 = vadd.f32 %v4937, 1.0
    %v4948 = vadd.f32 %v4939, 1.0
    %v4949 = vadd.f32 %v4941, 1.0
    %v4950 = vrcp.pop %v4942
    %v4951 = vmul.f32 1.0, %v4950
    %v4952 = vrcp.pop %v4943
    %v4953 = vmul.f32 1.0, %v4952
    %v4954 = vrcp.pop %v4944
    %v4955 = vmul.f32 1.0, %v4954
    %v4956 = vrcp.pop %v4945
    %v4957 = vmul.f32 1.0, %v4956
    %v4958 = vrcp.pop %v4946
    %v4959 = vmul.f32 1.0, %v4958
    %v4960 = vrcp.pop %v4947
    %v4961 = vmul.f32 1.0, %v4960
    %v4962 = vrcp.pop %v4948
    %v4963 = vmul.f32 1.0, %v4962
    %v4964 = vrcp.pop %v4949
    %v4965 = vmul.f32 1.0, %v4964
    %vm4966 = vcmask 0
    %4967 = vst.msk [vmem:[%s6] sm:$0x1] %vm4966, %v4951
    %4968 = vst.msk [vmem:[%s6 + $0x1] sm:$0x1] %vm4966, %v4953
    %4969 = vst.msk [vmem:[%s6 + $0x2] sm:$0x1] %vm4966, %v4955
    %4970 = vst.msk [vmem:[%s6 + $0x3] sm:$0x1] %vm4966, %v4957
    %4971 = vst.msk [vmem:[%s6 + $0x4] sm:$0x1] %vm4966, %v4959
    %4972 = vst.msk [vmem:[%s6 + $0x5] sm:$0x1] %vm4966, %v4961
    %4973 = vst.msk [vmem:[%s6 + $0x6] sm:$0x1] %vm4966, %v4963
    %4974 = vst.msk [vmem:[%s6 + $0x7] sm:$0x1] %vm4966, %v4965
    // Predicated region
    $region26: #{tpu_custom_call.1} parent=1 // pred_check
      _
    $region27: #{tpu_custom_call.1} parent=1 // pred_check_branch
      %4976 = sbr.rel (0) target = $region29
    $region28: #{tpu_custom_call.1} parent=1 // pred_region
      _
    $region29: #{tpu_custom_call.1} parent=1 // pred_fallthru
      _
    // Predicated region
    $region30: #{tpu_custom_call.1} parent=1 // pred_check
      _
    $region31: #{tpu_custom_call.1} parent=1 // pred_check_branch
      %4978 = sbr.rel (0) target = $region33
    $region32: #{tpu_custom_call.1} parent=1 // pred_region
      %s4980 = ssub.s32 256, 256
      %4981 = vsyncadd [#allocation4], %s4980
      %s4982 = sshll.u32 [#allocation3], 4
      %s4983 = int_to_ptr.vmem [resolvable:$true] %s4982
      %4988 = dma.vmem_to_hbm [thread:$0]  %s4983, 256, %s7, [#allocation4], 32, 32, 2
    $region33: #{tpu_custom_call.1} parent=1 // pred_fallthru
      _
    // Predicated region
    $region34: #{tpu_custom_call.1} parent=1 // pred_check
      _
    $region35: #{tpu_custom_call.1} parent=1 // pred_check_branch
      %4990 = sbr.rel (0) target = $region37
    $region36: #{tpu_custom_call.1} parent=1 // pred_region
      _
    $region37: #{tpu_custom_call.1} parent=1 // pred_fallthru
      _
    // Predicated region
    $region38: #{tpu_custom_call.1} parent=1 // pred_check
      _
    $region39: #{tpu_custom_call.1} parent=1 // pred_check_branch
      %4992 = sbr.rel (0) target = $region41
    $region40: #{tpu_custom_call.1} parent=1 // pred_region
      %4993 = dma.done [#allocation4], 256
    $region41: #{tpu_custom_call.1} parent=1 // pred_fallthru
      _
    %4994 = vsyncpa [#allocation4], 1

</llo_original>
